<compile_context>
chip_gen: v7x
topology: tpu7x:2x2x1
jax: 0.10.0
libtpu: 0.0.40
codegen_flags: <defaults>
</compile_context>

<pallas_src>
import functools

import jax
import jax.numpy as jnp
from jax import lax
from jax.experimental import pallas as pl
from jax.experimental.pallas import tpu as pltpu

BN_EPS = 1e-5          # torch.nn.BatchNorm1d default
LANE = 128


def _round_up(x, m):
    return ((x + m - 1) // m) * m


def _choose_tile_n(n, target):
    """Largest divisor of n that is <= target and a multiple of 8 (or n itself)."""
    if n <= target:
        return n
    for t in range(min(target, n), 7, -1):
        if n % t == 0 and t % 8 == 0:
            return t
    # TODO(synk): ragged N (no multiple-of-8 divisor) falls back to one full tile;
    #             pad + mask rows instead if this ever matters at large N.
    return n


# ----------------------------------------------------------------------------- kernels
def _interp_fuse_kernel(xyz1_ref, xyz2t_ref, p1_ref, p2_ref,
                        wa_ref, wb_ref, bf_ref,
                        yf_ref, stats_ref):
    """3-NN inverse-distance interpolation + 'concat + fuse Conv1d(k=1)' for one
    (batch, N-tile) block.  Also emits partial BN statistics of the conv output."""
    x1 = xyz1_ref[0]                     # [tN, 3]  f32
    x2t = xyz2t_ref[0]                   # [3, S]   f32
    tn = x1.shape[0]
    s = x2t.shape[1]

    # squared distances via 3 broadcast multiply-adds on the VPU
    # (contraction length 3 is far too small for the MXU).
    d = None
    for c in range(3):
        diff = x1[:, c:c + 1] - x2t[c:c + 1, :]          # [tN, S]
        d = diff * diff if d is None else d + diff * diff

    # 3 nearest neighbours (exact torch semantics: ties broken by lowest index).
    iota = lax.broadcasted_iota(jnp.int32, (tn, s), 1)
    selected = jnp.zeros((tn, s), jnp.bool_)
    masked = d
    for _ in range(3):
        mn = jnp.min(masked, axis=-1, keepdims=True)
        is_min = masked == mn
        first = jnp.min(jnp.where(is_min, iota, jnp.int32(s)),
                        axis=-1, keepdims=True)
        onehot = iota == first
        selected = jnp.logical_or(selected, onehot)
        masked = jnp.where(onehot, jnp.float32(jnp.inf), masked)

    # inverse-distance weights: reciprocals on the (otherwise idle) EUP,
    # normalization as a multiply instead of a divide.
    recip = pl.reciprocal(d + jnp.float32(1e-8), approx=True)
    w_full = jnp.where(selected, recip, 0.0)
    norm = jnp.sum(w_full, axis=-1, keepdims=True)
    weight = w_full * pl.reciprocal(norm, approx=True)

    # interpolation + split-weight "concat + fuse conv" as bf16 MXU matmuls
    # with f32 accumulation.
    interp = jnp.dot(weight.astype(jnp.bfloat16), p2_ref[0],
                     preferred_element_type=jnp.float32)       # [tN, D2p]
    yf = (jnp.dot(p1_ref[0], wa_ref[...], preferred_element_type=jnp.float32)
          + jnp.dot(interp.astype(jnp.bfloat16), wb_ref[...],
                    preferred_element_type=jnp.float32)
          + bf_ref[...])                                       # [tN, Cp] f32
    yf_ref[...] = yf[None]

    # per-tile partial BatchNorm statistics (row 0 = sum, row 1 = sum of squares)
    cp = yf.shape[1]
    ssum = jnp.sum(yf, axis=0, keepdims=True)
    ssq = jnp.sum(yf * yf, axis=0, keepdims=True)
    stats_ref[...] = jnp.concatenate(
        [ssum, ssq, jnp.zeros((6, cp), jnp.float32)], axis=0)[None, None]


def _bn_relu_conv_kernel(x_ref, scale_ref, shift_ref, w_ref, b_ref,
                         out_ref, stats_ref):
    """y = relu(x * scale + shift) @ W + b   (+ partial BN stats of y)."""
    h = jnp.maximum(x_ref[0] * scale_ref[...] + shift_ref[...], 0.0)
    y = jnp.dot(h.astype(jnp.bfloat16), w_ref[...],
                preferred_element_type=jnp.float32) + b_ref[...]
    out_ref[...] = y[None]

    cp = y.shape[1]
    ssum = jnp.sum(y, axis=0, keepdims=True)
    ssq = jnp.sum(y * y, axis=0, keepdims=True)
    stats_ref[...] = jnp.concatenate(
        [ssum, ssq, jnp.zeros((6, cp), jnp.float32)], axis=0)[None, None]


def _residual_out_kernel(yf_ref, zp_ref, scale_f_ref, shift_f_ref,
                         scale2_ref, shift2_ref, out_ref):
    """out = relu( bn2(z_pre) + relu(bn_fuse(y_fuse)) )."""
    y = jnp.maximum(yf_ref[0] * scale_f_ref[...] + shift_f_ref[...], 0.0)
    z = zp_ref[0] * scale2_ref[...] + shift2_ref[...]
    out_ref[...] = jnp.maximum(z + y, 0.0)[None]


# ----------------------------------------------------------------------------- specs
def _row_spec(tn, c):
    return pl.BlockSpec((1, tn, c), lambda b, n: (b, n, 0))


def _per_batch_spec(r, c):
    return pl.BlockSpec((1, r, c), lambda b, n: (b, 0, 0))


def _full2d_spec(r, c):
    return pl.BlockSpec((r, c), lambda b, n: (0, 0))


def _stats_spec(cp):
    return pl.BlockSpec((1, 1, 8, cp), lambda b, n: (b, n, 0, 0))


def _bn_affine(stats, count, gamma, beta):
    """Combine per-tile partials into BN scale/shift (gamma/beta are [1, Cp])."""
    ssum = jnp.sum(stats[:, :, 0, :], axis=(0, 1))
    ssq = jnp.sum(stats[:, :, 1, :], axis=(0, 1))
    mean = ssum / count
    var = jnp.maximum(ssq / count - mean * mean, 0.0)   # biased var (train mode)
    scale = gamma * lax.rsqrt(var + BN_EPS)
    shift = beta - mean * scale
    return scale, shift


# ----------------------------------------------------------------------------- params
def init_params(key, in_channel, out_channel, d1):
    """Deterministic synthetic parameters (torch Conv1d-style uniform init,
    BN gamma=1 / beta=0).  Conv weights are stored pre-transposed as [Cin, Cout]."""
    def conv(k, in_c, out_c):
        kw, kb = jax.random.split(k)
        bound = 1.0 / (in_c ** 0.5)
        w = jax.random.uniform(kw, (in_c, out_c), jnp.float32, -bound, bound)
        b = jax.random.uniform(kb, (out_c,), jnp.float32, -bound, bound)
        return w, b

    k0, k1, k2 = jax.random.split(key, 3)
    wf, bf = conv(k0, in_channel, out_channel)
    w1, b1 = conv(k1, out_channel, out_channel)
    w2, b2 = conv(k2, out_channel, out_channel)
    ones = jnp.ones((out_channel,), jnp.float32)
    zeros = jnp.zeros((out_channel,), jnp.float32)
    return dict(
        w_fuse_a=wf[:d1], w_fuse_b=wf[d1:], b_fuse=bf, g_fuse=ones, beta_fuse=zeros,
        w1=w1, b1=b1, g1=ones, beta1=zeros,
        w2=w2, b2=b2, g2=ones, beta2=zeros)


# ----------------------------------------------------------------------------- wrapper
@functools.partial(jax.jit, static_argnames=("tile_n",))
def pointnet_feature_propagation(xyz1, xyz2, points1, points2, params, *,
                                 tile_n=256):
    """xyz1: [B,N,3], xyz2: [B,S,3], points1: [B,D1,N] or None, points2: [B,D2,S].
    Returns new_points: [B, out_channel, N] (PyTorch channels-first)."""
    xyz1 = jnp.asarray(xyz1, jnp.float32)
    xyz2 = jnp.asarray(xyz2, jnp.float32)
    B, N, _ = xyz1.shape
    S = xyz2.shape[1]

    p2_t = jnp.transpose(jnp.asarray(points2, jnp.float32), (0, 2, 1))   # [B,S,D2]
    if points1 is not None:
        p1_t = jnp.transpose(jnp.asarray(points1, jnp.float32), (0, 2, 1))
    else:
        p1_t = jnp.zeros((B, N, 0), jnp.float32)
    d1, d2 = p1_t.shape[-1], p2_t.shape[-1]

    if S == 1:
        # torch `repeat` path == 3 coincident neighbours with weight 1/3 each.
        xyz2 = jnp.concatenate([xyz2] * 3, axis=1)
        p2_t = jnp.concatenate([p2_t] * 3, axis=1)
        S = 3

    c_out = params['b_fuse'].shape[0]
    cp = _round_up(max(c_out, 1), LANE)
    d1p = _round_up(max(d1, 1), LANE)
    d2p = _round_up(max(d2, 1), LANE)

    def pad_last(a, tgt):
        return jnp.pad(a, [(0, 0)] * (a.ndim - 1) + [(0, tgt - a.shape[-1])])

    def pad2d(a, r, c):
        return jnp.pad(a, [(0, r - a.shape[0]), (0, c - a.shape[1])])

    def pad_vec(v, fill=0.0):
        return jnp.pad(v.astype(jnp.float32), (0, cp - v.shape[0]),
                       constant_values=fill)[None, :]           # [1, Cp]

    # bf16 activations / weights for the MXU; geometry + BN params stay f32.
    p1_p = pad_last(p1_t, d1p).astype(jnp.bfloat16)             # [B,N,D1p]
    p2_p = pad_last(p2_t, d2p).astype(jnp.bfloat16)             # [B,S,D2p]
    xyz2_t = jnp.transpose(xyz2, (0, 2, 1))                     # [B,3,S]

    wa = pad2d(params['w_fuse_a'], d1p, cp).astype(jnp.bfloat16)
    wb = pad2d(params['w_fuse_b'], d2p, cp).astype(jnp.bfloat16)
    w1 = pad2d(params['w1'], cp, cp).astype(jnp.bfloat16)
    w2 = pad2d(params['w2'], cp, cp).astype(jnp.bfloat16)
    bf = pad_vec(params['b_fuse']);  gf = pad_vec(params['g_fuse'], 1.0)
    betaf = pad_vec(params['beta_fuse'])
    b1 = pad_vec(params['b1']);      g1 = pad_vec(params['g1'], 1.0)
    beta1 = pad_vec(params['beta1'])
    b2 = pad_vec(params['b2']);      g2 = pad_vec(params['g2'], 1.0)
    beta2 = pad_vec(params['beta2'])

    tn = _choose_tile_n(N, tile_n)
    n_tiles = N // tn
    grid = (B, n_tiles)
    count = jnp.float32(B * N)

    cparams = pltpu.CompilerParams(
        dimension_semantics=("parallel", "parallel"),
        vmem_limit_bytes=48 * 1024 * 1024)

    act_shape = jax.ShapeDtypeStruct((B, N, cp), jnp.float32)
    stats_shape = jax.ShapeDtypeStruct((B, n_tiles, 8, cp), jnp.float32)

    # --- pass 1: interpolation + fuse conv (+ fuse-BN partials) ---
    yf, stats_f = pl.pallas_call(
        _interp_fuse_kernel,
        grid=grid,
        in_specs=[
            _row_spec(tn, 3),            # xyz1
            _per_batch_spec(3, S),       # xyz2 (transposed)
            _row_spec(tn, d1p),          # points1 (channels-last, padded, bf16)
            _per_batch_spec(S, d2p),     # points2 (channels-last, padded, bf16)
            _full2d_spec(d1p, cp),       # W_fuse (skip part)
            _full2d_spec(d2p, cp),       # W_fuse (interp part)
            _full2d_spec(1, cp),         # b_fuse
        ],
        out_specs=(_row_spec(tn, cp), _stats_spec(cp)),
        out_shape=(act_shape, stats_shape),
        compiler_params=cparams,
    )(xyz1, xyz2_t, p1_p, p2_p, wa, wb, bf)
    scale_f, shift_f = _bn_affine(stats_f, count, gf, betaf)

    # --- pass 2: fuse BN/ReLU + extraction conv1 (+ BN1 partials) ---
    conv_specs = [_row_spec(tn, cp), _full2d_spec(1, cp), _full2d_spec(1, cp),
                  _full2d_spec(cp, cp), _full2d_spec(1, cp)]
    h_pre, stats_1 = pl.pallas_call(
        _bn_relu_conv_kernel, grid=grid, in_specs=conv_specs,
        out_specs=(_row_spec(tn, cp), _stats_spec(cp)),
        out_shape=(act_shape, stats_shape), compiler_params=cparams,
    )(yf, scale_f, shift_f, w1, b1)
    scale_1, shift_1 = _bn_affine(stats_1, count, g1, beta1)

    # --- pass 3: BN1/ReLU + extraction conv2 (+ BN2 partials) ---
    z_pre, stats_2 = pl.pallas_call(
        _bn_relu_conv_kernel, grid=grid, in_specs=conv_specs,
        out_specs=(_row_spec(tn, cp), _stats_spec(cp)),
        out_shape=(act_shape, stats_shape), compiler_params=cparams,
    )(h_pre, scale_1, shift_1, w2, b2)
    scale_2, shift_2 = _bn_affine(stats_2, count, g2, beta2)

    # --- pass 4: BN2 + residual + final ReLU ---
    out_p = pl.pallas_call(
        _residual_out_kernel, grid=grid,
        in_specs=[_row_spec(tn, cp), _row_spec(tn, cp),
                  _full2d_spec(1, cp), _full2d_spec(1, cp),
                  _full2d_spec(1, cp), _full2d_spec(1, cp)],
        out_specs=_row_spec(tn, cp),
        out_shape=act_shape, compiler_params=cparams,
    )(yf, z_pre, scale_f, shift_f, scale_2, shift_2)

    return jnp.transpose(out_p[:, :, :c_out], (0, 2, 1))        # [B, Cout, N]


# ----------------------------------------------------------------------------- reference
def _reference(xyz1, xyz2, points1, points2, params):
    """Pure-JAX reference (gather-based 3-NN, single-pass BN) with the same
    bf16-in / f32-accumulate matmul policy as the kernels."""
    xyz1 = jnp.asarray(xyz1, jnp.float32)
    xyz2 = jnp.asarray(xyz2, jnp.float32)
    p2 = jnp.transpose(jnp.asarray(points2, jnp.float32), (0, 2, 1))
    B, N, _ = xyz1.shape
    S = xyz2.shape[1]
    d2 = p2.shape[-1]

    if S == 1:
        interp = jnp.broadcast_to(p2, (B, N, d2))
    else:
        dists = jnp.sum((xyz1[:, :, None, :] - xyz2[:, None, :, :]) ** 2, axis=-1)
        k = min(3, S)
        idx = jnp.argsort(dists, axis=-1)[:, :, :k]
        dk = jnp.take_along_axis(dists, idx, axis=-1)
        recip = 1.0 / (dk + 1e-8)
        w = recip / jnp.sum(recip, axis=-1, keepdims=True)
        p2b = jnp.broadcast_to(p2[:, None], (B, N, S, d2))
        idxb = jnp.broadcast_to(idx[..., None], (B, N, k, d2))
        gathered = jnp.take_along_axis(p2b, idxb, axis=2)
        interp = jnp.sum(
            gathered.astype(jnp.bfloat16).astype(jnp.float32)
            * w.astype(jnp.bfloat16).astype(jnp.float32)[..., None], axis=2)

    if points1 is not None:
        p1 = jnp.transpose(jnp.asarray(points1, jnp.float32), (0, 2, 1))
        x = jnp.concatenate([p1, interp], axis=-1)
    else:
        x = interp
    x2 = x.reshape(B * N, x.shape[-1])

    def conv_bn(h, w, b, gamma, beta, relu):
        y = jnp.dot(h.astype(jnp.bfloat16), w.astype(jnp.bfloat16),
                    preferred_element_type=jnp.float32) + b[None, :]
        mean = jnp.mean(y, axis=0, keepdims=True)
        var = jnp.mean((y - mean) ** 2, axis=0, keepdims=True)
        y = (y - mean) * lax.rsqrt(var + BN_EPS) * gamma[None, :] + beta[None, :]
        return jnp.maximum(y, 0.0) if relu else y

    wf = jnp.concatenate([params['w_fuse_a'], params['w_fuse_b']], axis=0)
    y = conv_bn(x2, wf, params['b_fuse'], params['g_fuse'], params['beta_fuse'], True)
    h = conv_bn(y, params['w1'], params['b1'], params['g1'], params['beta1'], True)
    z = conv_bn(h, params['w2'], params['b2'], params['g2'], params['beta2'], False)
    out = jnp.maximum(z + y, 0.0).reshape(B, N, -1)
    return jnp.transpose(out, (0, 2, 1))


# ----------------------------------------------------------------------------- demo
if __name__ == "__main__":
    key = jax.random.PRNGKey(0)
    B, N, S, D1, D2 = 2, 128, 32, 4, 6
    out_channel = 16
    in_channel = D1 + D2

    k_xyz1, k_xyz2, k_p1, k_p2, k_param = jax.random.split(key, 5)
    xyz1 = jax.random.normal(k_xyz1, (B, N, 3), jnp.float32)
    xyz2 = jax.random.normal(k_xyz2, (B, S, 3), jnp.float32)
    points1 = jax.random.normal(k_p1, (B, D1, N), jnp.float32)
    points2 = jax.random.normal(k_p2, (B, D2, S), jnp.float32)
    params = init_params(k_param, in_channel, out_channel, D1)

    # tile_n=64 -> 2 N-tiles per batch sample: exercises the tiled grid and the
    # cross-tile BatchNorm partial-statistics reduction.
    out = pointnet_feature_propagation(xyz1, xyz2, points1, points2, params,
                                       tile_n=64)
    jax.block_until_ready(out)
    assert out.shape == (B, out_channel, N)
    assert bool(jnp.all(jnp.isfinite(out)))

    ref = _reference(xyz1, xyz2, points1, points2, params)
    err = float(jnp.max(jnp.abs(out - ref)))
    assert err < 0.15, f"max abs diff vs reference: {err}"
    print("KERNEL_OK")
</pallas_src>

<mosaic_0001>
module attributes {stable_mosaic.version = 11 : i64} {
  func.func @_interp_fuse_kernel(%arg0: i32, %arg1: i32, %arg2: memref<1x64x3xf32, #tpu.memory_space<vmem>>, %arg3: memref<1x3x32xf32, #tpu.memory_space<vmem>>, %arg4: memref<1x64x128xbf16, #tpu.memory_space<vmem>>, %arg5: memref<1x32x128xbf16, #tpu.memory_space<vmem>>, %arg6: memref<128x128xbf16, #tpu.memory_space<vmem>>, %arg7: memref<128x128xbf16, #tpu.memory_space<vmem>>, %arg8: memref<1x128xf32, #tpu.memory_space<vmem>>, %arg9: memref<1x64x128xf32, #tpu.memory_space<vmem>>, %arg10: memref<1x1x8x128xf32, #tpu.memory_space<vmem>>) attributes {dimension_semantics = [#tpu.dimension_semantics<parallel>, #tpu.dimension_semantics<parallel>], iteration_bounds = array<i64: 2, 2>, scalar_prefetch = 0 : i64, scratch_operands = 0 : i64, tpu.core_type = #tpu.core_type<tc>, window_params = [{transform_indices = @transform_0, window_bounds = array<i64: 1, 64, 3>}, {transform_indices = @transform_1, window_bounds = array<i64: 1, 3, 32>}, {transform_indices = @transform_2, window_bounds = array<i64: 1, 64, 128>}, {transform_indices = @transform_3, window_bounds = array<i64: 1, 32, 128>}, {pipeline_mode = #tpu.pipeline_mode<synchronous>, transform_indices = @transform_4, window_bounds = array<i64: 128, 128>}, {pipeline_mode = #tpu.pipeline_mode<synchronous>, transform_indices = @transform_5, window_bounds = array<i64: 128, 128>}, {pipeline_mode = #tpu.pipeline_mode<synchronous>, transform_indices = @transform_6, window_bounds = array<i64: 1, 128>}, {transform_indices = @transform_7, window_bounds = array<i64: 1, 64, 128>}, {transform_indices = @transform_8, window_bounds = array<i64: 1, 1, 8, 128>}]} {
    %c0 = arith.constant 0 : index
    %c0_0 = arith.constant 0 : index
    %c0_1 = arith.constant 0 : index
    %0 = vector.load %arg2[%c0, %c0_0, %c0_1] : memref<1x64x3xf32, #tpu.memory_space<vmem>>, vector<1x64x3xf32>
    %1 = vector.shape_cast %0 : vector<1x64x3xf32> to vector<64x3xf32>
    %c0_2 = arith.constant 0 : index
    %c0_3 = arith.constant 0 : index
    %c0_4 = arith.constant 0 : index
    %2 = vector.load %arg3[%c0_2, %c0_3, %c0_4] : memref<1x3x32xf32, #tpu.memory_space<vmem>>, vector<1x3x32xf32>
    %3 = vector.shape_cast %2 : vector<1x3x32xf32> to vector<3x32xf32>
    %4 = vector.extract_strided_slice %1 {offsets = [0, 0], sizes = [64, 1], strides = [1, 1]} : vector<64x3xf32> to vector<64x1xf32>
    %5 = vector.extract_strided_slice %3 {offsets = [0, 0], sizes = [1, 32], strides = [1, 1]} : vector<3x32xf32> to vector<1x32xf32>
    %6 = vector.broadcast %4 : vector<64x1xf32> to vector<64x32xf32>
    %7 = vector.broadcast %5 : vector<1x32xf32> to vector<64x32xf32>
    %8 = arith.subf %6, %7 : vector<64x32xf32>
    %9 = arith.mulf %8, %8 : vector<64x32xf32>
    %10 = vector.extract_strided_slice %1 {offsets = [0, 1], sizes = [64, 1], strides = [1, 1]} : vector<64x3xf32> to vector<64x1xf32>
    %11 = vector.extract_strided_slice %3 {offsets = [1, 0], sizes = [1, 32], strides = [1, 1]} : vector<3x32xf32> to vector<1x32xf32>
    %12 = vector.broadcast %10 : vector<64x1xf32> to vector<64x32xf32>
    %13 = vector.broadcast %11 : vector<1x32xf32> to vector<64x32xf32>
    %14 = arith.subf %12, %13 : vector<64x32xf32>
    %15 = arith.mulf %14, %14 : vector<64x32xf32>
    %16 = arith.addf %9, %15 : vector<64x32xf32>
    %17 = vector.extract_strided_slice %1 {offsets = [0, 2], sizes = [64, 1], strides = [1, 1]} : vector<64x3xf32> to vector<64x1xf32>
    %18 = vector.extract_strided_slice %3 {offsets = [2, 0], sizes = [1, 32], strides = [1, 1]} : vector<3x32xf32> to vector<1x32xf32>
    %19 = vector.broadcast %17 : vector<64x1xf32> to vector<64x32xf32>
    %20 = vector.broadcast %18 : vector<1x32xf32> to vector<64x32xf32>
    %21 = arith.subf %19, %20 : vector<64x32xf32>
    %22 = arith.mulf %21, %21 : vector<64x32xf32>
    %23 = arith.addf %16, %22 : vector<64x32xf32>
    %24 = tpu.iota {dimensions = array<i32: 1>} : vector<64x32xi32>
    %false = arith.constant false
    %25 = vector.broadcast %false : i1 to vector<64x32xi1>
    %cst = arith.constant dense<0x7F800000> : vector<64xf32>
    %26 = vector.multi_reduction <minimumf>, %23, %cst [1] : vector<64x32xf32> to vector<64xf32>
    %27 = vector.shape_cast %26 : vector<64xf32> to vector<64x1xf32>
    %28 = vector.broadcast %27 : vector<64x1xf32> to vector<64x32xf32>
    %29 = arith.cmpf oeq, %23, %28 : vector<64x32xf32>
    %c32_i32 = arith.constant 32 : i32
    %30 = vector.broadcast %c32_i32 : i32 to vector<64x32xi32>
    %31 = arith.select %29, %24, %30 : vector<64x32xi1>, vector<64x32xi32>
    %cst_5 = arith.constant dense<2147483647> : vector<64xi32>
    %32 = vector.multi_reduction <minsi>, %31, %cst_5 [1] : vector<64x32xi32> to vector<64xi32>
    %33 = vector.shape_cast %32 : vector<64xi32> to vector<64x1xi32>
    %34 = vector.broadcast %33 : vector<64x1xi32> to vector<64x32xi32>
    %35 = arith.cmpi eq, %24, %34 : vector<64x32xi32>
    %36 = arith.ori %25, %35 : vector<64x32xi1>
    %cst_6 = arith.constant 0x7F800000 : f32
    %37 = vector.broadcast %cst_6 : f32 to vector<64x32xf32>
    %38 = arith.select %35, %37, %23 : vector<64x32xi1>, vector<64x32xf32>
    %cst_7 = arith.constant dense<0x7F800000> : vector<64xf32>
    %39 = vector.multi_reduction <minimumf>, %38, %cst_7 [1] : vector<64x32xf32> to vector<64xf32>
    %40 = vector.shape_cast %39 : vector<64xf32> to vector<64x1xf32>
    %41 = vector.broadcast %40 : vector<64x1xf32> to vector<64x32xf32>
    %42 = arith.cmpf oeq, %38, %41 : vector<64x32xf32>
    %c32_i32_8 = arith.constant 32 : i32
    %43 = vector.broadcast %c32_i32_8 : i32 to vector<64x32xi32>
    %44 = arith.select %42, %24, %43 : vector<64x32xi1>, vector<64x32xi32>
    %cst_9 = arith.constant dense<2147483647> : vector<64xi32>
    %45 = vector.multi_reduction <minsi>, %44, %cst_9 [1] : vector<64x32xi32> to vector<64xi32>
    %46 = vector.shape_cast %45 : vector<64xi32> to vector<64x1xi32>
    %47 = vector.broadcast %46 : vector<64x1xi32> to vector<64x32xi32>
    %48 = arith.cmpi eq, %24, %47 : vector<64x32xi32>
    %49 = arith.ori %36, %48 : vector<64x32xi1>
    %cst_10 = arith.constant 0x7F800000 : f32
    %50 = vector.broadcast %cst_10 : f32 to vector<64x32xf32>
    %51 = arith.select %48, %50, %38 : vector<64x32xi1>, vector<64x32xf32>
    %cst_11 = arith.constant dense<0x7F800000> : vector<64xf32>
    %52 = vector.multi_reduction <minimumf>, %51, %cst_11 [1] : vector<64x32xf32> to vector<64xf32>
    %53 = vector.shape_cast %52 : vector<64xf32> to vector<64x1xf32>
    %54 = vector.broadcast %53 : vector<64x1xf32> to vector<64x32xf32>
    %55 = arith.cmpf oeq, %51, %54 : vector<64x32xf32>
    %c32_i32_12 = arith.constant 32 : i32
    %56 = vector.broadcast %c32_i32_12 : i32 to vector<64x32xi32>
    %57 = arith.select %55, %24, %56 : vector<64x32xi1>, vector<64x32xi32>
    %cst_13 = arith.constant dense<2147483647> : vector<64xi32>
    %58 = vector.multi_reduction <minsi>, %57, %cst_13 [1] : vector<64x32xi32> to vector<64xi32>
    %59 = vector.shape_cast %58 : vector<64xi32> to vector<64x1xi32>
    %60 = vector.broadcast %59 : vector<64x1xi32> to vector<64x32xi32>
    %61 = arith.cmpi eq, %24, %60 : vector<64x32xi32>
    %62 = arith.ori %49, %61 : vector<64x32xi1>
    %cst_14 = arith.constant 9.99999993E-9 : f32
    %63 = vector.broadcast %cst_14 : f32 to vector<64x32xf32>
    %64 = arith.addf %23, %63 : vector<64x32xf32>
    %65 = tpu.reciprocal %64 {approx = true} : vector<64x32xf32> -> vector<64x32xf32>
    %cst_15 = arith.constant 0.000000e+00 : f32
    %66 = vector.broadcast %cst_15 : f32 to vector<64x32xf32>
    %67 = arith.select %62, %65, %66 : vector<64x32xi1>, vector<64x32xf32>
    %cst_16 = arith.constant dense<0.000000e+00> : vector<64xf32>
    %68 = vector.multi_reduction <add>, %67, %cst_16 [1] : vector<64x32xf32> to vector<64xf32>
    %69 = vector.shape_cast %68 : vector<64xf32> to vector<64x1xf32>
    %70 = tpu.reciprocal %69 {approx = true} : vector<64x1xf32> -> vector<64x1xf32>
    %71 = vector.broadcast %70 : vector<64x1xf32> to vector<64x32xf32>
    %72 = arith.mulf %67, %71 : vector<64x32xf32>
    %73 = arith.truncf %72 : vector<64x32xf32> to vector<64x32xbf16>
    %c0_17 = arith.constant 0 : index
    %c0_18 = arith.constant 0 : index
    %c0_19 = arith.constant 0 : index
    %74 = vector.load %arg5[%c0_17, %c0_18, %c0_19] : memref<1x32x128xbf16, #tpu.memory_space<vmem>>, vector<1x32x128xbf16>
    %75 = vector.shape_cast %74 : vector<1x32x128xbf16> to vector<32x128xbf16>
    %cst_20 = arith.constant dense<0.000000e+00> : vector<64x128xf32>
    %76 = tpu.matmul %73, %75, %cst_20 {dimension_numbers = #tpu.dot_dimension_numbers<[1], [0], [0], [1], [0, 0, 1, 1], [], []>} : vector<64x32xbf16>, vector<32x128xbf16>, vector<64x128xf32> -> vector<64x128xf32>
    %c0_21 = arith.constant 0 : index
    %c0_22 = arith.constant 0 : index
    %c0_23 = arith.constant 0 : index
    %77 = vector.load %arg4[%c0_21, %c0_22, %c0_23] : memref<1x64x128xbf16, #tpu.memory_space<vmem>>, vector<1x64x128xbf16>
    %78 = vector.shape_cast %77 : vector<1x64x128xbf16> to vector<64x128xbf16>
    %c0_24 = arith.constant 0 : index
    %c0_25 = arith.constant 0 : index
    %79 = vector.load %arg6[%c0_24, %c0_25] : memref<128x128xbf16, #tpu.memory_space<vmem>>, vector<128x128xbf16>
    %cst_26 = arith.constant dense<0.000000e+00> : vector<64x128xf32>
    %80 = tpu.matmul %78, %79, %cst_26 {dimension_numbers = #tpu.dot_dimension_numbers<[1], [0], [0], [1], [0, 0, 1, 1], [], []>} : vector<64x128xbf16>, vector<128x128xbf16>, vector<64x128xf32> -> vector<64x128xf32>
    %81 = arith.truncf %76 : vector<64x128xf32> to vector<64x128xbf16>
    %c0_27 = arith.constant 0 : index
    %c0_28 = arith.constant 0 : index
    %82 = vector.load %arg7[%c0_27, %c0_28] : memref<128x128xbf16, #tpu.memory_space<vmem>>, vector<128x128xbf16>
    %cst_29 = arith.constant dense<0.000000e+00> : vector<64x128xf32>
    %83 = tpu.matmul %81, %82, %cst_29 {dimension_numbers = #tpu.dot_dimension_numbers<[1], [0], [0], [1], [0, 0, 1, 1], [], []>} : vector<64x128xbf16>, vector<128x128xbf16>, vector<64x128xf32> -> vector<64x128xf32>
    %84 = arith.addf %80, %83 : vector<64x128xf32>
    %c0_30 = arith.constant 0 : index
    %c0_31 = arith.constant 0 : index
    %85 = vector.load %arg8[%c0_30, %c0_31] : memref<1x128xf32, #tpu.memory_space<vmem>>, vector<1x128xf32>
    %86 = vector.broadcast %85 : vector<1x128xf32> to vector<64x128xf32>
    %87 = arith.addf %84, %86 : vector<64x128xf32>
    %88 = vector.shape_cast %87 : vector<64x128xf32> to vector<1x64x128xf32>
    %c0_32 = arith.constant 0 : index
    %c0_33 = arith.constant 0 : index
    %c0_34 = arith.constant 0 : index
    %89 = vector.load %arg9[%c0_32, %c0_33, %c0_34] : memref<1x64x128xf32, #tpu.memory_space<vmem>>, vector<1x64x128xf32>
    tpu.vector_store %arg9[%c0_32, %c0_33, %c0_34], %88 {strides = array<i32>} : memref<1x64x128xf32, #tpu.memory_space<vmem>>, vector<1x64x128xf32>,
    %cst_35 = arith.constant dense<0.000000e+00> : vector<128xf32>
    %90 = vector.multi_reduction <add>, %87, %cst_35 [0] : vector<64x128xf32> to vector<128xf32>
    %91 = vector.shape_cast %90 : vector<128xf32> to vector<1x128xf32>
    %92 = arith.mulf %87, %87 : vector<64x128xf32>
    %cst_36 = arith.constant dense<0.000000e+00> : vector<128xf32>
    %93 = vector.multi_reduction <add>, %92, %cst_36 [0] : vector<64x128xf32> to vector<128xf32>
    %94 = vector.shape_cast %93 : vector<128xf32> to vector<1x128xf32>
    %cst_37 = arith.constant 0.000000e+00 : f32
    %95 = vector.broadcast %cst_37 : f32 to vector<6x128xf32>
    %96 = tpu.concatenate %91, %94, %95 in 0 : vector<1x128xf32>, vector<1x128xf32>, vector<6x128xf32> -> vector<8x128xf32>
    %97 = vector.shape_cast %96 : vector<8x128xf32> to vector<1x1x8x128xf32>
    %c0_38 = arith.constant 0 : index
    %c0_39 = arith.constant 0 : index
    %c0_40 = arith.constant 0 : index
    %c0_41 = arith.constant 0 : index
    %98 = vector.load %arg10[%c0_38, %c0_39, %c0_40, %c0_41] : memref<1x1x8x128xf32, #tpu.memory_space<vmem>>, vector<1x1x8x128xf32>
    tpu.vector_store %arg10[%c0_38, %c0_39, %c0_40, %c0_41], %97 {strides = array<i32>} : memref<1x1x8x128xf32, #tpu.memory_space<vmem>>, vector<1x1x8x128xf32>,
    return
  }
  func.func @transform_0(%arg0: i32, %arg1: i32) -> (i32, i32, i32) {
    %c0_i32 = arith.constant 0 : i32
    %c0_i32_0 = arith.constant 0 : i32
    return %arg0, %arg1, %c0_i32 : i32, i32, i32
  }
  func.func @transform_1(%arg0: i32, %arg1: i32) -> (i32, i32, i32) {
    %c0_i32 = arith.constant 0 : i32
    %c0_i32_0 = arith.constant 0 : i32
    %c0_i32_1 = arith.constant 0 : i32
    return %arg0, %c0_i32, %c0_i32_0 : i32, i32, i32
  }
  func.func @transform_2(%arg0: i32, %arg1: i32) -> (i32, i32, i32) {
    %c0_i32 = arith.constant 0 : i32
    %c0_i32_0 = arith.constant 0 : i32
    return %arg0, %arg1, %c0_i32 : i32, i32, i32
  }
  func.func @transform_3(%arg0: i32, %arg1: i32) -> (i32, i32, i32) {
    %c0_i32 = arith.constant 0 : i32
    %c0_i32_0 = arith.constant 0 : i32
    %c0_i32_1 = arith.constant 0 : i32
    return %arg0, %c0_i32, %c0_i32_0 : i32, i32, i32
  }
  func.func @transform_4(%arg0: i32, %arg1: i32) -> (i32, i32) {
    %c0_i32 = arith.constant 0 : i32
    %c0_i32_0 = arith.constant 0 : i32
    %c0_i32_1 = arith.constant 0 : i32
    return %c0_i32, %c0_i32_0 : i32, i32
  }
  func.func @transform_5(%arg0: i32, %arg1: i32) -> (i32, i32) {
    %c0_i32 = arith.constant 0 : i32
    %c0_i32_0 = arith.constant 0 : i32
    %c0_i32_1 = arith.constant 0 : i32
    return %c0_i32, %c0_i32_0 : i32, i32
  }
  func.func @transform_6(%arg0: i32, %arg1: i32) -> (i32, i32) {
    %c0_i32 = arith.constant 0 : i32
    %c0_i32_0 = arith.constant 0 : i32
    %c0_i32_1 = arith.constant 0 : i32
    return %c0_i32, %c0_i32_0 : i32, i32
  }
  func.func @transform_7(%arg0: i32, %arg1: i32) -> (i32, i32, i32) {
    %c0_i32 = arith.constant 0 : i32
    %c0_i32_0 = arith.constant 0 : i32
    return %arg0, %arg1, %c0_i32 : i32, i32, i32
  }
  func.func @transform_8(%arg0: i32, %arg1: i32) -> (i32, i32, i32, i32) {
    %c0_i32 = arith.constant 0 : i32
    %c0_i32_0 = arith.constant 0 : i32
    %c0_i32_1 = arith.constant 0 : i32
    return %arg0, %arg1, %c0_i32, %c0_i32_0 : i32, i32, i32, i32
  }
}

module attributes {stable_mosaic.version = 11 : i64} {
  func.func @_residual_out_kernel(%arg0: i32, %arg1: i32, %arg2: memref<1x64x128xf32, #tpu.memory_space<vmem>>, %arg3: memref<1x64x128xf32, #tpu.memory_space<vmem>>, %arg4: memref<1x128xf32, #tpu.memory_space<vmem>>, %arg5: memref<1x128xf32, #tpu.memory_space<vmem>>, %arg6: memref<1x128xf32, #tpu.memory_space<vmem>>, %arg7: memref<1x128xf32, #tpu.memory_space<vmem>>, %arg8: memref<1x64x128xf32, #tpu.memory_space<vmem>>) attributes {dimension_semantics = [#tpu.dimension_semantics<parallel>, #tpu.dimension_semantics<parallel>], iteration_bounds = array<i64: 2, 2>, scalar_prefetch = 0 : i64, scratch_operands = 0 : i64, tpu.core_type = #tpu.core_type<tc>, window_params = [{transform_indices = @transform_0, window_bounds = array<i64: 1, 64, 128>}, {transform_indices = @transform_1, window_bounds = array<i64: 1, 64, 128>}, {pipeline_mode = #tpu.pipeline_mode<synchronous>, transform_indices = @transform_2, window_bounds = array<i64: 1, 128>}, {pipeline_mode = #tpu.pipeline_mode<synchronous>, transform_indices = @transform_3, window_bounds = array<i64: 1, 128>}, {pipeline_mode = #tpu.pipeline_mode<synchronous>, transform_indices = @transform_4, window_bounds = array<i64: 1, 128>}, {pipeline_mode = #tpu.pipeline_mode<synchronous>, transform_indices = @transform_5, window_bounds = array<i64: 1, 128>}, {transform_indices = @transform_6, window_bounds = array<i64: 1, 64, 128>}]} {
    %c0 = arith.constant 0 : index
    %c0_0 = arith.constant 0 : index
    %c0_1 = arith.constant 0 : index
    %0 = vector.load %arg2[%c0, %c0_0, %c0_1] : memref<1x64x128xf32, #tpu.memory_space<vmem>>, vector<1x64x128xf32>
    %1 = vector.shape_cast %0 : vector<1x64x128xf32> to vector<64x128xf32>
    %c0_2 = arith.constant 0 : index
    %c0_3 = arith.constant 0 : index
    %2 = vector.load %arg4[%c0_2, %c0_3] : memref<1x128xf32, #tpu.memory_space<vmem>>, vector<1x128xf32>
    %3 = vector.broadcast %2 : vector<1x128xf32> to vector<64x128xf32>
    %4 = arith.mulf %1, %3 : vector<64x128xf32>
    %c0_4 = arith.constant 0 : index
    %c0_5 = arith.constant 0 : index
    %5 = vector.load %arg5[%c0_4, %c0_5] : memref<1x128xf32, #tpu.memory_space<vmem>>, vector<1x128xf32>
    %6 = vector.broadcast %5 : vector<1x128xf32> to vector<64x128xf32>
    %7 = arith.addf %4, %6 : vector<64x128xf32>
    %cst = arith.constant 0.000000e+00 : f32
    %8 = vector.broadcast %cst : f32 to vector<64x128xf32>
    %9 = arith.maximumf %7, %8 : vector<64x128xf32>
    %c0_6 = arith.constant 0 : index
    %c0_7 = arith.constant 0 : index
    %c0_8 = arith.constant 0 : index
    %10 = vector.load %arg3[%c0_6, %c0_7, %c0_8] : memref<1x64x128xf32, #tpu.memory_space<vmem>>, vector<1x64x128xf32>
    %11 = vector.shape_cast %10 : vector<1x64x128xf32> to vector<64x128xf32>
    %c0_9 = arith.constant 0 : index
    %c0_10 = arith.constant 0 : index
    %12 = vector.load %arg6[%c0_9, %c0_10] : memref<1x128xf32, #tpu.memory_space<vmem>>, vector<1x128xf32>
    %13 = vector.broadcast %12 : vector<1x128xf32> to vector<64x128xf32>
    %14 = arith.mulf %11, %13 : vector<64x128xf32>
    %c0_11 = arith.constant 0 : index
    %c0_12 = arith.constant 0 : index
    %15 = vector.load %arg7[%c0_11, %c0_12] : memref<1x128xf32, #tpu.memory_space<vmem>>, vector<1x128xf32>
    %16 = vector.broadcast %15 : vector<1x128xf32> to vector<64x128xf32>
    %17 = arith.addf %14, %16 : vector<64x128xf32>
    %18 = arith.addf %17, %9 : vector<64x128xf32>
    %cst_13 = arith.constant 0.000000e+00 : f32
    %19 = vector.broadcast %cst_13 : f32 to vector<64x128xf32>
    %20 = arith.maximumf %18, %19 : vector<64x128xf32>
    %21 = vector.shape_cast %20 : vector<64x128xf32> to vector<1x64x128xf32>
    %c0_14 = arith.constant 0 : index
    %c0_15 = arith.constant 0 : index
    %c0_16 = arith.constant 0 : index
    %22 = vector.load %arg8[%c0_14, %c0_15, %c0_16] : memref<1x64x128xf32, #tpu.memory_space<vmem>>, vector<1x64x128xf32>
    tpu.vector_store %arg8[%c0_14, %c0_15, %c0_16], %21 {strides = array<i32>} : memref<1x64x128xf32, #tpu.memory_space<vmem>>, vector<1x64x128xf32>,
    return
  }
  func.func @transform_0(%arg0: i32, %arg1: i32) -> (i32, i32, i32) {
    %c0_i32 = arith.constant 0 : i32
    %c0_i32_0 = arith.constant 0 : i32
    return %arg0, %arg1, %c0_i32 : i32, i32, i32
  }
  func.func @transform_1(%arg0: i32, %arg1: i32) -> (i32, i32, i32) {
    %c0_i32 = arith.constant 0 : i32
    %c0_i32_0 = arith.constant 0 : i32
    return %arg0, %arg1, %c0_i32 : i32, i32, i32
  }
  func.func @transform_2(%arg0: i32, %arg1: i32) -> (i32, i32) {
    %c0_i32 = arith.constant 0 : i32
    %c0_i32_0 = arith.constant 0 : i32
    %c0_i32_1 = arith.constant 0 : i32
    return %c0_i32, %c0_i32_0 : i32, i32
  }
  func.func @transform_3(%arg0: i32, %arg1: i32) -> (i32, i32) {
    %c0_i32 = arith.constant 0 : i32
    %c0_i32_0 = arith.constant 0 : i32
    %c0_i32_1 = arith.constant 0 : i32
    return %c0_i32, %c0_i32_0 : i32, i32
  }
  func.func @transform_4(%arg0: i32, %arg1: i32) -> (i32, i32) {
    %c0_i32 = arith.constant 0 : i32
    %c0_i32_0 = arith.constant 0 : i32
    %c0_i32_1 = arith.constant 0 : i32
    return %c0_i32, %c0_i32_0 : i32, i32
  }
  func.func @transform_5(%arg0: i32, %arg1: i32) -> (i32, i32) {
    %c0_i32 = arith.constant 0 : i32
    %c0_i32_0 = arith.constant 0 : i32
    %c0_i32_1 = arith.constant 0 : i32
    return %c0_i32, %c0_i32_0 : i32, i32
  }
  func.func @transform_6(%arg0: i32, %arg1: i32) -> (i32, i32, i32) {
    %c0_i32 = arith.constant 0 : i32
    %c0_i32_0 = arith.constant 0 : i32
    return %arg0, %arg1, %c0_i32 : i32, i32, i32
  }
}

module attributes {stable_mosaic.version = 11 : i64} {
  func.func @_bn_relu_conv_kernel(%arg0: i32, %arg1: i32, %arg2: memref<1x64x128xf32, #tpu.memory_space<vmem>>, %arg3: memref<1x128xf32, #tpu.memory_space<vmem>>, %arg4: memref<1x128xf32, #tpu.memory_space<vmem>>, %arg5: memref<128x128xbf16, #tpu.memory_space<vmem>>, %arg6: memref<1x128xf32, #tpu.memory_space<vmem>>, %arg7: memref<1x64x128xf32, #tpu.memory_space<vmem>>, %arg8: memref<1x1x8x128xf32, #tpu.memory_space<vmem>>) attributes {dimension_semantics = [#tpu.dimension_semantics<parallel>, #tpu.dimension_semantics<parallel>], iteration_bounds = array<i64: 2, 2>, scalar_prefetch = 0 : i64, scratch_operands = 0 : i64, tpu.core_type = #tpu.core_type<tc>, window_params = [{transform_indices = @transform_0, window_bounds = array<i64: 1, 64, 128>}, {pipeline_mode = #tpu.pipeline_mode<synchronous>, transform_indices = @transform_1, window_bounds = array<i64: 1, 128>}, {pipeline_mode = #tpu.pipeline_mode<synchronous>, transform_indices = @transform_2, window_bounds = array<i64: 1, 128>}, {pipeline_mode = #tpu.pipeline_mode<synchronous>, transform_indices = @transform_3, window_bounds = array<i64: 128, 128>}, {pipeline_mode = #tpu.pipeline_mode<synchronous>, transform_indices = @transform_4, window_bounds = array<i64: 1, 128>}, {transform_indices = @transform_5, window_bounds = array<i64: 1, 64, 128>}, {transform_indices = @transform_6, window_bounds = array<i64: 1, 1, 8, 128>}]} {
    %c0 = arith.constant 0 : index
    %c0_0 = arith.constant 0 : index
    %c0_1 = arith.constant 0 : index
    %0 = vector.load %arg2[%c0, %c0_0, %c0_1] : memref<1x64x128xf32, #tpu.memory_space<vmem>>, vector<1x64x128xf32>
    %1 = vector.shape_cast %0 : vector<1x64x128xf32> to vector<64x128xf32>
    %c0_2 = arith.constant 0 : index
    %c0_3 = arith.constant 0 : index
    %2 = vector.load %arg3[%c0_2, %c0_3] : memref<1x128xf32, #tpu.memory_space<vmem>>, vector<1x128xf32>
    %3 = vector.broadcast %2 : vector<1x128xf32> to vector<64x128xf32>
    %4 = arith.mulf %1, %3 : vector<64x128xf32>
    %c0_4 = arith.constant 0 : index
    %c0_5 = arith.constant 0 : index
    %5 = vector.load %arg4[%c0_4, %c0_5] : memref<1x128xf32, #tpu.memory_space<vmem>>, vector<1x128xf32>
    %6 = vector.broadcast %5 : vector<1x128xf32> to vector<64x128xf32>
    %7 = arith.addf %4, %6 : vector<64x128xf32>
    %cst = arith.constant 0.000000e+00 : f32
    %8 = vector.broadcast %cst : f32 to vector<64x128xf32>
    %9 = arith.maximumf %7, %8 : vector<64x128xf32>
    %10 = arith.truncf %9 : vector<64x128xf32> to vector<64x128xbf16>
    %c0_6 = arith.constant 0 : index
    %c0_7 = arith.constant 0 : index
    %11 = vector.load %arg5[%c0_6, %c0_7] : memref<128x128xbf16, #tpu.memory_space<vmem>>, vector<128x128xbf16>
    %cst_8 = arith.constant dense<0.000000e+00> : vector<64x128xf32>
    %12 = tpu.matmul %10, %11, %cst_8 {dimension_numbers = #tpu.dot_dimension_numbers<[1], [0], [0], [1], [0, 0, 1, 1], [], []>} : vector<64x128xbf16>, vector<128x128xbf16>, vector<64x128xf32> -> vector<64x128xf32>
    %c0_9 = arith.constant 0 : index
    %c0_10 = arith.constant 0 : index
    %13 = vector.load %arg6[%c0_9, %c0_10] : memref<1x128xf32, #tpu.memory_space<vmem>>, vector<1x128xf32>
    %14 = vector.broadcast %13 : vector<1x128xf32> to vector<64x128xf32>
    %15 = arith.addf %12, %14 : vector<64x128xf32>
    %16 = vector.shape_cast %15 : vector<64x128xf32> to vector<1x64x128xf32>
    %c0_11 = arith.constant 0 : index
    %c0_12 = arith.constant 0 : index
    %c0_13 = arith.constant 0 : index
    %17 = vector.load %arg7[%c0_11, %c0_12, %c0_13] : memref<1x64x128xf32, #tpu.memory_space<vmem>>, vector<1x64x128xf32>
    tpu.vector_store %arg7[%c0_11, %c0_12, %c0_13], %16 {strides = array<i32>} : memref<1x64x128xf32, #tpu.memory_space<vmem>>, vector<1x64x128xf32>,
    %cst_14 = arith.constant dense<0.000000e+00> : vector<128xf32>
    %18 = vector.multi_reduction <add>, %15, %cst_14 [0] : vector<64x128xf32> to vector<128xf32>
    %19 = vector.shape_cast %18 : vector<128xf32> to vector<1x128xf32>
    %20 = arith.mulf %15, %15 : vector<64x128xf32>
    %cst_15 = arith.constant dense<0.000000e+00> : vector<128xf32>
    %21 = vector.multi_reduction <add>, %20, %cst_15 [0] : vector<64x128xf32> to vector<128xf32>
    %22 = vector.shape_cast %21 : vector<128xf32> to vector<1x128xf32>
    %cst_16 = arith.constant 0.000000e+00 : f32
    %23 = vector.broadcast %cst_16 : f32 to vector<6x128xf32>
    %24 = tpu.concatenate %19, %22, %23 in 0 : vector<1x128xf32>, vector<1x128xf32>, vector<6x128xf32> -> vector<8x128xf32>
    %25 = vector.shape_cast %24 : vector<8x128xf32> to vector<1x1x8x128xf32>
    %c0_17 = arith.constant 0 : index
    %c0_18 = arith.constant 0 : index
    %c0_19 = arith.constant 0 : index
    %c0_20 = arith.constant 0 : index
    %26 = vector.load %arg8[%c0_17, %c0_18, %c0_19, %c0_20] : memref<1x1x8x128xf32, #tpu.memory_space<vmem>>, vector<1x1x8x128xf32>
    tpu.vector_store %arg8[%c0_17, %c0_18, %c0_19, %c0_20], %25 {strides = array<i32>} : memref<1x1x8x128xf32, #tpu.memory_space<vmem>>, vector<1x1x8x128xf32>,
    return
  }
  func.func @transform_0(%arg0: i32, %arg1: i32) -> (i32, i32, i32) {
    %c0_i32 = arith.constant 0 : i32
    %c0_i32_0 = arith.constant 0 : i32
    return %arg0, %arg1, %c0_i32 : i32, i32, i32
  }
  func.func @transform_1(%arg0: i32, %arg1: i32) -> (i32, i32) {
    %c0_i32 = arith.constant 0 : i32
    %c0_i32_0 = arith.constant 0 : i32
    %c0_i32_1 = arith.constant 0 : i32
    return %c0_i32, %c0_i32_0 : i32, i32
  }
  func.func @transform_2(%arg0: i32, %arg1: i32) -> (i32, i32) {
    %c0_i32 = arith.constant 0 : i32
    %c0_i32_0 = arith.constant 0 : i32
    %c0_i32_1 = arith.constant 0 : i32
    return %c0_i32, %c0_i32_0 : i32, i32
  }
  func.func @transform_3(%arg0: i32, %arg1: i32) -> (i32, i32) {
    %c0_i32 = arith.constant 0 : i32
    %c0_i32_0 = arith.constant 0 : i32
    %c0_i32_1 = arith.constant 0 : i32
    return %c0_i32, %c0_i32_0 : i32, i32
  }
  func.func @transform_4(%arg0: i32, %arg1: i32) -> (i32, i32) {
    %c0_i32 = arith.constant 0 : i32
    %c0_i32_0 = arith.constant 0 : i32
    %c0_i32_1 = arith.constant 0 : i32
    return %c0_i32, %c0_i32_0 : i32, i32
  }
  func.func @transform_5(%arg0: i32, %arg1: i32) -> (i32, i32, i32) {
    %c0_i32 = arith.constant 0 : i32
    %c0_i32_0 = arith.constant 0 : i32
    return %arg0, %arg1, %c0_i32 : i32, i32, i32
  }
  func.func @transform_6(%arg0: i32, %arg1: i32) -> (i32, i32, i32, i32) {
    %c0_i32 = arith.constant 0 : i32
    %c0_i32_0 = arith.constant 0 : i32
    %c0_i32_1 = arith.constant 0 : i32
    return %arg0, %arg1, %c0_i32, %c0_i32_0 : i32, i32, i32, i32
  }
}

</mosaic_0001>

<llo_original>
// kernel: pointnet_feature_propagation.7
$region0: #{pointnet_feature_propagation.7}
  #allocation0 [shape = 'u32[]', space=smem, size = 0x4, offset = 0x4, fixed_abs, tag = 'smem constant byte address 0x4 - core index']
  #allocation1 [shape = 'u32[144,128]{1,0:T(1,128)}', space=vmem, size = 0x12000, scoped, tag = 'internal scratch']
  %s0 = inlined_call_operand.vmem [shape: f32[2,128,128], index: 0, kind: input, shape index: {}]
  %s1 = inlined_call_operand.vmem [shape: f32[2,128,128], index: 1, kind: input, shape index: {}]
  %s2 = inlined_call_operand.vmem [shape: f32[1,128], index: 2, kind: input, shape index: {}]
  %s3 = inlined_call_operand.vmem [shape: f32[1,128], index: 3, kind: input, shape index: {}]
  %s4 = inlined_call_operand.vmem [shape: f32[1,128], index: 4, kind: input, shape index: {}]
  %s5 = inlined_call_operand.vmem [shape: f32[1,128], index: 5, kind: input, shape index: {}]
  %s6 = inlined_call_operand.vmem [shape: f32[2,128,128], index: 6, kind: output, shape index: {}]
  %s7 = sld [smem:[#allocation0]]
  $region57: #{pointnet_feature_propagation.7} parent=0
    _
  %s9 = ssub.s32 1, %s7
  %s10 = scalar_select 0, %s9, %s7
  loop: start=0, step=1, limit=6
  $region2: #{pointnet_feature_propagation.7} parent=0 // loop_pre_header
    _
  $region3: #{pointnet_feature_propagation.7} parent=0 // loop_header
    %s12 = sphi 0, %s16
    %p13 = scmp.ge.s32.totalorder %s12, 6
    %s19 = sphi 0, %s31
    %s20 = sphi 0, %s27
    %s21 = sphi 0, %s19
    %s22 = sphi 0, %s20
    %s23 = sphi 0, %s21
    %s24 = sphi 0, %s22
    %s36 = sphi 0, %s38
    %s39 = sphi 0, %s36
    %s40 = sphi 0, %s39
    %s56 = sphi 0, %s40
    %s64 = sphi 0, %s66
    %s67 = sphi 0, %s64
    %s68 = sphi 0, %s67
    %s84 = sphi 0, %s68
    %s88 = sphi 0, %s88
    %s90 = sphi 0, %s88
    %s91 = sphi 0, %s90
    %s105 = sphi 0, %s91
    %s109 = sphi 0, %s109
    %s111 = sphi 0, %s109
    %s112 = sphi 0, %s111
    %s126 = sphi 0, %s112
    %s130 = sphi 0, %s130
    %s132 = sphi 0, %s130
    %s133 = sphi 0, %s132
    %s147 = sphi 0, %s133
    %s151 = sphi 0, %s151
    %s153 = sphi 0, %s151
    %s154 = sphi 0, %s153
    %s168 = sphi 0, %s154
    %s176 = sphi 0, %s178
    %s179 = sphi 0, %s176
    %s180 = sphi 0, %s179
    %s196 = sphi 0, %s180
  $region4: #{pointnet_feature_propagation.7} parent=0 // loop_header_branch
    %15 = sbr.rel (%p13) target = $region8
  $region5: #{pointnet_feature_propagation.7} parent=0 // loop_body
    %s17 = ssub.s32 %s12, 1
    %s18 = ssub.s32 %s12, 2
    %s25 = sadd.s32 1, %s20
    %p26 = scmp.ge.s32.totalorder %s25, 2
    %s27 = scalar_select %p26, 0, %s25
    %s28 = sadd.s32 1, %s19
    %s29 = scalar_select %p26, %s28, %s19
    %p30 = scmp.ge.s32.totalorder %s29, 2
    %s31 = scalar_select %p30, 0, %s29
    %s32 = ssub.s32 %s19, %s31
    %s33 = ssub.s32 %s20, %s27
    %s34 = sor.u32 %s32, %s33
    %p35 = scmp.eq.s32.totalorder %s34, 0
    %s37 = sadd.s32 %s36, 1
    %s38 = scalar_select %p35, %s36, %s37
    %p41 = pneg %p35
    %p42 = scmp.eq.s32.totalorder %s12, 3
    %p43 = por %p41, %p42
    %p44 = scmp.ne.s32.totalorder %s36, %s39
    %p45 = scmp.eq.s32.totalorder %s12, 0
    %p46 = por %p44, %p45
    %p47 = scmp.ne.s32.totalorder %s36, %s39
    %p48 = scmp.eq.s32.totalorder %s17, 3
    %p49 = por %p47, %p48
    %p50 = scmp.ne.s32.totalorder %s39, %s40
    %p51 = scmp.eq.s32.totalorder %s17, 0
    %p52 = por %p50, %p51
    %p53 = scmp.ne.s32.totalorder %s39, %s40
    %p54 = scmp.eq.s32.totalorder %s18, 3
    %p55 = por %p53, %p54
    %p57 = scmp.ne.s32.totalorder %s40, %s56
    %p58 = scmp.eq.s32.totalorder %s18, 0
    %p59 = por %p57, %p58
    %s60 = ssub.s32 %s19, %s31
    %s61 = ssub.s32 %s20, %s27
    %s62 = sor.u32 %s60, %s61
    %p63 = scmp.eq.s32.totalorder %s62, 0
    %s65 = sadd.s32 %s64, 1
    %s66 = scalar_select %p63, %s64, %s65
    %p69 = pneg %p63
    %p70 = scmp.eq.s32.totalorder %s12, 3
    %p71 = por %p69, %p70
    %p72 = scmp.ne.s32.totalorder %s64, %s67
    %p73 = scmp.eq.s32.totalorder %s12, 0
    %p74 = por %p72, %p73
    %p75 = scmp.ne.s32.totalorder %s64, %s67
    %p76 = scmp.eq.s32.totalorder %s17, 3
    %p77 = por %p75, %p76
    %p78 = scmp.ne.s32.totalorder %s67, %s68
    %p79 = scmp.eq.s32.totalorder %s17, 0
    %p80 = por %p78, %p79
    %p81 = scmp.ne.s32.totalorder %s67, %s68
    %p82 = scmp.eq.s32.totalorder %s18, 3
    %p83 = por %p81, %p82
    %p85 = scmp.ne.s32.totalorder %s68, %s84
    %p86 = scmp.eq.s32.totalorder %s18, 0
    %p87 = por %p85, %p86
    %s89 = sadd.s32 %s88, 1
    %p92 = scmp.eq.s32.totalorder %s12, 3
    %p93 = scmp.ne.s32.totalorder %s88, %s90
    %p94 = scmp.eq.s32.totalorder %s12, 0
    %p95 = por %p93, %p94
    %p96 = scmp.ne.s32.totalorder %s88, %s90
    %p97 = scmp.eq.s32.totalorder %s17, 3
    %p98 = por %p96, %p97
    %p99 = scmp.ne.s32.totalorder %s90, %s91
    %p100 = scmp.eq.s32.totalorder %s17, 0
    %p101 = por %p99, %p100
    %p102 = scmp.ne.s32.totalorder %s90, %s91
    %p103 = scmp.eq.s32.totalorder %s18, 3
    %p104 = por %p102, %p103
    %p106 = scmp.ne.s32.totalorder %s91, %s105
    %p107 = scmp.eq.s32.totalorder %s18, 0
    %p108 = por %p106, %p107
    %s110 = sadd.s32 %s109, 1
    %p113 = scmp.eq.s32.totalorder %s12, 3
    %p114 = scmp.ne.s32.totalorder %s109, %s111
    %p115 = scmp.eq.s32.totalorder %s12, 0
    %p116 = por %p114, %p115
    %p117 = scmp.ne.s32.totalorder %s109, %s111
    %p118 = scmp.eq.s32.totalorder %s17, 3
    %p119 = por %p117, %p118
    %p120 = scmp.ne.s32.totalorder %s111, %s112
    %p121 = scmp.eq.s32.totalorder %s17, 0
    %p122 = por %p120, %p121
    %p123 = scmp.ne.s32.totalorder %s111, %s112
    %p124 = scmp.eq.s32.totalorder %s18, 3
    %p125 = por %p123, %p124
    %p127 = scmp.ne.s32.totalorder %s112, %s126
    %p128 = scmp.eq.s32.totalorder %s18, 0
    %p129 = por %p127, %p128
    %s131 = sadd.s32 %s130, 1
    %p134 = scmp.eq.s32.totalorder %s12, 3
    %p135 = scmp.ne.s32.totalorder %s130, %s132
    %p136 = scmp.eq.s32.totalorder %s12, 0
    %p137 = por %p135, %p136
    %p138 = scmp.ne.s32.totalorder %s130, %s132
    %p139 = scmp.eq.s32.totalorder %s17, 3
    %p140 = por %p138, %p139
    %p141 = scmp.ne.s32.totalorder %s132, %s133
    %p142 = scmp.eq.s32.totalorder %s17, 0
    %p143 = por %p141, %p142
    %p144 = scmp.ne.s32.totalorder %s132, %s133
    %p145 = scmp.eq.s32.totalorder %s18, 3
    %p146 = por %p144, %p145
    %p148 = scmp.ne.s32.totalorder %s133, %s147
    %p149 = scmp.eq.s32.totalorder %s18, 0
    %p150 = por %p148, %p149
    %s152 = sadd.s32 %s151, 1
    %p155 = scmp.eq.s32.totalorder %s12, 3
    %p156 = scmp.ne.s32.totalorder %s151, %s153
    %p157 = scmp.eq.s32.totalorder %s12, 0
    %p158 = por %p156, %p157
    %p159 = scmp.ne.s32.totalorder %s151, %s153
    %p160 = scmp.eq.s32.totalorder %s17, 3
    %p161 = por %p159, %p160
    %p162 = scmp.ne.s32.totalorder %s153, %s154
    %p163 = scmp.eq.s32.totalorder %s17, 0
    %p164 = por %p162, %p163
    %p165 = scmp.ne.s32.totalorder %s153, %s154
    %p166 = scmp.eq.s32.totalorder %s18, 3
    %p167 = por %p165, %p166
    %p169 = scmp.ne.s32.totalorder %s154, %s168
    %p170 = scmp.eq.s32.totalorder %s18, 0
    %p171 = por %p169, %p170
    %s172 = ssub.s32 %s19, %s31
    %s173 = ssub.s32 %s20, %s27
    %s174 = sor.u32 %s172, %s173
    %p175 = scmp.eq.s32.totalorder %s174, 0
    %s177 = sadd.s32 %s176, 1
    %s178 = scalar_select %p175, %s176, %s177
    %p181 = pneg %p175
    %p182 = scmp.eq.s32.totalorder %s12, 3
    %p183 = por %p181, %p182
    %p184 = scmp.ne.s32.totalorder %s176, %s179
    %p185 = scmp.eq.s32.totalorder %s12, 0
    %p186 = por %p184, %p185
    %p187 = scmp.ne.s32.totalorder %s176, %s179
    %p188 = scmp.eq.s32.totalorder %s17, 3
    %p189 = por %p187, %p188
    %p190 = scmp.ne.s32.totalorder %s179, %s180
    %p191 = scmp.eq.s32.totalorder %s17, 0
    %p192 = por %p190, %p191
    %p193 = scmp.ne.s32.totalorder %s179, %s180
    %p194 = scmp.eq.s32.totalorder %s18, 3
    %p195 = por %p193, %p194
    %p197 = scmp.ne.s32.totalorder %s180, %s196
    %p198 = scmp.eq.s32.totalorder %s18, 0
    %p199 = por %p197, %p198
    %p200 = scmp.le.s32.totalorder 1, %s12
    %p201 = scmp.lt.s32.totalorder %s12, 5
    %p202 = pnand %p200, %p201
    %p203 = pneg %p202
    // Predicated region
    $region9: #{pointnet_feature_propagation.7} parent=5 // pred_check
      _
    $region10: #{pointnet_feature_propagation.7} parent=5 // pred_check_branch
      %205 = sbr.rel (%p202) target = $region12
    $region11: #{pointnet_feature_propagation.7} parent=5 // pred_region
      %s206 = ssub.s32 %s12, 1
      // Predicated region
      $region13: #{pointnet_feature_propagation.7} parent=11 // pred_check
        %p207 = pneg %p101
      $region14: #{pointnet_feature_propagation.7} parent=11 // pred_check_branch
        %209 = sbr.rel (%p207) target = $region16
      $region15: #{pointnet_feature_propagation.7} parent=11 // pred_region
        _
      $region16: #{pointnet_feature_propagation.7} parent=11 // pred_fallthru
        _
      // Predicated region
      $region17: #{pointnet_feature_propagation.7} parent=11 // pred_check
        %p210 = pneg %p122
      $region18: #{pointnet_feature_propagation.7} parent=11 // pred_check_branch
        %212 = sbr.rel (%p210) target = $region20
      $region19: #{pointnet_feature_propagation.7} parent=11 // pred_region
        _
      $region20: #{pointnet_feature_propagation.7} parent=11 // pred_fallthru
        _
      // Predicated region
      $region21: #{pointnet_feature_propagation.7} parent=11 // pred_check
        %p213 = pneg %p143
      $region22: #{pointnet_feature_propagation.7} parent=11 // pred_check_branch
        %215 = sbr.rel (%p213) target = $region24
      $region23: #{pointnet_feature_propagation.7} parent=11 // pred_region
        _
      $region24: #{pointnet_feature_propagation.7} parent=11 // pred_fallthru
        _
      // Predicated region
      $region25: #{pointnet_feature_propagation.7} parent=11 // pred_check
        %p216 = pneg %p164
      $region26: #{pointnet_feature_propagation.7} parent=11 // pred_check_branch
        %218 = sbr.rel (%p216) target = $region28
      $region27: #{pointnet_feature_propagation.7} parent=11 // pred_region
        _
      $region28: #{pointnet_feature_propagation.7} parent=11 // pred_fallthru
        _
    $region12: #{pointnet_feature_propagation.7} parent=5 // pred_fallthru
      _
    %p219 = scmp.lt.s32.totalorder %s12, 4
    // Predicated region
    $region29: #{pointnet_feature_propagation.7} parent=5 // pred_check
      %p220 = pneg %p219
    $region30: #{pointnet_feature_propagation.7} parent=5 // pred_check_branch
      %222 = sbr.rel (%p220) target = $region32
    $region31: #{pointnet_feature_propagation.7} parent=5 // pred_region
      // Predicated region
      $region33: #{pointnet_feature_propagation.7} parent=31 // pred_check
        %p223 = pneg %p46
      $region34: #{pointnet_feature_propagation.7} parent=31 // pred_check_branch
        %225 = sbr.rel (%p223) target = $region36
      $region35: #{pointnet_feature_propagation.7} parent=31 // pred_region
        %s226 = smul.u32 8, %s20
        %p227 = scmp.lt.s32.totalorder %s19, 1
        %s228 = scalar_select %p227, %s19, 1
        %p229 = scmp.lt.s32.totalorder %s226, 15
        %s230 = scalar_select %p229, %s226, 15
        %s231 = smul.addr %s228, 16
        %s232 = sadd.s32 %s230, %s231
        %s233 = smul.addr %s232, 8
        %s234 = scalar_lea.vmem %s0, %s233
        %s235 = smul.u32 8, %s20
      $region36: #{pointnet_feature_propagation.7} parent=31 // pred_fallthru
        _
      // Predicated region
      $region37: #{pointnet_feature_propagation.7} parent=31 // pred_check
        %p236 = pneg %p74
      $region38: #{pointnet_feature_propagation.7} parent=31 // pred_check_branch
        %238 = sbr.rel (%p236) target = $region40
      $region39: #{pointnet_feature_propagation.7} parent=31 // pred_region
        %s239 = smul.u32 8, %s20
        %p240 = scmp.lt.s32.totalorder %s19, 1
        %s241 = scalar_select %p240, %s19, 1
        %p242 = scmp.lt.s32.totalorder %s239, 15
        %s243 = scalar_select %p242, %s239, 15
        %s244 = smul.addr %s241, 16
        %s245 = sadd.s32 %s243, %s244
        %s246 = smul.addr %s245, 8
        %s247 = scalar_lea.vmem %s1, %s246
        %s248 = smul.u32 8, %s20
      $region40: #{pointnet_feature_propagation.7} parent=31 // pred_fallthru
        _
    $region32: #{pointnet_feature_propagation.7} parent=5 // pred_fallthru
      _
    %p249 = scmp.le.s32.totalorder 1, %s12
    %p250 = scmp.lt.s32.totalorder %s12, 5
    %p251 = pnand %p249, %p250
    %p252 = pneg %p251
    // Predicated region
    $region41: #{pointnet_feature_propagation.7} parent=5 // pred_check
      _
    $region42: #{pointnet_feature_propagation.7} parent=5 // pred_check_branch
      %254 = sbr.rel (%p251) target = $region44
    $region43: #{pointnet_feature_propagation.7} parent=5 // pred_region
      %s255 = ssub.s32 %s12, 1
      %s256 = smul.u32 8, %s22
      %p257 = scmp.lt.s32.totalorder %s21, 1
      %s258 = scalar_select %p257, %s21, 1
      %p259 = scmp.lt.s32.totalorder %s256, 15
      %s260 = scalar_select %p259, %s256, 15
      %s261 = smul.addr %s258, 16
      %s262 = sadd.s32 %s260, %s261
      %s263 = smul.addr %s262, 8
      %s264 = scalar_lea.vmem %s0, %s263
      %p265 = pneg %p52
      %p266 = pneg %p49
      %s267 = smul.u32 8, %s22
      %p268 = scmp.lt.s32.totalorder %s21, 1
      %s269 = scalar_select %p268, %s21, 1
      %p270 = scmp.lt.s32.totalorder %s267, 15
      %s271 = scalar_select %p270, %s267, 15
      %s272 = smul.addr %s269, 16
      %s273 = sadd.s32 %s271, %s272
      %s274 = smul.addr %s273, 8
      %s275 = scalar_lea.vmem %s1, %s274
      %p276 = pneg %p80
      %p277 = pneg %p77
      %p278 = pneg %p101
      %p279 = pneg %p98
      %p280 = pneg %p122
      %p281 = pneg %p119
      %p282 = pneg %p143
      %p283 = pneg %p140
      %p284 = pneg %p164
      %p285 = pneg %p161
      %p286 = pneg %p192
      %p287 = pneg %p189
      %s288 = smul.u32 8, %s22
      %p289 = scmp.lt.s32.totalorder %s21, 1
      %s290 = scalar_select %p289, %s21, 1
      %p291 = scmp.lt.s32.totalorder %s288, 15
      %s292 = scalar_select %p291, %s288, 15
      %s293 = smul.addr %s290, 16
      %s294 = sadd.s32 %s292, %s293
      %s295 = smul.addr %s294, 8
      %s296 = scalar_lea.vmem %s6, %s295
      %s297 = smul.u32 8, %s22
      %p298 = scmp.lt.s32.totalorder %s21, 1
      %s299 = scalar_select %p298, %s21, 1
      %p300 = scmp.lt.s32.totalorder %s297, 15
      %s301 = scalar_select %p300, %s297, 15
      %s302 = smul.addr %s299, 16
      %s303 = sadd.s32 %s301, %s302
      %s304 = smul.addr %s303, 8
      %s305 = scalar_lea.vmem %s0, %s304
      %s306 = smul.u32 8, %s22
      %s307 = smul.u32 8, %s22
      %p308 = scmp.lt.s32.totalorder %s21, 1
      %s309 = scalar_select %p308, %s21, 1
      %p310 = scmp.lt.s32.totalorder %s307, 15
      %s311 = scalar_select %p310, %s307, 15
      %s312 = smul.addr %s309, 16
      %s313 = sadd.s32 %s311, %s312
      %s314 = smul.addr %s313, 8
      %s315 = scalar_lea.vmem %s1, %s314
      %s316 = smul.u32 8, %s22
      %s317 = smul.u32 8, %s22
      %p318 = scmp.lt.s32.totalorder %s21, 1
      %s319 = scalar_select %p318, %s21, 1
      %p320 = scmp.lt.s32.totalorder %s317, 15
      %s321 = scalar_select %p320, %s317, 15
      %s322 = smul.addr %s319, 16
      %s323 = sadd.s32 %s321, %s322
      %s324 = smul.addr %s323, 8
      %s325 = scalar_lea.vmem %s6, %s324
      %s326 = smul.u32 8, %s22
      %v327 = vld [vmem:[%s305] sm:$0xff]
      %v328 = vld [vmem:[%s305 + $0x8] sm:$0xff]
      %v329 = vld [vmem:[%s305 + $0x10] sm:$0xff]
      %v330 = vld [vmem:[%s305 + $0x18] sm:$0xff]
      %v331 = vld [vmem:[%s305 + $0x20] sm:$0xff]
      %v332 = vld [vmem:[%s305 + $0x28] sm:$0xff]
      %v333 = vld [vmem:[%s305 + $0x30] sm:$0xff]
      %v334 = vld [vmem:[%s305 + $0x38] sm:$0xff]
      %v335 = vld [vmem:[%s2] sm:$0x1]
      %v337 = vlaneseq
      %v338 = vshrl.u32 %v337, 7
      %v339 = vsub.s32 0, %v338
      %v340 = vrot.slane %v335, %v339
      %v342 = vmul.f32 %v327, %v340
      %v343 = vmul.f32 %v328, %v340
      %v344 = vmul.f32 %v329, %v340
      %v345 = vmul.f32 %v330, %v340
      %v346 = vmul.f32 %v331, %v340
      %v347 = vmul.f32 %v332, %v340
      %v348 = vmul.f32 %v333, %v340
      %v349 = vmul.f32 %v334, %v340
      %v350 = vld [vmem:[%s3] sm:$0x1]
      %v352 = vlaneseq
      %v353 = vshrl.u32 %v352, 7
      %v354 = vsub.s32 0, %v353
      %v355 = vrot.slane %v350, %v354
      %v357 = vadd.f32 %v342, %v355
      %v358 = vadd.f32 %v343, %v355
      %v359 = vadd.f32 %v344, %v355
      %v360 = vadd.f32 %v345, %v355
      %v361 = vadd.f32 %v346, %v355
      %v362 = vadd.f32 %v347, %v355
      %v363 = vadd.f32 %v348, %v355
      %v364 = vadd.f32 %v349, %v355
      %v365 = vmax.f32 %v357, 0.0
      %v366 = vmax.f32 %v358, 0.0
      %v367 = vmax.f32 %v359, 0.0
      %v368 = vmax.f32 %v360, 0.0
      %v369 = vmax.f32 %v361, 0.0
      %v370 = vmax.f32 %v362, 0.0
      %v371 = vmax.f32 %v363, 0.0
      %v372 = vmax.f32 %v364, 0.0
      %v373 = vld [vmem:[%s315] sm:$0xff]
      %v374 = vld [vmem:[%s315 + $0x8] sm:$0xff]
      %v375 = vld [vmem:[%s315 + $0x10] sm:$0xff]
      %v376 = vld [vmem:[%s315 + $0x18] sm:$0xff]
      %v377 = vld [vmem:[%s315 + $0x20] sm:$0xff]
      %v378 = vld [vmem:[%s315 + $0x28] sm:$0xff]
      %v379 = vld [vmem:[%s315 + $0x30] sm:$0xff]
      %v380 = vld [vmem:[%s315 + $0x38] sm:$0xff]
      %v381 = vld [vmem:[%s4] sm:$0x1]
      %v383 = vlaneseq
      %v384 = vshrl.u32 %v383, 7
      %v385 = vsub.s32 0, %v384
      %v386 = vrot.slane %v381, %v385
      %v388 = vmul.f32 %v373, %v386
      %v389 = vmul.f32 %v374, %v386
      %v390 = vmul.f32 %v375, %v386
      %v391 = vmul.f32 %v376, %v386
      %v392 = vmul.f32 %v377, %v386
      %v393 = vmul.f32 %v378, %v386
      %v394 = vmul.f32 %v379, %v386
      %v395 = vmul.f32 %v380, %v386
      %v396 = vld [vmem:[%s5] sm:$0x1]
      %v398 = vlaneseq
      %v399 = vshrl.u32 %v398, 7
      %v400 = vsub.s32 0, %v399
      %v401 = vrot.slane %v396, %v400
      %v403 = vadd.f32 %v388, %v401
      %v404 = vadd.f32 %v389, %v401
      %v405 = vadd.f32 %v390, %v401
      %v406 = vadd.f32 %v391, %v401
      %v407 = vadd.f32 %v392, %v401
      %v408 = vadd.f32 %v393, %v401
      %v409 = vadd.f32 %v394, %v401
      %v410 = vadd.f32 %v395, %v401
      %v411 = vadd.f32 %v403, %v365
      %v412 = vadd.f32 %v404, %v366
      %v413 = vadd.f32 %v405, %v367
      %v414 = vadd.f32 %v406, %v368
      %v415 = vadd.f32 %v407, %v369
      %v416 = vadd.f32 %v408, %v370
      %v417 = vadd.f32 %v409, %v371
      %v418 = vadd.f32 %v410, %v372
      %v419 = vmax.f32 %v411, 0.0
      %v420 = vmax.f32 %v412, 0.0
      %v421 = vmax.f32 %v413, 0.0
      %v422 = vmax.f32 %v414, 0.0
      %v423 = vmax.f32 %v415, 0.0
      %v424 = vmax.f32 %v416, 0.0
      %v425 = vmax.f32 %v417, 0.0
      %v426 = vmax.f32 %v418, 0.0
      %427 = vst [vmem:[%s325] sm:$0xff] %v419
      %428 = vst [vmem:[%s325 + $0x8] sm:$0xff] %v420
      %429 = vst [vmem:[%s325 + $0x10] sm:$0xff] %v421
      %430 = vst [vmem:[%s325 + $0x18] sm:$0xff] %v422
      %431 = vst [vmem:[%s325 + $0x20] sm:$0xff] %v423
      %432 = vst [vmem:[%s325 + $0x28] sm:$0xff] %v424
      %433 = vst [vmem:[%s325 + $0x30] sm:$0xff] %v425
      %434 = vst [vmem:[%s325 + $0x38] sm:$0xff] %v426
      %s435 = smul.u32 8, %s22
      %p436 = scmp.lt.s32.totalorder %s21, 1
      %s437 = scalar_select %p436, %s21, 1
      %p438 = scmp.lt.s32.totalorder %s435, 15
      %s439 = scalar_select %p438, %s435, 15
      %s440 = smul.addr %s437, 16
      %s441 = sadd.s32 %s439, %s440
      %s442 = smul.addr %s441, 8
      %s443 = scalar_lea.vmem %s6, %s442
      // Predicated region
      $region45: #{pointnet_feature_propagation.7} parent=43 // pred_check
        %p444 = pneg %p189
      $region46: #{pointnet_feature_propagation.7} parent=43 // pred_check_branch
        %446 = sbr.rel (%p444) target = $region48
      $region47: #{pointnet_feature_propagation.7} parent=43 // pred_region
        %s447 = smul.u32 8, %s22
      $region48: #{pointnet_feature_propagation.7} parent=43 // pred_fallthru
        _
    $region44: #{pointnet_feature_propagation.7} parent=5 // pred_fallthru
      _
    %p448 = scmp.le.s32.totalorder 2, %s12
    // Predicated region
    $region49: #{pointnet_feature_propagation.7} parent=5 // pred_check
      %p449 = pneg %p448
    $region50: #{pointnet_feature_propagation.7} parent=5 // pred_check_branch
      %451 = sbr.rel (%p449) target = $region52
    $region51: #{pointnet_feature_propagation.7} parent=5 // pred_region
      %s452 = ssub.s32 %s12, 2
      // Predicated region
      $region53: #{pointnet_feature_propagation.7} parent=51 // pred_check
        %p453 = pneg %p195
      $region54: #{pointnet_feature_propagation.7} parent=51 // pred_check_branch
        %455 = sbr.rel (%p453) target = $region56
      $region55: #{pointnet_feature_propagation.7} parent=51 // pred_region
        %s456 = smul.u32 8, %s24
        %p457 = scmp.lt.s32.totalorder %s23, 1
        %s458 = scalar_select %p457, %s23, 1
        %p459 = scmp.lt.s32.totalorder %s456, 15
        %s460 = scalar_select %p459, %s456, 15
        %s461 = smul.addr %s458, 16
        %s462 = sadd.s32 %s460, %s461
        %s463 = smul.addr %s462, 8
        %s464 = scalar_lea.vmem %s6, %s463
      $region56: #{pointnet_feature_propagation.7} parent=51 // pred_fallthru
        _
    $region52: #{pointnet_feature_propagation.7} parent=5 // pred_fallthru
      _
  $region6: #{pointnet_feature_propagation.7} parent=0 // loop_footer
    %s16 = sadd.s32 1, %s12
  $region7: #{pointnet_feature_propagation.7} parent=0 // loop_footer_branch
    %11 = sbr.rel target = $region3
  $region8: #{pointnet_feature_propagation.7} parent=0 // loop_exit
    _

// kernel: pointnet_feature_propagation.5
$region0: #{pointnet_feature_propagation.5}
  #allocation0 [shape = 'u32[]', space=smem, size = 0x4, offset = 0x4, fixed_abs, tag = 'smem constant byte address 0x4 - core index']
  #allocation1 [shape = 'u32[144,128]{1,0:T(1,128)}', space=vmem, size = 0x12000, scoped, tag = 'internal scratch']
  %s0 = inlined_call_operand.vmem [shape: f32[2,128,128], index: 0, kind: input, shape index: {}]
  %s1 = inlined_call_operand.vmem [shape: f32[1,128], index: 1, kind: input, shape index: {}]
  %s2 = inlined_call_operand.vmem [shape: f32[1,128], index: 2, kind: input, shape index: {}]
  %s3 = inlined_call_operand.vmem [shape: bf16[128,128], index: 3, kind: input, shape index: {}]
  %s4 = inlined_call_operand.vmem [shape: f32[1,128], index: 4, kind: input, shape index: {}]
  %s5 = inlined_call_operand.vmem [shape: f32[2,128,128], index: 5, kind: output, shape index: {0}]
  %s6 = inlined_call_operand.vmem [shape: f32[2,2,8,128], index: 6, kind: output, shape index: {1}]
  %7 = xla_tuple %s5, %s6
  %s8 = sld [smem:[#allocation0]]
  $region61: #{pointnet_feature_propagation.5} parent=0
    _
  %s10 = ssub.s32 1, %s8
  %s11 = scalar_select 0, %s10, %s8
  loop: start=0, step=1, limit=6
  $region2: #{pointnet_feature_propagation.5} parent=0 // loop_pre_header
    _
  $region3: #{pointnet_feature_propagation.5} parent=0 // loop_header
    %s13 = sphi 0, %s17
    %p14 = scmp.ge.s32.totalorder %s13, 6
    %s20 = sphi 0, %s32
    %s21 = sphi 0, %s28
    %s22 = sphi 0, %s20
    %s23 = sphi 0, %s21
    %s24 = sphi 0, %s22
    %s25 = sphi 0, %s23
    %s37 = sphi 0, %s39
    %s40 = sphi 0, %s37
    %s41 = sphi 0, %s40
    %s57 = sphi 0, %s41
    %s61 = sphi 0, %s61
    %s63 = sphi 0, %s61
    %s64 = sphi 0, %s63
    %s78 = sphi 0, %s64
    %s82 = sphi 0, %s82
    %s84 = sphi 0, %s82
    %s85 = sphi 0, %s84
    %s99 = sphi 0, %s85
    %s103 = sphi 0, %s103
    %s105 = sphi 0, %s103
    %s106 = sphi 0, %s105
    %s120 = sphi 0, %s106
    %s124 = sphi 0, %s124
    %s126 = sphi 0, %s124
    %s127 = sphi 0, %s126
    %s141 = sphi 0, %s127
    %s149 = sphi 0, %s151
    %s152 = sphi 0, %s149
    %s153 = sphi 0, %s152
    %s169 = sphi 0, %s153
    %s177 = sphi 0, %s179
    %s180 = sphi 0, %s177
    %s181 = sphi 0, %s180
    %s197 = sphi 0, %s181
  $region4: #{pointnet_feature_propagation.5} parent=0 // loop_header_branch
    %16 = sbr.rel (%p14) target = $region8
  $region5: #{pointnet_feature_propagation.5} parent=0 // loop_body
    %s18 = ssub.s32 %s13, 1
    %s19 = ssub.s32 %s13, 2
    %s26 = sadd.s32 1, %s21
    %p27 = scmp.ge.s32.totalorder %s26, 2
    %s28 = scalar_select %p27, 0, %s26
    %s29 = sadd.s32 1, %s20
    %s30 = scalar_select %p27, %s29, %s20
    %p31 = scmp.ge.s32.totalorder %s30, 2
    %s32 = scalar_select %p31, 0, %s30
    %s33 = ssub.s32 %s20, %s32
    %s34 = ssub.s32 %s21, %s28
    %s35 = sor.u32 %s33, %s34
    %p36 = scmp.eq.s32.totalorder %s35, 0
    %s38 = sadd.s32 %s37, 1
    %s39 = scalar_select %p36, %s37, %s38
    %p42 = pneg %p36
    %p43 = scmp.eq.s32.totalorder %s13, 3
    %p44 = por %p42, %p43
    %p45 = scmp.ne.s32.totalorder %s37, %s40
    %p46 = scmp.eq.s32.totalorder %s13, 0
    %p47 = por %p45, %p46
    %p48 = scmp.ne.s32.totalorder %s37, %s40
    %p49 = scmp.eq.s32.totalorder %s18, 3
    %p50 = por %p48, %p49
    %p51 = scmp.ne.s32.totalorder %s40, %s41
    %p52 = scmp.eq.s32.totalorder %s18, 0
    %p53 = por %p51, %p52
    %p54 = scmp.ne.s32.totalorder %s40, %s41
    %p55 = scmp.eq.s32.totalorder %s19, 3
    %p56 = por %p54, %p55
    %p58 = scmp.ne.s32.totalorder %s41, %s57
    %p59 = scmp.eq.s32.totalorder %s19, 0
    %p60 = por %p58, %p59
    %s62 = sadd.s32 %s61, 1
    %p65 = scmp.eq.s32.totalorder %s13, 3
    %p66 = scmp.ne.s32.totalorder %s61, %s63
    %p67 = scmp.eq.s32.totalorder %s13, 0
    %p68 = por %p66, %p67
    %p69 = scmp.ne.s32.totalorder %s61, %s63
    %p70 = scmp.eq.s32.totalorder %s18, 3
    %p71 = por %p69, %p70
    %p72 = scmp.ne.s32.totalorder %s63, %s64
    %p73 = scmp.eq.s32.totalorder %s18, 0
    %p74 = por %p72, %p73
    %p75 = scmp.ne.s32.totalorder %s63, %s64
    %p76 = scmp.eq.s32.totalorder %s19, 3
    %p77 = por %p75, %p76
    %p79 = scmp.ne.s32.totalorder %s64, %s78
    %p80 = scmp.eq.s32.totalorder %s19, 0
    %p81 = por %p79, %p80
    %s83 = sadd.s32 %s82, 1
    %p86 = scmp.eq.s32.totalorder %s13, 3
    %p87 = scmp.ne.s32.totalorder %s82, %s84
    %p88 = scmp.eq.s32.totalorder %s13, 0
    %p89 = por %p87, %p88
    %p90 = scmp.ne.s32.totalorder %s82, %s84
    %p91 = scmp.eq.s32.totalorder %s18, 3
    %p92 = por %p90, %p91
    %p93 = scmp.ne.s32.totalorder %s84, %s85
    %p94 = scmp.eq.s32.totalorder %s18, 0
    %p95 = por %p93, %p94
    %p96 = scmp.ne.s32.totalorder %s84, %s85
    %p97 = scmp.eq.s32.totalorder %s19, 3
    %p98 = por %p96, %p97
    %p100 = scmp.ne.s32.totalorder %s85, %s99
    %p101 = scmp.eq.s32.totalorder %s19, 0
    %p102 = por %p100, %p101
    %s104 = sadd.s32 %s103, 1
    %p107 = scmp.eq.s32.totalorder %s13, 3
    %p108 = scmp.ne.s32.totalorder %s103, %s105
    %p109 = scmp.eq.s32.totalorder %s13, 0
    %p110 = por %p108, %p109
    %p111 = scmp.ne.s32.totalorder %s103, %s105
    %p112 = scmp.eq.s32.totalorder %s18, 3
    %p113 = por %p111, %p112
    %p114 = scmp.ne.s32.totalorder %s105, %s106
    %p115 = scmp.eq.s32.totalorder %s18, 0
    %p116 = por %p114, %p115
    %p117 = scmp.ne.s32.totalorder %s105, %s106
    %p118 = scmp.eq.s32.totalorder %s19, 3
    %p119 = por %p117, %p118
    %p121 = scmp.ne.s32.totalorder %s106, %s120
    %p122 = scmp.eq.s32.totalorder %s19, 0
    %p123 = por %p121, %p122
    %s125 = sadd.s32 %s124, 1
    %p128 = scmp.eq.s32.totalorder %s13, 3
    %p129 = scmp.ne.s32.totalorder %s124, %s126
    %p130 = scmp.eq.s32.totalorder %s13, 0
    %p131 = por %p129, %p130
    %p132 = scmp.ne.s32.totalorder %s124, %s126
    %p133 = scmp.eq.s32.totalorder %s18, 3
    %p134 = por %p132, %p133
    %p135 = scmp.ne.s32.totalorder %s126, %s127
    %p136 = scmp.eq.s32.totalorder %s18, 0
    %p137 = por %p135, %p136
    %p138 = scmp.ne.s32.totalorder %s126, %s127
    %p139 = scmp.eq.s32.totalorder %s19, 3
    %p140 = por %p138, %p139
    %p142 = scmp.ne.s32.totalorder %s127, %s141
    %p143 = scmp.eq.s32.totalorder %s19, 0
    %p144 = por %p142, %p143
    %s145 = ssub.s32 %s20, %s32
    %s146 = ssub.s32 %s21, %s28
    %s147 = sor.u32 %s145, %s146
    %p148 = scmp.eq.s32.totalorder %s147, 0
    %s150 = sadd.s32 %s149, 1
    %s151 = scalar_select %p148, %s149, %s150
    %p154 = pneg %p148
    %p155 = scmp.eq.s32.totalorder %s13, 3
    %p156 = por %p154, %p155
    %p157 = scmp.ne.s32.totalorder %s149, %s152
    %p158 = scmp.eq.s32.totalorder %s13, 0
    %p159 = por %p157, %p158
    %p160 = scmp.ne.s32.totalorder %s149, %s152
    %p161 = scmp.eq.s32.totalorder %s18, 3
    %p162 = por %p160, %p161
    %p163 = scmp.ne.s32.totalorder %s152, %s153
    %p164 = scmp.eq.s32.totalorder %s18, 0
    %p165 = por %p163, %p164
    %p166 = scmp.ne.s32.totalorder %s152, %s153
    %p167 = scmp.eq.s32.totalorder %s19, 3
    %p168 = por %p166, %p167
    %p170 = scmp.ne.s32.totalorder %s153, %s169
    %p171 = scmp.eq.s32.totalorder %s19, 0
    %p172 = por %p170, %p171
    %s173 = ssub.s32 %s20, %s32
    %s174 = ssub.s32 %s21, %s28
    %s175 = sor.u32 %s173, %s174
    %p176 = scmp.eq.s32.totalorder %s175, 0
    %s178 = sadd.s32 %s177, 1
    %s179 = scalar_select %p176, %s177, %s178
    %p182 = pneg %p176
    %p183 = scmp.eq.s32.totalorder %s13, 3
    %p184 = por %p182, %p183
    %p185 = scmp.ne.s32.totalorder %s177, %s180
    %p186 = scmp.eq.s32.totalorder %s13, 0
    %p187 = por %p185, %p186
    %p188 = scmp.ne.s32.totalorder %s177, %s180
    %p189 = scmp.eq.s32.totalorder %s18, 3
    %p190 = por %p188, %p189
    %p191 = scmp.ne.s32.totalorder %s180, %s181
    %p192 = scmp.eq.s32.totalorder %s18, 0
    %p193 = por %p191, %p192
    %p194 = scmp.ne.s32.totalorder %s180, %s181
    %p195 = scmp.eq.s32.totalorder %s19, 3
    %p196 = por %p194, %p195
    %p198 = scmp.ne.s32.totalorder %s181, %s197
    %p199 = scmp.eq.s32.totalorder %s19, 0
    %p200 = por %p198, %p199
    %p201 = scmp.le.s32.totalorder 1, %s13
    %p202 = scmp.lt.s32.totalorder %s13, 5
    %p203 = pnand %p201, %p202
    %p204 = pneg %p203
    // Predicated region
    $region9: #{pointnet_feature_propagation.5} parent=5 // pred_check
      _
    $region10: #{pointnet_feature_propagation.5} parent=5 // pred_check_branch
      %206 = sbr.rel (%p203) target = $region12
    $region11: #{pointnet_feature_propagation.5} parent=5 // pred_region
      %s207 = ssub.s32 %s13, 1
      // Predicated region
      $region13: #{pointnet_feature_propagation.5} parent=11 // pred_check
        %p208 = pneg %p74
      $region14: #{pointnet_feature_propagation.5} parent=11 // pred_check_branch
        %210 = sbr.rel (%p208) target = $region16
      $region15: #{pointnet_feature_propagation.5} parent=11 // pred_region
        _
      $region16: #{pointnet_feature_propagation.5} parent=11 // pred_fallthru
        _
      // Predicated region
      $region17: #{pointnet_feature_propagation.5} parent=11 // pred_check
        %p211 = pneg %p95
      $region18: #{pointnet_feature_propagation.5} parent=11 // pred_check_branch
        %213 = sbr.rel (%p211) target = $region20
      $region19: #{pointnet_feature_propagation.5} parent=11 // pred_region
        _
      $region20: #{pointnet_feature_propagation.5} parent=11 // pred_fallthru
        _
      // Predicated region
      $region21: #{pointnet_feature_propagation.5} parent=11 // pred_check
        %p214 = pneg %p116
      $region22: #{pointnet_feature_propagation.5} parent=11 // pred_check_branch
        %216 = sbr.rel (%p214) target = $region24
      $region23: #{pointnet_feature_propagation.5} parent=11 // pred_region
        _
      $region24: #{pointnet_feature_propagation.5} parent=11 // pred_fallthru
        _
      // Predicated region
      $region25: #{pointnet_feature_propagation.5} parent=11 // pred_check
        %p217 = pneg %p137
      $region26: #{pointnet_feature_propagation.5} parent=11 // pred_check_branch
        %219 = sbr.rel (%p217) target = $region28
      $region27: #{pointnet_feature_propagation.5} parent=11 // pred_region
        _
      $region28: #{pointnet_feature_propagation.5} parent=11 // pred_fallthru
        _
    $region12: #{pointnet_feature_propagation.5} parent=5 // pred_fallthru
      _
    %p220 = scmp.lt.s32.totalorder %s13, 4
    // Predicated region
    $region29: #{pointnet_feature_propagation.5} parent=5 // pred_check
      %p221 = pneg %p220
    $region30: #{pointnet_feature_propagation.5} parent=5 // pred_check_branch
      %223 = sbr.rel (%p221) target = $region32
    $region31: #{pointnet_feature_propagation.5} parent=5 // pred_region
      // Predicated region
      $region33: #{pointnet_feature_propagation.5} parent=31 // pred_check
        %p224 = pneg %p47
      $region34: #{pointnet_feature_propagation.5} parent=31 // pred_check_branch
        %226 = sbr.rel (%p224) target = $region36
      $region35: #{pointnet_feature_propagation.5} parent=31 // pred_region
        %s227 = smul.u32 8, %s21
        %p228 = scmp.lt.s32.totalorder %s20, 1
        %s229 = scalar_select %p228, %s20, 1
        %p230 = scmp.lt.s32.totalorder %s227, 15
        %s231 = scalar_select %p230, %s227, 15
        %s232 = smul.addr %s229, 16
        %s233 = sadd.s32 %s231, %s232
        %s234 = smul.addr %s233, 8
        %s235 = scalar_lea.vmem %s0, %s234
        %s236 = smul.u32 8, %s21
      $region36: #{pointnet_feature_propagation.5} parent=31 // pred_fallthru
        _
    $region32: #{pointnet_feature_propagation.5} parent=5 // pred_fallthru
      _
    %p237 = scmp.le.s32.totalorder 1, %s13
    %p238 = scmp.lt.s32.totalorder %s13, 5
    %p239 = pnand %p237, %p238
    %p240 = pneg %p239
    // Predicated region
    $region37: #{pointnet_feature_propagation.5} parent=5 // pred_check
      _
    $region38: #{pointnet_feature_propagation.5} parent=5 // pred_check_branch
      %242 = sbr.rel (%p239) target = $region40
    $region39: #{pointnet_feature_propagation.5} parent=5 // pred_region
      %s243 = ssub.s32 %s13, 1
      %s244 = smul.u32 8, %s23
      %p245 = scmp.lt.s32.totalorder %s22, 1
      %s246 = scalar_select %p245, %s22, 1
      %p247 = scmp.lt.s32.totalorder %s244, 15
      %s248 = scalar_select %p247, %s244, 15
      %s249 = smul.addr %s246, 16
      %s250 = sadd.s32 %s248, %s249
      %s251 = smul.addr %s250, 8
      %s252 = scalar_lea.vmem %s0, %s251
      %p253 = pneg %p53
      %p254 = pneg %p50
      %p255 = pneg %p74
      %p256 = pneg %p71
      %p257 = pneg %p95
      %p258 = pneg %p92
      %p259 = pneg %p116
      %p260 = pneg %p113
      %p261 = pneg %p137
      %p262 = pneg %p134
      %p263 = pneg %p165
      %p264 = pneg %p162
      %s265 = smul.u32 8, %s23
      %p266 = scmp.lt.s32.totalorder %s22, 1
      %s267 = scalar_select %p266, %s22, 1
      %p268 = scmp.lt.s32.totalorder %s265, 15
      %s269 = scalar_select %p268, %s265, 15
      %s270 = smul.addr %s267, 16
      %s271 = sadd.s32 %s269, %s270
      %s272 = smul.addr %s271, 8
      %s273 = scalar_lea.vmem %s5, %s272
      %p274 = pneg %p193
      %p275 = pneg %p190
      %p276 = scmp.lt.s32.totalorder %s22, 1
      %s277 = scalar_select %p276, %s22, 1
      %p278 = scmp.lt.s32.totalorder %s23, 1
      %s279 = scalar_select %p278, %s23, 1
      %s280 = smul.addr %s277, 2
      %s281 = sadd.s32 %s279, %s280
      %s282 = smul.addr %s281, 8
      %s283 = scalar_lea.vmem %s6, %s282
      %s284 = smul.u32 8, %s23
      %p285 = scmp.lt.s32.totalorder %s22, 1
      %s286 = scalar_select %p285, %s22, 1
      %p287 = scmp.lt.s32.totalorder %s284, 15
      %s288 = scalar_select %p287, %s284, 15
      %s289 = smul.addr %s286, 16
      %s290 = sadd.s32 %s288, %s289
      %s291 = smul.addr %s290, 8
      %s292 = scalar_lea.vmem %s0, %s291
      %s293 = smul.u32 8, %s23
      %s294 = smul.u32 8, %s23
      %p295 = scmp.lt.s32.totalorder %s22, 1
      %s296 = scalar_select %p295, %s22, 1
      %p297 = scmp.lt.s32.totalorder %s294, 15
      %s298 = scalar_select %p297, %s294, 15
      %s299 = smul.addr %s296, 16
      %s300 = sadd.s32 %s298, %s299
      %s301 = smul.addr %s300, 8
      %s302 = scalar_lea.vmem %s5, %s301
      %s303 = smul.u32 8, %s23
      %p304 = scmp.lt.s32.totalorder %s22, 1
      %s305 = scalar_select %p304, %s22, 1
      %p306 = scmp.lt.s32.totalorder %s23, 1
      %s307 = scalar_select %p306, %s23, 1
      %s308 = smul.addr %s305, 2
      %s309 = sadd.s32 %s307, %s308
      %s310 = smul.addr %s309, 8
      %s311 = scalar_lea.vmem %s6, %s310
      %v313 = vld [vmem:[%s292] sm:$0xff]
      %v314 = vld [vmem:[%s292 + $0x8] sm:$0xff]
      %v315 = vld [vmem:[%s292 + $0x10] sm:$0xff]
      %v316 = vld [vmem:[%s292 + $0x18] sm:$0xff]
      %v317 = vld [vmem:[%s292 + $0x20] sm:$0xff]
      %v318 = vld [vmem:[%s292 + $0x28] sm:$0xff]
      %v319 = vld [vmem:[%s292 + $0x30] sm:$0xff]
      %v320 = vld [vmem:[%s292 + $0x38] sm:$0xff]
      %v321 = vld [vmem:[%s1] sm:$0x1]
      %v323 = vlaneseq
      %v324 = vshrl.u32 %v323, 7
      %v325 = vsub.s32 0, %v324
      %v326 = vrot.slane %v321, %v325
      %v328 = vmul.f32 %v313, %v326
      %v329 = vmul.f32 %v314, %v326
      %v330 = vmul.f32 %v315, %v326
      %v331 = vmul.f32 %v316, %v326
      %v332 = vmul.f32 %v317, %v326
      %v333 = vmul.f32 %v318, %v326
      %v334 = vmul.f32 %v319, %v326
      %v335 = vmul.f32 %v320, %v326
      %v336 = vld [vmem:[%s2] sm:$0x1]
      %v338 = vlaneseq
      %v339 = vshrl.u32 %v338, 7
      %v340 = vsub.s32 0, %v339
      %v341 = vrot.slane %v336, %v340
      %v343 = vadd.f32 %v328, %v341
      %v344 = vadd.f32 %v329, %v341
      %v345 = vadd.f32 %v330, %v341
      %v346 = vadd.f32 %v331, %v341
      %v347 = vadd.f32 %v332, %v341
      %v348 = vadd.f32 %v333, %v341
      %v349 = vadd.f32 %v334, %v341
      %v350 = vadd.f32 %v335, %v341
      %v351 = vmax.f32 %v343, 0.0
      %v352 = vmax.f32 %v344, 0.0
      %v353 = vmax.f32 %v345, 0.0
      %v354 = vmax.f32 %v346, 0.0
      %v355 = vmax.f32 %v347, 0.0
      %v356 = vmax.f32 %v348, 0.0
      %v357 = vmax.f32 %v349, 0.0
      %v358 = vmax.f32 %v350, 0.0
      %v359 = vpack.c.bf16 %v352, %v351
      %v360 = vpack.c.bf16 %v354, %v353
      %v361 = vpack.c.bf16 %v356, %v355
      %v362 = vpack.c.bf16 %v358, %v357
      %v363 = vld [vmem:[%s3] sm:$0xf]
      %v364 = vld [vmem:[%s3 + $0x4] sm:$0xf]
      %v365 = vld [vmem:[%s3 + $0x8] sm:$0xf]
      %v366 = vld [vmem:[%s3 + $0xc] sm:$0xf]
      %v367 = vld [vmem:[%s3 + $0x10] sm:$0xf]
      %v368 = vld [vmem:[%s3 + $0x14] sm:$0xf]
      %v369 = vld [vmem:[%s3 + $0x18] sm:$0xf]
      %v370 = vld [vmem:[%s3 + $0x1c] sm:$0xf]
      %v371 = vld [vmem:[%s3 + $0x20] sm:$0xf]
      %v372 = vld [vmem:[%s3 + $0x24] sm:$0xf]
      %v373 = vld [vmem:[%s3 + $0x28] sm:$0xf]
      %v374 = vld [vmem:[%s3 + $0x2c] sm:$0xf]
      %v375 = vld [vmem:[%s3 + $0x30] sm:$0xf]
      %v376 = vld [vmem:[%s3 + $0x34] sm:$0xf]
      %v377 = vld [vmem:[%s3 + $0x38] sm:$0xf]
      %v378 = vld [vmem:[%s3 + $0x3c] sm:$0xf]
      %v379 = vld [vmem:[%s4] sm:$0x1]
      %v381 = vlaneseq
      %v382 = vshrl.u32 %v381, 7
      %v383 = vsub.s32 0, %v382
      %v384 = vrot.slane %v379, %v383
      %v402 = vunpack.c.l.b16 %v363
      %v403 = vunpack.c.l.b16 %v364
      %v404 = vunpack.c.l.b16 %v365
      %v405 = vunpack.c.l.b16 %v366
      %v406 = vunpack.c.l.b16 %v367
      %v407 = vunpack.c.l.b16 %v368
      %v408 = vunpack.c.l.b16 %v369
      %v409 = vunpack.c.l.b16 %v370
      %v410 = vunpack.c.l.b16 %v371
      %v411 = vunpack.c.l.b16 %v372
      %v412 = vunpack.c.l.b16 %v373
      %v413 = vunpack.c.l.b16 %v374
      %v414 = vunpack.c.l.b16 %v375
      %v415 = vunpack.c.l.b16 %v376
      %v416 = vunpack.c.l.b16 %v377
      %v417 = vunpack.c.l.b16 %v378
      %v418 = vpack.c.b16 %v403, %v402
      %v419 = vpack.c.b16 %v405, %v404
      %v420 = vpack.c.b16 %v407, %v406
      %v421 = vpack.c.b16 %v409, %v408
      %v422 = vpack.c.b16 %v411, %v410
      %v423 = vpack.c.b16 %v413, %v412
      %v424 = vpack.c.b16 %v415, %v414
      %v425 = vpack.c.b16 %v417, %v416
      %434 = vmatprep.subr.bf16.mxu0 0
      %435 = vmatpush1.bf16.msra.mxu0 %v418
      %436 = vmatprep.subr.bf16.mxu0 0
      %437 = vmatpush1.bf16.msra.mxu0 %v419
      %438 = vmatprep.subr.bf16.mxu0 0
      %439 = vmatpush1.bf16.msra.mxu0 %v420
      %440 = vmatprep.subr.bf16.mxu0 0
      %441 = vmatpush1.bf16.msra.mxu0 %v421
      %442 = vmatprep.subr.bf16.mxu0 0
      %443 = vmatpush1.bf16.msra.mxu0 %v422
      %444 = vmatprep.subr.bf16.mxu0 0
      %445 = vmatpush1.bf16.msra.mxu0 %v423
      %446 = vmatprep.subr.bf16.mxu0 0
      %447 = vmatpush1.bf16.msra.mxu0 %v424
      %448 = vmatprep.subr.bf16.mxu0 0
      %449 = vmatpush1.bf16.msra.mxu0 %v425
      %450 = vmatprep.subr.bf16.mxu0 0
      %451 = vmatpush1.bf16.msra.mxu0 0
      %452 = vmatprep.subr.bf16.mxu0 0
      %453 = vmatpush1.bf16.msra.mxu0 0
      %454 = vmatprep.subr.bf16.mxu0 0
      %455 = vmatpush1.bf16.msra.mxu0 0
      %456 = vmatprep.subr.bf16.mxu0 0
      %457 = vmatpush1.bf16.msra.mxu0 0
      %458 = vmatprep.subr.bf16.mxu0 0
      %459 = vmatpush1.bf16.msra.mxu0 0
      %460 = vmatprep.subr.bf16.mxu0 0
      %461 = vmatpush1.bf16.msra.mxu0 0
      %462 = vmatprep.subr.bf16.mxu0 0
      %463 = vmatpush1.bf16.msra.mxu0 0
      %464 = vmatprep.subr.bf16.mxu0 0
      %465 = vmatpush1.bf16.msra.mxu0 0
      %466 = vmatprep.mubr.bf16.mxu0 0
      %467 = vmatmul.mubr.bf16.gmra.mrb[0].mxu0 %v359
      %v468 = vpop.f32.mrb[0].mxu0
      %v469 = vadd.f32 %v384, %v468
      %v470 = vpop.f32.mrb[0].mxu0
      %v471 = vpop.f32.mrb[0].mxu0
      %v472 = vadd.f32 %v384, %v471
      %v473 = vpop.f32.mrb[0].mxu0
      %474 = vmatprep.mubr.bf16.mxu0 0
      %475 = vmatmul.mubr.bf16.gmra.mrb[0].mxu0 %v360
      %v476 = vpop.f32.mrb[0].mxu0
      %v477 = vadd.f32 %v384, %v476
      %v478 = vpop.f32.mrb[0].mxu0
      %v479 = vpop.f32.mrb[0].mxu0
      %v480 = vadd.f32 %v384, %v479
      %v481 = vpop.f32.mrb[0].mxu0
      %482 = vmatprep.mubr.bf16.mxu0 0
      %483 = vmatmul.mubr.bf16.gmra.mrb[0].mxu0 %v361
      %v484 = vpop.f32.mrb[0].mxu0
      %v485 = vadd.f32 %v384, %v484
      %v486 = vpop.f32.mrb[0].mxu0
      %v487 = vpop.f32.mrb[0].mxu0
      %v488 = vadd.f32 %v384, %v487
      %v489 = vpop.f32.mrb[0].mxu0
      %490 = vmatprep.mubr.bf16.mxu0 0
      %491 = vmatmul.mubr.bf16.gmra.mrb[0].mxu0 %v362
      %v492 = vpop.f32.mrb[0].mxu0
      %v493 = vadd.f32 %v384, %v492
      %v494 = vpop.f32.mrb[0].mxu0
      %v495 = vpop.f32.mrb[0].mxu0
      %v496 = vadd.f32 %v384, %v495
      %v497 = vpop.f32.mrb[0].mxu0
      %498 = vdwg.mxu0
      %499 = vst [vmem:[%s302] sm:$0xff] %v469
      %500 = vst [vmem:[%s302 + $0x8] sm:$0xff] %v472
      %501 = vst [vmem:[%s302 + $0x10] sm:$0xff] %v477
      %502 = vst [vmem:[%s302 + $0x18] sm:$0xff] %v480
      %503 = vst [vmem:[%s302 + $0x20] sm:$0xff] %v485
      %504 = vst [vmem:[%s302 + $0x28] sm:$0xff] %v488
      %505 = vst [vmem:[%s302 + $0x30] sm:$0xff] %v493
      %506 = vst [vmem:[%s302 + $0x38] sm:$0xff] %v496
      %v507 = vadd.f32 %v469, %v472
      %v508 = vadd.f32 %v507, %v477
      %v509 = vadd.f32 %v508, %v480
      %v510 = vadd.f32 %v509, %v485
      %v511 = vadd.f32 %v510, %v488
      %v512 = vadd.f32 %v511, %v493
      %v513 = vadd.f32 %v512, %v496
      %v514 = vrot.slane %v513, 4
      %v515 = vadd.f32 %v513, %v514
      %v516 = vrot.slane %v515, 2
      %v517 = vadd.f32 %v515, %v516
      %v518 = vrot.slane %v517, 1
      %v519 = vadd.f32 %v517, %v518
      %v520 = vmul.f32 %v469, %v469
      %v521 = vmul.f32 %v472, %v472
      %v522 = vmul.f32 %v477, %v477
      %v523 = vmul.f32 %v480, %v480
      %v524 = vmul.f32 %v485, %v485
      %v525 = vmul.f32 %v488, %v488
      %v526 = vmul.f32 %v493, %v493
      %v527 = vmul.f32 %v496, %v496
      %v528 = vadd.f32 %v520, %v521
      %v529 = vadd.f32 %v528, %v522
      %v530 = vadd.f32 %v529, %v523
      %v531 = vadd.f32 %v530, %v524
      %v532 = vadd.f32 %v531, %v525
      %v533 = vadd.f32 %v532, %v526
      %v534 = vadd.f32 %v533, %v527
      %v535 = vrot.slane %v534, 4
      %v536 = vadd.f32 %v534, %v535
      %v537 = vrot.slane %v536, 2
      %v538 = vadd.f32 %v536, %v537
      %v539 = vrot.slane %v538, 1
      %v540 = vadd.f32 %v538, %v539
      %vm541 = vcmask 1040384
      %v542 = vsel %vm541, %v519, %v540
      %vm543 = vcmask 1041408
      %v544 = vsel %vm543, %v542, 0.0
      %545 = vst [vmem:[%s311] sm:$0xff] %v544
      %s546 = smul.u32 8, %s23
      %p547 = scmp.lt.s32.totalorder %s22, 1
      %s548 = scalar_select %p547, %s22, 1
      %p549 = scmp.lt.s32.totalorder %s546, 15
      %s550 = scalar_select %p549, %s546, 15
      %s551 = smul.addr %s548, 16
      %s552 = sadd.s32 %s550, %s551
      %s553 = smul.addr %s552, 8
      %s554 = scalar_lea.vmem %s5, %s553
      %p555 = scmp.lt.s32.totalorder %s22, 1
      %s556 = scalar_select %p555, %s22, 1
      %p557 = scmp.lt.s32.totalorder %s23, 1
      %s558 = scalar_select %p557, %s23, 1
      %s559 = smul.addr %s556, 2
      %s560 = sadd.s32 %s558, %s559
      %s561 = smul.addr %s560, 8
      %s562 = scalar_lea.vmem %s6, %s561
      // Predicated region
      $region41: #{pointnet_feature_propagation.5} parent=39 // pred_check
        %p563 = pneg %p162
      $region42: #{pointnet_feature_propagation.5} parent=39 // pred_check_branch
        %565 = sbr.rel (%p563) target = $region44
      $region43: #{pointnet_feature_propagation.5} parent=39 // pred_region
        %s566 = smul.u32 8, %s23
      $region44: #{pointnet_feature_propagation.5} parent=39 // pred_fallthru
        _
      // Predicated region
      $region45: #{pointnet_feature_propagation.5} parent=39 // pred_check
        %p567 = pneg %p190
      $region46: #{pointnet_feature_propagation.5} parent=39 // pred_check_branch
        %569 = sbr.rel (%p567) target = $region48
      $region47: #{pointnet_feature_propagation.5} parent=39 // pred_region
        _
      $region48: #{pointnet_feature_propagation.5} parent=39 // pred_fallthru
        _
    $region40: #{pointnet_feature_propagation.5} parent=5 // pred_fallthru
      _
    %p570 = scmp.le.s32.totalorder 2, %s13
    // Predicated region
    $region49: #{pointnet_feature_propagation.5} parent=5 // pred_check
      %p571 = pneg %p570
    $region50: #{pointnet_feature_propagation.5} parent=5 // pred_check_branch
      %573 = sbr.rel (%p571) target = $region52
    $region51: #{pointnet_feature_propagation.5} parent=5 // pred_region
      %s574 = ssub.s32 %s13, 2
      // Predicated region
      $region53: #{pointnet_feature_propagation.5} parent=51 // pred_check
        %p575 = pneg %p168
      $region54: #{pointnet_feature_propagation.5} parent=51 // pred_check_branch
        %577 = sbr.rel (%p575) target = $region56
      $region55: #{pointnet_feature_propagation.5} parent=51 // pred_region
        %s578 = smul.u32 8, %s25
        %p579 = scmp.lt.s32.totalorder %s24, 1
        %s580 = scalar_select %p579, %s24, 1
        %p581 = scmp.lt.s32.totalorder %s578, 15
        %s582 = scalar_select %p581, %s578, 15
        %s583 = smul.addr %s580, 16
        %s584 = sadd.s32 %s582, %s583
        %s585 = smul.addr %s584, 8
        %s586 = scalar_lea.vmem %s5, %s585
      $region56: #{pointnet_feature_propagation.5} parent=51 // pred_fallthru
        _
      // Predicated region
      $region57: #{pointnet_feature_propagation.5} parent=51 // pred_check
        %p587 = pneg %p196
      $region58: #{pointnet_feature_propagation.5} parent=51 // pred_check_branch
        %589 = sbr.rel (%p587) target = $region60
      $region59: #{pointnet_feature_propagation.5} parent=51 // pred_region
        %p590 = scmp.lt.s32.totalorder %s24, 1
        %s591 = scalar_select %p590, %s24, 1
        %p592 = scmp.lt.s32.totalorder %s25, 1
        %s593 = scalar_select %p592, %s25, 1
        %s594 = smul.addr %s591, 2
        %s595 = sadd.s32 %s593, %s594
        %s596 = smul.addr %s595, 8
        %s597 = scalar_lea.vmem %s6, %s596
      $region60: #{pointnet_feature_propagation.5} parent=51 // pred_fallthru
        _
    $region52: #{pointnet_feature_propagation.5} parent=5 // pred_fallthru
      _
  $region6: #{pointnet_feature_propagation.5} parent=0 // loop_footer
    %s17 = sadd.s32 1, %s13
  $region7: #{pointnet_feature_propagation.5} parent=0 // loop_footer_branch
    %12 = sbr.rel target = $region3
  $region8: #{pointnet_feature_propagation.5} parent=0 // loop_exit
    _

// kernel: pointnet_feature_propagation.4
$region0: #{pointnet_feature_propagation.4}
  #allocation0 [shape = 'u32[]', space=smem, size = 0x4, offset = 0x4, fixed_abs, tag = 'smem constant byte address 0x4 - core index']
  #allocation1 [shape = 'u32[144,128]{1,0:T(1,128)}', space=vmem, size = 0x12000, scoped, tag = 'internal scratch']
  %s0 = inlined_call_operand.vmem [shape: f32[2,128,3], index: 0, kind: input, shape index: {}]
  %s1 = inlined_call_operand.vmem [shape: f32[2,3,32], index: 1, kind: input, shape index: {}]
  %s2 = inlined_call_operand.vmem [shape: bf16[2,128,128], index: 2, kind: input, shape index: {}]
  %s3 = inlined_call_operand.vmem [shape: bf16[2,32,128], index: 3, kind: input, shape index: {}]
  %s4 = inlined_call_operand.vmem [shape: bf16[128,128], index: 4, kind: input, shape index: {}]
  %s5 = inlined_call_operand.vmem [shape: bf16[128,128], index: 5, kind: input, shape index: {}]
  %s6 = inlined_call_operand.vmem [shape: f32[1,128], index: 6, kind: input, shape index: {}]
  %s7 = inlined_call_operand.vmem [shape: f32[2,128,128], index: 7, kind: output, shape index: {0}]
  %s8 = inlined_call_operand.vmem [shape: f32[2,2,8,128], index: 8, kind: output, shape index: {1}]
  %9 = xla_tuple %s7, %s8
  %s10 = sld [smem:[#allocation0]]
  $region69: #{pointnet_feature_propagation.4} parent=0
    _
  %s12 = ssub.s32 1, %s10
  %s13 = scalar_select 0, %s12, %s10
  loop: start=0, step=1, limit=6
  $region2: #{pointnet_feature_propagation.4} parent=0 // loop_pre_header
    _
  $region3: #{pointnet_feature_propagation.4} parent=0 // loop_header
    %s15 = sphi 0, %s19
    %p16 = scmp.ge.s32.totalorder %s15, 6
    %s22 = sphi 0, %s34
    %s23 = sphi 0, %s30
    %s24 = sphi 0, %s22
    %s25 = sphi 0, %s23
    %s26 = sphi 0, %s24
    %s27 = sphi 0, %s25
    %s39 = sphi 0, %s41
    %s42 = sphi 0, %s39
    %s43 = sphi 0, %s42
    %s59 = sphi 0, %s43
    %s65 = sphi 0, %s67
    %s68 = sphi 0, %s65
    %s69 = sphi 0, %s68
    %s85 = sphi 0, %s69
    %s93 = sphi 0, %s95
    %s96 = sphi 0, %s93
    %s97 = sphi 0, %s96
    %s113 = sphi 0, %s97
    %s119 = sphi 0, %s121
    %s122 = sphi 0, %s119
    %s123 = sphi 0, %s122
    %s139 = sphi 0, %s123
    %s143 = sphi 0, %s143
    %s145 = sphi 0, %s143
    %s146 = sphi 0, %s145
    %s160 = sphi 0, %s146
    %s164 = sphi 0, %s164
    %s166 = sphi 0, %s164
    %s167 = sphi 0, %s166
    %s181 = sphi 0, %s167
    %s185 = sphi 0, %s185
    %s187 = sphi 0, %s185
    %s188 = sphi 0, %s187
    %s202 = sphi 0, %s188
    %s210 = sphi 0, %s212
    %s213 = sphi 0, %s210
    %s214 = sphi 0, %s213
    %s230 = sphi 0, %s214
    %s238 = sphi 0, %s240
    %s241 = sphi 0, %s238
    %s242 = sphi 0, %s241
    %s258 = sphi 0, %s242
  $region4: #{pointnet_feature_propagation.4} parent=0 // loop_header_branch
    %18 = sbr.rel (%p16) target = $region8
  $region5: #{pointnet_feature_propagation.4} parent=0 // loop_body
    %s20 = ssub.s32 %s15, 1
    %s21 = ssub.s32 %s15, 2
    %s28 = sadd.s32 1, %s23
    %p29 = scmp.ge.s32.totalorder %s28, 2
    %s30 = scalar_select %p29, 0, %s28
    %s31 = sadd.s32 1, %s22
    %s32 = scalar_select %p29, %s31, %s22
    %p33 = scmp.ge.s32.totalorder %s32, 2
    %s34 = scalar_select %p33, 0, %s32
    %s35 = ssub.s32 %s22, %s34
    %s36 = ssub.s32 %s23, %s30
    %s37 = sor.u32 %s35, %s36
    %p38 = scmp.eq.s32.totalorder %s37, 0
    %s40 = sadd.s32 %s39, 1
    %s41 = scalar_select %p38, %s39, %s40
    %p44 = pneg %p38
    %p45 = scmp.eq.s32.totalorder %s15, 3
    %p46 = por %p44, %p45
    %p47 = scmp.ne.s32.totalorder %s39, %s42
    %p48 = scmp.eq.s32.totalorder %s15, 0
    %p49 = por %p47, %p48
    %p50 = scmp.ne.s32.totalorder %s39, %s42
    %p51 = scmp.eq.s32.totalorder %s20, 3
    %p52 = por %p50, %p51
    %p53 = scmp.ne.s32.totalorder %s42, %s43
    %p54 = scmp.eq.s32.totalorder %s20, 0
    %p55 = por %p53, %p54
    %p56 = scmp.ne.s32.totalorder %s42, %s43
    %p57 = scmp.eq.s32.totalorder %s21, 3
    %p58 = por %p56, %p57
    %p60 = scmp.ne.s32.totalorder %s43, %s59
    %p61 = scmp.eq.s32.totalorder %s21, 0
    %p62 = por %p60, %p61
    %s63 = ssub.s32 %s22, %s34
    %p64 = scmp.eq.s32.totalorder %s63, 0
    %s66 = sadd.s32 %s65, 1
    %s67 = scalar_select %p64, %s65, %s66
    %p70 = pneg %p64
    %p71 = scmp.eq.s32.totalorder %s15, 3
    %p72 = por %p70, %p71
    %p73 = scmp.ne.s32.totalorder %s65, %s68
    %p74 = scmp.eq.s32.totalorder %s15, 0
    %p75 = por %p73, %p74
    %p76 = scmp.ne.s32.totalorder %s65, %s68
    %p77 = scmp.eq.s32.totalorder %s20, 3
    %p78 = por %p76, %p77
    %p79 = scmp.ne.s32.totalorder %s68, %s69
    %p80 = scmp.eq.s32.totalorder %s20, 0
    %p81 = por %p79, %p80
    %p82 = scmp.ne.s32.totalorder %s68, %s69
    %p83 = scmp.eq.s32.totalorder %s21, 3
    %p84 = por %p82, %p83
    %p86 = scmp.ne.s32.totalorder %s69, %s85
    %p87 = scmp.eq.s32.totalorder %s21, 0
    %p88 = por %p86, %p87
    %s89 = ssub.s32 %s22, %s34
    %s90 = ssub.s32 %s23, %s30
    %s91 = sor.u32 %s89, %s90
    %p92 = scmp.eq.s32.totalorder %s91, 0
    %s94 = sadd.s32 %s93, 1
    %s95 = scalar_select %p92, %s93, %s94
    %p98 = pneg %p92
    %p99 = scmp.eq.s32.totalorder %s15, 3
    %p100 = por %p98, %p99
    %p101 = scmp.ne.s32.totalorder %s93, %s96
    %p102 = scmp.eq.s32.totalorder %s15, 0
    %p103 = por %p101, %p102
    %p104 = scmp.ne.s32.totalorder %s93, %s96
    %p105 = scmp.eq.s32.totalorder %s20, 3
    %p106 = por %p104, %p105
    %p107 = scmp.ne.s32.totalorder %s96, %s97
    %p108 = scmp.eq.s32.totalorder %s20, 0
    %p109 = por %p107, %p108
    %p110 = scmp.ne.s32.totalorder %s96, %s97
    %p111 = scmp.eq.s32.totalorder %s21, 3
    %p112 = por %p110, %p111
    %p114 = scmp.ne.s32.totalorder %s97, %s113
    %p115 = scmp.eq.s32.totalorder %s21, 0
    %p116 = por %p114, %p115
    %s117 = ssub.s32 %s22, %s34
    %p118 = scmp.eq.s32.totalorder %s117, 0
    %s120 = sadd.s32 %s119, 1
    %s121 = scalar_select %p118, %s119, %s120
    %p124 = pneg %p118
    %p125 = scmp.eq.s32.totalorder %s15, 3
    %p126 = por %p124, %p125
    %p127 = scmp.ne.s32.totalorder %s119, %s122
    %p128 = scmp.eq.s32.totalorder %s15, 0
    %p129 = por %p127, %p128
    %p130 = scmp.ne.s32.totalorder %s119, %s122
    %p131 = scmp.eq.s32.totalorder %s20, 3
    %p132 = por %p130, %p131
    %p133 = scmp.ne.s32.totalorder %s122, %s123
    %p134 = scmp.eq.s32.totalorder %s20, 0
    %p135 = por %p133, %p134
    %p136 = scmp.ne.s32.totalorder %s122, %s123
    %p137 = scmp.eq.s32.totalorder %s21, 3
    %p138 = por %p136, %p137
    %p140 = scmp.ne.s32.totalorder %s123, %s139
    %p141 = scmp.eq.s32.totalorder %s21, 0
    %p142 = por %p140, %p141
    %s144 = sadd.s32 %s143, 1
    %p147 = scmp.eq.s32.totalorder %s15, 3
    %p148 = scmp.ne.s32.totalorder %s143, %s145
    %p149 = scmp.eq.s32.totalorder %s15, 0
    %p150 = por %p148, %p149
    %p151 = scmp.ne.s32.totalorder %s143, %s145
    %p152 = scmp.eq.s32.totalorder %s20, 3
    %p153 = por %p151, %p152
    %p154 = scmp.ne.s32.totalorder %s145, %s146
    %p155 = scmp.eq.s32.totalorder %s20, 0
    %p156 = por %p154, %p155
    %p157 = scmp.ne.s32.totalorder %s145, %s146
    %p158 = scmp.eq.s32.totalorder %s21, 3
    %p159 = por %p157, %p158
    %p161 = scmp.ne.s32.totalorder %s146, %s160
    %p162 = scmp.eq.s32.totalorder %s21, 0
    %p163 = por %p161, %p162
    %s165 = sadd.s32 %s164, 1
    %p168 = scmp.eq.s32.totalorder %s15, 3
    %p169 = scmp.ne.s32.totalorder %s164, %s166
    %p170 = scmp.eq.s32.totalorder %s15, 0
    %p171 = por %p169, %p170
    %p172 = scmp.ne.s32.totalorder %s164, %s166
    %p173 = scmp.eq.s32.totalorder %s20, 3
    %p174 = por %p172, %p173
    %p175 = scmp.ne.s32.totalorder %s166, %s167
    %p176 = scmp.eq.s32.totalorder %s20, 0
    %p177 = por %p175, %p176
    %p178 = scmp.ne.s32.totalorder %s166, %s167
    %p179 = scmp.eq.s32.totalorder %s21, 3
    %p180 = por %p178, %p179
    %p182 = scmp.ne.s32.totalorder %s167, %s181
    %p183 = scmp.eq.s32.totalorder %s21, 0
    %p184 = por %p182, %p183
    %s186 = sadd.s32 %s185, 1
    %p189 = scmp.eq.s32.totalorder %s15, 3
    %p190 = scmp.ne.s32.totalorder %s185, %s187
    %p191 = scmp.eq.s32.totalorder %s15, 0
    %p192 = por %p190, %p191
    %p193 = scmp.ne.s32.totalorder %s185, %s187
    %p194 = scmp.eq.s32.totalorder %s20, 3
    %p195 = por %p193, %p194
    %p196 = scmp.ne.s32.totalorder %s187, %s188
    %p197 = scmp.eq.s32.totalorder %s20, 0
    %p198 = por %p196, %p197
    %p199 = scmp.ne.s32.totalorder %s187, %s188
    %p200 = scmp.eq.s32.totalorder %s21, 3
    %p201 = por %p199, %p200
    %p203 = scmp.ne.s32.totalorder %s188, %s202
    %p204 = scmp.eq.s32.totalorder %s21, 0
    %p205 = por %p203, %p204
    %s206 = ssub.s32 %s22, %s34
    %s207 = ssub.s32 %s23, %s30
    %s208 = sor.u32 %s206, %s207
    %p209 = scmp.eq.s32.totalorder %s208, 0
    %s211 = sadd.s32 %s210, 1
    %s212 = scalar_select %p209, %s210, %s211
    %p215 = pneg %p209
    %p216 = scmp.eq.s32.totalorder %s15, 3
    %p217 = por %p215, %p216
    %p218 = scmp.ne.s32.totalorder %s210, %s213
    %p219 = scmp.eq.s32.totalorder %s15, 0
    %p220 = por %p218, %p219
    %p221 = scmp.ne.s32.totalorder %s210, %s213
    %p222 = scmp.eq.s32.totalorder %s20, 3
    %p223 = por %p221, %p222
    %p224 = scmp.ne.s32.totalorder %s213, %s214
    %p225 = scmp.eq.s32.totalorder %s20, 0
    %p226 = por %p224, %p225
    %p227 = scmp.ne.s32.totalorder %s213, %s214
    %p228 = scmp.eq.s32.totalorder %s21, 3
    %p229 = por %p227, %p228
    %p231 = scmp.ne.s32.totalorder %s214, %s230
    %p232 = scmp.eq.s32.totalorder %s21, 0
    %p233 = por %p231, %p232
    %s234 = ssub.s32 %s22, %s34
    %s235 = ssub.s32 %s23, %s30
    %s236 = sor.u32 %s234, %s235
    %p237 = scmp.eq.s32.totalorder %s236, 0
    %s239 = sadd.s32 %s238, 1
    %s240 = scalar_select %p237, %s238, %s239
    %p243 = pneg %p237
    %p244 = scmp.eq.s32.totalorder %s15, 3
    %p245 = por %p243, %p244
    %p246 = scmp.ne.s32.totalorder %s238, %s241
    %p247 = scmp.eq.s32.totalorder %s15, 0
    %p248 = por %p246, %p247
    %p249 = scmp.ne.s32.totalorder %s238, %s241
    %p250 = scmp.eq.s32.totalorder %s20, 3
    %p251 = por %p249, %p250
    %p252 = scmp.ne.s32.totalorder %s241, %s242
    %p253 = scmp.eq.s32.totalorder %s20, 0
    %p254 = por %p252, %p253
    %p255 = scmp.ne.s32.totalorder %s241, %s242
    %p256 = scmp.eq.s32.totalorder %s21, 3
    %p257 = por %p255, %p256
    %p259 = scmp.ne.s32.totalorder %s242, %s258
    %p260 = scmp.eq.s32.totalorder %s21, 0
    %p261 = por %p259, %p260
    %p262 = scmp.le.s32.totalorder 1, %s15
    %p263 = scmp.lt.s32.totalorder %s15, 5
    %p264 = pnand %p262, %p263
    %p265 = pneg %p264
    // Predicated region
    $region9: #{pointnet_feature_propagation.4} parent=5 // pred_check
      _
    $region10: #{pointnet_feature_propagation.4} parent=5 // pred_check_branch
      %267 = sbr.rel (%p264) target = $region12
    $region11: #{pointnet_feature_propagation.4} parent=5 // pred_region
      %s268 = ssub.s32 %s15, 1
      // Predicated region
      $region13: #{pointnet_feature_propagation.4} parent=11 // pred_check
        %p269 = pneg %p156
      $region14: #{pointnet_feature_propagation.4} parent=11 // pred_check_branch
        %271 = sbr.rel (%p269) target = $region16
      $region15: #{pointnet_feature_propagation.4} parent=11 // pred_region
        _
      $region16: #{pointnet_feature_propagation.4} parent=11 // pred_fallthru
        _
      // Predicated region
      $region17: #{pointnet_feature_propagation.4} parent=11 // pred_check
        %p272 = pneg %p177
      $region18: #{pointnet_feature_propagation.4} parent=11 // pred_check_branch
        %274 = sbr.rel (%p272) target = $region20
      $region19: #{pointnet_feature_propagation.4} parent=11 // pred_region
        _
      $region20: #{pointnet_feature_propagation.4} parent=11 // pred_fallthru
        _
      // Predicated region
      $region21: #{pointnet_feature_propagation.4} parent=11 // pred_check
        %p275 = pneg %p198
      $region22: #{pointnet_feature_propagation.4} parent=11 // pred_check_branch
        %277 = sbr.rel (%p275) target = $region24
      $region23: #{pointnet_feature_propagation.4} parent=11 // pred_region
        _
      $region24: #{pointnet_feature_propagation.4} parent=11 // pred_fallthru
        _
    $region12: #{pointnet_feature_propagation.4} parent=5 // pred_fallthru
      _
    %p278 = scmp.lt.s32.totalorder %s15, 4
    // Predicated region
    $region25: #{pointnet_feature_propagation.4} parent=5 // pred_check
      %p279 = pneg %p278
    $region26: #{pointnet_feature_propagation.4} parent=5 // pred_check_branch
      %281 = sbr.rel (%p279) target = $region28
    $region27: #{pointnet_feature_propagation.4} parent=5 // pred_region
      // Predicated region
      $region29: #{pointnet_feature_propagation.4} parent=27 // pred_check
        %p282 = pneg %p49
      $region30: #{pointnet_feature_propagation.4} parent=27 // pred_check_branch
        %284 = sbr.rel (%p282) target = $region32
      $region31: #{pointnet_feature_propagation.4} parent=27 // pred_region
        %s285 = smul.u32 8, %s23
        %p286 = scmp.lt.s32.totalorder %s22, 1
        %s287 = scalar_select %p286, %s22, 1
        %p288 = scmp.lt.s32.totalorder %s285, 15
        %s289 = scalar_select %p288, %s285, 15
        %s290 = smul.addr %s287, 16
        %s291 = sadd.s32 %s289, %s290
        %s292 = smul.addr %s291, 8
        %s293 = scalar_lea.vmem %s0, %s292
        %s294 = smul.u32 8, %s23
      $region32: #{pointnet_feature_propagation.4} parent=27 // pred_fallthru
        _
      // Predicated region
      $region33: #{pointnet_feature_propagation.4} parent=27 // pred_check
        %p295 = pneg %p75
      $region34: #{pointnet_feature_propagation.4} parent=27 // pred_check_branch
        %297 = sbr.rel (%p295) target = $region36
      $region35: #{pointnet_feature_propagation.4} parent=27 // pred_region
        %p298 = scmp.lt.s32.totalorder %s22, 1
        %s299 = scalar_select %p298, %s22, 1
        %s300 = smul.addr %s299, 4
        %s301 = scalar_lea.vmem %s1, %s300
      $region36: #{pointnet_feature_propagation.4} parent=27 // pred_fallthru
        _
      // Predicated region
      $region37: #{pointnet_feature_propagation.4} parent=27 // pred_check
        %p302 = pneg %p103
      $region38: #{pointnet_feature_propagation.4} parent=27 // pred_check_branch
        %304 = sbr.rel (%p302) target = $region40
      $region39: #{pointnet_feature_propagation.4} parent=27 // pred_region
        %s305 = smul.u32 8, %s23
        %p306 = scmp.lt.s32.totalorder %s22, 1
        %s307 = scalar_select %p306, %s22, 1
        %p308 = scmp.lt.s32.totalorder %s305, 15
        %s309 = scalar_select %p308, %s305, 15
        %s310 = smul.addr %s307, 16
        %s311 = sadd.s32 %s309, %s310
        %s312 = smul.addr %s311, 4
        %s313 = scalar_lea.vmem %s2, %s312
        %s314 = smul.u32 8, %s23
      $region40: #{pointnet_feature_propagation.4} parent=27 // pred_fallthru
        _
      // Predicated region
      $region41: #{pointnet_feature_propagation.4} parent=27 // pred_check
        %p315 = pneg %p129
      $region42: #{pointnet_feature_propagation.4} parent=27 // pred_check_branch
        %317 = sbr.rel (%p315) target = $region44
      $region43: #{pointnet_feature_propagation.4} parent=27 // pred_region
        %p318 = scmp.lt.s32.totalorder %s22, 1
        %s319 = scalar_select %p318, %s22, 1
        %s320 = smul.addr %s319, 4
        %s321 = smul.addr %s320, 4
        %s322 = scalar_lea.vmem %s3, %s321
      $region44: #{pointnet_feature_propagation.4} parent=27 // pred_fallthru
        _
    $region28: #{pointnet_feature_propagation.4} parent=5 // pred_fallthru
      _
    %p323 = scmp.le.s32.totalorder 1, %s15
    %p324 = scmp.lt.s32.totalorder %s15, 5
    %p325 = pnand %p323, %p324
    %p326 = pneg %p325
    // Predicated region
    $region45: #{pointnet_feature_propagation.4} parent=5 // pred_check
      _
    $region46: #{pointnet_feature_propagation.4} parent=5 // pred_check_branch
      %328 = sbr.rel (%p325) target = $region48
    $region47: #{pointnet_feature_propagation.4} parent=5 // pred_region
      %s329 = ssub.s32 %s15, 1
      %s330 = smul.u32 8, %s25
      %p331 = scmp.lt.s32.totalorder %s24, 1
      %s332 = scalar_select %p331, %s24, 1
      %p333 = scmp.lt.s32.totalorder %s330, 15
      %s334 = scalar_select %p333, %s330, 15
      %s335 = smul.addr %s332, 16
      %s336 = sadd.s32 %s334, %s335
      %s337 = smul.addr %s336, 8
      %s338 = scalar_lea.vmem %s0, %s337
      %p339 = pneg %p55
      %p340 = pneg %p52
      %p341 = scmp.lt.s32.totalorder %s24, 1
      %s342 = scalar_select %p341, %s24, 1
      %s343 = smul.addr %s342, 4
      %s344 = scalar_lea.vmem %s1, %s343
      %p345 = pneg %p81
      %p346 = pneg %p78
      %s347 = smul.u32 8, %s25
      %p348 = scmp.lt.s32.totalorder %s24, 1
      %s349 = scalar_select %p348, %s24, 1
      %p350 = scmp.lt.s32.totalorder %s347, 15
      %s351 = scalar_select %p350, %s347, 15
      %s352 = smul.addr %s349, 16
      %s353 = sadd.s32 %s351, %s352
      %s354 = smul.addr %s353, 4
      %s355 = scalar_lea.vmem %s2, %s354
      %p356 = pneg %p109
      %p357 = pneg %p106
      %p358 = scmp.lt.s32.totalorder %s24, 1
      %s359 = scalar_select %p358, %s24, 1
      %s360 = smul.addr %s359, 4
      %s361 = smul.addr %s360, 4
      %s362 = scalar_lea.vmem %s3, %s361
      %p363 = pneg %p135
      %p364 = pneg %p132
      %p365 = pneg %p156
      %p366 = pneg %p153
      %p367 = pneg %p177
      %p368 = pneg %p174
      %p369 = pneg %p198
      %p370 = pneg %p195
      %p371 = pneg %p226
      %p372 = pneg %p223
      %s373 = smul.u32 8, %s25
      %p374 = scmp.lt.s32.totalorder %s24, 1
      %s375 = scalar_select %p374, %s24, 1
      %p376 = scmp.lt.s32.totalorder %s373, 15
      %s377 = scalar_select %p376, %s373, 15
      %s378 = smul.addr %s375, 16
      %s379 = sadd.s32 %s377, %s378
      %s380 = smul.addr %s379, 8
      %s381 = scalar_lea.vmem %s7, %s380
      %p382 = pneg %p254
      %p383 = pneg %p251
      %p384 = scmp.lt.s32.totalorder %s24, 1
      %s385 = scalar_select %p384, %s24, 1
      %p386 = scmp.lt.s32.totalorder %s25, 1
      %s387 = scalar_select %p386, %s25, 1
      %s388 = smul.addr %s385, 2
      %s389 = sadd.s32 %s387, %s388
      %s390 = smul.addr %s389, 8
      %s391 = scalar_lea.vmem %s8, %s390
      %s392 = smul.u32 8, %s25
      %p393 = scmp.lt.s32.totalorder %s24, 1
      %s394 = scalar_select %p393, %s24, 1
      %p395 = scmp.lt.s32.totalorder %s392, 15
      %s396 = scalar_select %p395, %s392, 15
      %s397 = smul.addr %s394, 16
      %s398 = sadd.s32 %s396, %s397
      %s399 = smul.addr %s398, 8
      %s400 = scalar_lea.vmem %s0, %s399
      %s401 = smul.u32 8, %s25
      %p402 = scmp.lt.s32.totalorder %s24, 1
      %s403 = scalar_select %p402, %s24, 1
      %s404 = smul.addr %s403, 4
      %s405 = scalar_lea.vmem %s1, %s404
      %s406 = smul.u32 8, %s25
      %p407 = scmp.lt.s32.totalorder %s24, 1
      %s408 = scalar_select %p407, %s24, 1
      %p409 = scmp.lt.s32.totalorder %s406, 15
      %s410 = scalar_select %p409, %s406, 15
      %s411 = smul.addr %s408, 16
      %s412 = sadd.s32 %s410, %s411
      %s413 = smul.addr %s412, 4
      %s414 = scalar_lea.vmem %s2, %s413
      %s415 = smul.u32 8, %s25
      %p416 = scmp.lt.s32.totalorder %s24, 1
      %s417 = scalar_select %p416, %s24, 1
      %s418 = smul.addr %s417, 4
      %s419 = smul.addr %s418, 4
      %s420 = scalar_lea.vmem %s3, %s419
      %s421 = smul.u32 8, %s25
      %p422 = scmp.lt.s32.totalorder %s24, 1
      %s423 = scalar_select %p422, %s24, 1
      %p424 = scmp.lt.s32.totalorder %s421, 15
      %s425 = scalar_select %p424, %s421, 15
      %s426 = smul.addr %s423, 16
      %s427 = sadd.s32 %s425, %s426
      %s428 = smul.addr %s427, 8
      %s429 = scalar_lea.vmem %s7, %s428
      %s430 = smul.u32 8, %s25
      %p431 = scmp.lt.s32.totalorder %s24, 1
      %s432 = scalar_select %p431, %s24, 1
      %p433 = scmp.lt.s32.totalorder %s25, 1
      %s434 = scalar_select %p433, %s25, 1
      %s435 = smul.addr %s432, 2
      %s436 = sadd.s32 %s434, %s435
      %s437 = smul.addr %s436, 8
      %s438 = scalar_lea.vmem %s8, %s437
      %v440 = vld [vmem:[%s400] sm:$0xff]
      %v441 = vld [vmem:[%s400 + $0x8] sm:$0xff]
      %v442 = vld [vmem:[%s400 + $0x10] sm:$0xff]
      %v443 = vld [vmem:[%s400 + $0x18] sm:$0xff]
      %v444 = vld [vmem:[%s400 + $0x20] sm:$0xff]
      %v445 = vld [vmem:[%s400 + $0x28] sm:$0xff]
      %v446 = vld [vmem:[%s400 + $0x30] sm:$0xff]
      %v447 = vld [vmem:[%s400 + $0x38] sm:$0xff]
      %v448 = vld [vmem:[%s405] sm:$0x7]
      %450 = vset.pattern.permute.xlu0 0
      %451 = vperm.xlu0 %450, %v440
      %v452 = vpop.permute.xlu0 %451
      %455 = vset.pattern.permute.xlu0 0
      %456 = vperm.xlu0 %455, %v441
      %v457 = vpop.permute.xlu0 %456
      %460 = vset.pattern.permute.xlu0 0
      %461 = vperm.xlu0 %460, %v442
      %v462 = vpop.permute.xlu0 %461
      %465 = vset.pattern.permute.xlu0 0
      %466 = vperm.xlu0 %465, %v443
      %v467 = vpop.permute.xlu0 %466
      %470 = vset.pattern.permute.xlu0 0
      %471 = vperm.xlu0 %470, %v444
      %v472 = vpop.permute.xlu0 %471
      %475 = vset.pattern.permute.xlu0 0
      %476 = vperm.xlu0 %475, %v445
      %v477 = vpop.permute.xlu0 %476
      %480 = vset.pattern.permute.xlu0 0
      %481 = vperm.xlu0 %480, %v446
      %v482 = vpop.permute.xlu0 %481
      %485 = vset.pattern.permute.xlu0 0
      %486 = vperm.xlu0 %485, %v447
      %v487 = vpop.permute.xlu0 %486
      %v489 = vlaneseq
      %v490 = vshrl.u32 %v489, 7
      %v491 = vsub.s32 0, %v490
      %v492 = vrot.slane %v448, %v491
      %v493 = vsub.f32 %v452, %v492
      %v494 = vsub.f32 %v457, %v492
      %v495 = vsub.f32 %v462, %v492
      %v496 = vsub.f32 %v467, %v492
      %v497 = vsub.f32 %v472, %v492
      %v498 = vsub.f32 %v477, %v492
      %v499 = vsub.f32 %v482, %v492
      %v500 = vsub.f32 %v487, %v492
      %v501 = vmul.f32 %v493, %v493
      %v502 = vmul.f32 %v494, %v494
      %v503 = vmul.f32 %v495, %v495
      %v504 = vmul.f32 %v496, %v496
      %v505 = vmul.f32 %v497, %v497
      %v506 = vmul.f32 %v498, %v498
      %v507 = vmul.f32 %v499, %v499
      %v508 = vmul.f32 %v500, %v500
      %509 = vset.pattern.permute.xlu0 1
      %510 = vperm.xlu0 %509, %v440
      %v511 = vpop.permute.xlu0 %510
      %513 = vset.pattern.permute.xlu0 1
      %514 = vperm.xlu0 %513, %v441
      %v515 = vpop.permute.xlu0 %514
      %517 = vset.pattern.permute.xlu0 1
      %518 = vperm.xlu0 %517, %v442
      %v519 = vpop.permute.xlu0 %518
      %521 = vset.pattern.permute.xlu0 1
      %522 = vperm.xlu0 %521, %v443
      %v523 = vpop.permute.xlu0 %522
      %525 = vset.pattern.permute.xlu0 1
      %526 = vperm.xlu0 %525, %v444
      %v527 = vpop.permute.xlu0 %526
      %529 = vset.pattern.permute.xlu0 1
      %530 = vperm.xlu0 %529, %v445
      %v531 = vpop.permute.xlu0 %530
      %533 = vset.pattern.permute.xlu0 1
      %534 = vperm.xlu0 %533, %v446
      %v535 = vpop.permute.xlu0 %534
      %537 = vset.pattern.permute.xlu0 1
      %538 = vperm.xlu0 %537, %v447
      %v539 = vpop.permute.xlu0 %538
      %v541 = vlaneseq
      %v542 = vshrl.u32 %v541, 7
      %v543 = vsub.s32 1, %v542
      %v544 = vrot.slane %v448, %v543
      %v545 = vsub.f32 %v511, %v544
      %v546 = vsub.f32 %v515, %v544
      %v547 = vsub.f32 %v519, %v544
      %v548 = vsub.f32 %v523, %v544
      %v549 = vsub.f32 %v527, %v544
      %v550 = vsub.f32 %v531, %v544
      %v551 = vsub.f32 %v535, %v544
      %v552 = vsub.f32 %v539, %v544
      %v553 = vmul.f32 %v545, %v545
      %v554 = vmul.f32 %v546, %v546
      %v555 = vmul.f32 %v547, %v547
      %v556 = vmul.f32 %v548, %v548
      %v557 = vmul.f32 %v549, %v549
      %v558 = vmul.f32 %v550, %v550
      %v559 = vmul.f32 %v551, %v551
      %v560 = vmul.f32 %v552, %v552
      %v561 = vadd.f32 %v501, %v553
      %v562 = vadd.f32 %v502, %v554
      %v563 = vadd.f32 %v503, %v555
      %v564 = vadd.f32 %v504, %v556
      %v565 = vadd.f32 %v505, %v557
      %v566 = vadd.f32 %v506, %v558
      %v567 = vadd.f32 %v507, %v559
      %v568 = vadd.f32 %v508, %v560
      %569 = vset.pattern.permute.xlu0 2
      %570 = vperm.xlu0 %569, %v440
      %v571 = vpop.permute.xlu0 %570
      %573 = vset.pattern.permute.xlu0 2
      %574 = vperm.xlu0 %573, %v441
      %v575 = vpop.permute.xlu0 %574
      %577 = vset.pattern.permute.xlu0 2
      %578 = vperm.xlu0 %577, %v442
      %v579 = vpop.permute.xlu0 %578
      %581 = vset.pattern.permute.xlu0 2
      %582 = vperm.xlu0 %581, %v443
      %v583 = vpop.permute.xlu0 %582
      %585 = vset.pattern.permute.xlu0 2
      %586 = vperm.xlu0 %585, %v444
      %v587 = vpop.permute.xlu0 %586
      %589 = vset.pattern.permute.xlu0 2
      %590 = vperm.xlu0 %589, %v445
      %v591 = vpop.permute.xlu0 %590
      %593 = vset.pattern.permute.xlu0 2
      %594 = vperm.xlu0 %593, %v446
      %v595 = vpop.permute.xlu0 %594
      %597 = vset.pattern.permute.xlu0 2
      %598 = vperm.xlu0 %597, %v447
      %v599 = vpop.permute.xlu0 %598
      %v601 = vlaneseq
      %v602 = vshrl.u32 %v601, 7
      %v603 = vsub.s32 2, %v602
      %v604 = vrot.slane %v448, %v603
      %v605 = vsub.f32 %v571, %v604
      %v606 = vsub.f32 %v575, %v604
      %v607 = vsub.f32 %v579, %v604
      %v608 = vsub.f32 %v583, %v604
      %v609 = vsub.f32 %v587, %v604
      %v610 = vsub.f32 %v591, %v604
      %v611 = vsub.f32 %v595, %v604
      %v612 = vsub.f32 %v599, %v604
      %v613 = vmul.f32 %v605, %v605
      %v614 = vmul.f32 %v606, %v606
      %v615 = vmul.f32 %v607, %v607
      %v616 = vmul.f32 %v608, %v608
      %v617 = vmul.f32 %v609, %v609
      %v618 = vmul.f32 %v610, %v610
      %v619 = vmul.f32 %v611, %v611
      %v620 = vmul.f32 %v612, %v612
      %v621 = vadd.f32 %v561, %v613
      %v622 = vadd.f32 %v562, %v614
      %v623 = vadd.f32 %v563, %v615
      %v624 = vadd.f32 %v564, %v616
      %v625 = vadd.f32 %v565, %v617
      %v626 = vadd.f32 %v566, %v618
      %v627 = vadd.f32 %v567, %v619
      %v628 = vadd.f32 %v568, %v620
      %v629 = vlaneseq
      %v630 = vand.u32 %v629, 127
      %vm631 = vcmask 261120
      %v632 = vsel %vm631, %v621, inf
      %633 = vmin.xlane.f32.xlu0 %v632
      %v634 = vpop.xlane.xlu0 %633
      %v635 = vsel %vm631, %v622, inf
      %636 = vmin.xlane.f32.xlu0 %v635
      %v637 = vpop.xlane.xlu0 %636
      %v638 = vsel %vm631, %v623, inf
      %639 = vmin.xlane.f32.xlu0 %v638
      %v640 = vpop.xlane.xlu0 %639
      %v641 = vsel %vm631, %v624, inf
      %642 = vmin.xlane.f32.xlu0 %v641
      %v643 = vpop.xlane.xlu0 %642
      %v644 = vsel %vm631, %v625, inf
      %645 = vmin.xlane.f32.xlu0 %v644
      %v646 = vpop.xlane.xlu0 %645
      %v647 = vsel %vm631, %v626, inf
      %648 = vmin.xlane.f32.xlu0 %v647
      %v649 = vpop.xlane.xlu0 %648
      %v650 = vsel %vm631, %v627, inf
      %651 = vmin.xlane.f32.xlu0 %v650
      %v652 = vpop.xlane.xlu0 %651
      %v653 = vsel %vm631, %v628, inf
      %654 = vmin.xlane.f32.xlu0 %v653
      %v655 = vpop.xlane.xlu0 %654
      %vm656 = vcmp.eq.f32.partialorder %v621, %v634
      %vm657 = vcmp.eq.f32.partialorder %v622, %v637
      %vm658 = vcmp.eq.f32.partialorder %v623, %v640
      %vm659 = vcmp.eq.f32.partialorder %v624, %v643
      %vm660 = vcmp.eq.f32.partialorder %v625, %v646
      %vm661 = vcmp.eq.f32.partialorder %v626, %v649
      %vm662 = vcmp.eq.f32.partialorder %v627, %v652
      %vm663 = vcmp.eq.f32.partialorder %v628, %v655
      %v664 = vsel %vm656, %v630, 32
      %v665 = vsel %vm657, %v630, 32
      %v666 = vsel %vm658, %v630, 32
      %v667 = vsel %vm659, %v630, 32
      %v668 = vsel %vm660, %v630, 32
      %v669 = vsel %vm661, %v630, 32
      %v670 = vsel %vm662, %v630, 32
      %v671 = vsel %vm663, %v630, 32
      %v672 = vsel %vm631, %v664, 2147483647
      %v673 = vand.u32 %v672, 65535
      %v674 = vshra.s32 %v672, 16
      %v675 = vcvt.s32.f32 %v673
      %v676 = vcvt.s32.f32 %v674
      %677 = vmin.xlane.f32.xlu0 %v676
      %v678 = vpop.xlane.xlu0 %677
      %vm679 = vcmp.eq.f32.partialorder %v676, %v678
      %v680 = vsel %vm679, %v675, inf
      %681 = vmin.xlane.f32.xlu0 %v680
      %v682 = vpop.xlane.xlu0 %681
      %v683 = vcvt.f32.s32 %v682
      %v684 = vcvt.f32.s32 %v678
      %v685 = vshll.u32 %v684, 16
      %v686 = vadd.s32 %v685, %v683
      %v687 = vsel %vm631, %v665, 2147483647
      %v688 = vand.u32 %v687, 65535
      %v689 = vshra.s32 %v687, 16
      %v690 = vcvt.s32.f32 %v688
      %v691 = vcvt.s32.f32 %v689
      %692 = vmin.xlane.f32.xlu0 %v691
      %v693 = vpop.xlane.xlu0 %692
      %vm694 = vcmp.eq.f32.partialorder %v691, %v693
      %v695 = vsel %vm694, %v690, inf
      %696 = vmin.xlane.f32.xlu0 %v695
      %v697 = vpop.xlane.xlu0 %696
      %v698 = vcvt.f32.s32 %v697
      %v699 = vcvt.f32.s32 %v693
      %v700 = vshll.u32 %v699, 16
      %v701 = vadd.s32 %v700, %v698
      %v702 = vsel %vm631, %v666, 2147483647
      %v703 = vand.u32 %v702, 65535
      %v704 = vshra.s32 %v702, 16
      %v705 = vcvt.s32.f32 %v703
      %v706 = vcvt.s32.f32 %v704
      %707 = vmin.xlane.f32.xlu0 %v706
      %v708 = vpop.xlane.xlu0 %707
      %vm709 = vcmp.eq.f32.partialorder %v706, %v708
      %v710 = vsel %vm709, %v705, inf
      %711 = vmin.xlane.f32.xlu0 %v710
      %v712 = vpop.xlane.xlu0 %711
      %v713 = vcvt.f32.s32 %v712
      %v714 = vcvt.f32.s32 %v708
      %v715 = vshll.u32 %v714, 16
      %v716 = vadd.s32 %v715, %v713
      %v717 = vsel %vm631, %v667, 2147483647
      %v718 = vand.u32 %v717, 65535
      %v719 = vshra.s32 %v717, 16
      %v720 = vcvt.s32.f32 %v718
      %v721 = vcvt.s32.f32 %v719
      %722 = vmin.xlane.f32.xlu0 %v721
      %v723 = vpop.xlane.xlu0 %722
      %vm724 = vcmp.eq.f32.partialorder %v721, %v723
      %v725 = vsel %vm724, %v720, inf
      %726 = vmin.xlane.f32.xlu0 %v725
      %v727 = vpop.xlane.xlu0 %726
      %v728 = vcvt.f32.s32 %v727
      %v729 = vcvt.f32.s32 %v723
      %v730 = vshll.u32 %v729, 16
      %v731 = vadd.s32 %v730, %v728
      %v732 = vsel %vm631, %v668, 2147483647
      %v733 = vand.u32 %v732, 65535
      %v734 = vshra.s32 %v732, 16
      %v735 = vcvt.s32.f32 %v733
      %v736 = vcvt.s32.f32 %v734
      %737 = vmin.xlane.f32.xlu0 %v736
      %v738 = vpop.xlane.xlu0 %737
      %vm739 = vcmp.eq.f32.partialorder %v736, %v738
      %v740 = vsel %vm739, %v735, inf
      %741 = vmin.xlane.f32.xlu0 %v740
      %v742 = vpop.xlane.xlu0 %741
      %v743 = vcvt.f32.s32 %v742
      %v744 = vcvt.f32.s32 %v738
      %v745 = vshll.u32 %v744, 16
      %v746 = vadd.s32 %v745, %v743
      %v747 = vsel %vm631, %v669, 2147483647
      %v748 = vand.u32 %v747, 65535
      %v749 = vshra.s32 %v747, 16
      %v750 = vcvt.s32.f32 %v748
      %v751 = vcvt.s32.f32 %v749
      %752 = vmin.xlane.f32.xlu0 %v751
      %v753 = vpop.xlane.xlu0 %752
      %vm754 = vcmp.eq.f32.partialorder %v751, %v753
      %v755 = vsel %vm754, %v750, inf
      %756 = vmin.xlane.f32.xlu0 %v755
      %v757 = vpop.xlane.xlu0 %756
      %v758 = vcvt.f32.s32 %v757
      %v759 = vcvt.f32.s32 %v753
      %v760 = vshll.u32 %v759, 16
      %v761 = vadd.s32 %v760, %v758
      %v762 = vsel %vm631, %v670, 2147483647
      %v763 = vand.u32 %v762, 65535
      %v764 = vshra.s32 %v762, 16
      %v765 = vcvt.s32.f32 %v763
      %v766 = vcvt.s32.f32 %v764
      %767 = vmin.xlane.f32.xlu0 %v766
      %v768 = vpop.xlane.xlu0 %767
      %vm769 = vcmp.eq.f32.partialorder %v766, %v768
      %v770 = vsel %vm769, %v765, inf
      %771 = vmin.xlane.f32.xlu0 %v770
      %v772 = vpop.xlane.xlu0 %771
      %v773 = vcvt.f32.s32 %v772
      %v774 = vcvt.f32.s32 %v768
      %v775 = vshll.u32 %v774, 16
      %v776 = vadd.s32 %v775, %v773
      %v777 = vsel %vm631, %v671, 2147483647
      %v778 = vand.u32 %v777, 65535
      %v779 = vshra.s32 %v777, 16
      %v780 = vcvt.s32.f32 %v778
      %v781 = vcvt.s32.f32 %v779
      %782 = vmin.xlane.f32.xlu0 %v781
      %v783 = vpop.xlane.xlu0 %782
      %vm784 = vcmp.eq.f32.partialorder %v781, %v783
      %v785 = vsel %vm784, %v780, inf
      %786 = vmin.xlane.f32.xlu0 %v785
      %v787 = vpop.xlane.xlu0 %786
      %v788 = vcvt.f32.s32 %v787
      %v789 = vcvt.f32.s32 %v783
      %v790 = vshll.u32 %v789, 16
      %v791 = vadd.s32 %v790, %v788
      %vm792 = vcmp.eq.s32.totalorder %v630, %v686
      %vm793 = vcmp.eq.s32.totalorder %v630, %v701
      %vm794 = vcmp.eq.s32.totalorder %v630, %v716
      %vm795 = vcmp.eq.s32.totalorder %v630, %v731
      %vm796 = vcmp.eq.s32.totalorder %v630, %v746
      %vm797 = vcmp.eq.s32.totalorder %v630, %v761
      %vm798 = vcmp.eq.s32.totalorder %v630, %v776
      %vm799 = vcmp.eq.s32.totalorder %v630, %v791
      %v800 = vsel %vm792, inf, %v621
      %v801 = vsel %vm793, inf, %v622
      %v802 = vsel %vm794, inf, %v623
      %v803 = vsel %vm795, inf, %v624
      %v804 = vsel %vm796, inf, %v625
      %v805 = vsel %vm797, inf, %v626
      %v806 = vsel %vm798, inf, %v627
      %v807 = vsel %vm799, inf, %v628
      %v808 = vsel %vm631, %v800, inf
      %809 = vmin.xlane.f32.xlu0 %v808
      %v810 = vpop.xlane.xlu0 %809
      %v811 = vsel %vm631, %v801, inf
      %812 = vmin.xlane.f32.xlu0 %v811
      %v813 = vpop.xlane.xlu0 %812
      %v814 = vsel %vm631, %v802, inf
      %815 = vmin.xlane.f32.xlu0 %v814
      %v816 = vpop.xlane.xlu0 %815
      %v817 = vsel %vm631, %v803, inf
      %818 = vmin.xlane.f32.xlu0 %v817
      %v819 = vpop.xlane.xlu0 %818
      %v820 = vsel %vm631, %v804, inf
      %821 = vmin.xlane.f32.xlu0 %v820
      %v822 = vpop.xlane.xlu0 %821
      %v823 = vsel %vm631, %v805, inf
      %824 = vmin.xlane.f32.xlu0 %v823
      %v825 = vpop.xlane.xlu0 %824
      %v826 = vsel %vm631, %v806, inf
      %827 = vmin.xlane.f32.xlu0 %v826
      %v828 = vpop.xlane.xlu0 %827
      %v829 = vsel %vm631, %v807, inf
      %830 = vmin.xlane.f32.xlu0 %v829
      %v831 = vpop.xlane.xlu0 %830
      %vm832 = vcmp.eq.f32.partialorder %v800, %v810
      %vm833 = vcmp.eq.f32.partialorder %v801, %v813
      %vm834 = vcmp.eq.f32.partialorder %v802, %v816
      %vm835 = vcmp.eq.f32.partialorder %v803, %v819
      %vm836 = vcmp.eq.f32.partialorder %v804, %v822
      %vm837 = vcmp.eq.f32.partialorder %v805, %v825
      %vm838 = vcmp.eq.f32.partialorder %v806, %v828
      %vm839 = vcmp.eq.f32.partialorder %v807, %v831
      %v840 = vsel %vm832, %v630, 32
      %v841 = vsel %vm833, %v630, 32
      %v842 = vsel %vm834, %v630, 32
      %v843 = vsel %vm835, %v630, 32
      %v844 = vsel %vm836, %v630, 32
      %v845 = vsel %vm837, %v630, 32
      %v846 = vsel %vm838, %v630, 32
      %v847 = vsel %vm839, %v630, 32
      %v848 = vsel %vm631, %v840, 2147483647
      %v849 = vand.u32 %v848, 65535
      %v850 = vshra.s32 %v848, 16
      %v851 = vcvt.s32.f32 %v849
      %v852 = vcvt.s32.f32 %v850
      %853 = vmin.xlane.f32.xlu0 %v852
      %v854 = vpop.xlane.xlu0 %853
      %vm855 = vcmp.eq.f32.partialorder %v852, %v854
      %v856 = vsel %vm855, %v851, inf
      %857 = vmin.xlane.f32.xlu0 %v856
      %v858 = vpop.xlane.xlu0 %857
      %v859 = vcvt.f32.s32 %v858
      %v860 = vcvt.f32.s32 %v854
      %v861 = vshll.u32 %v860, 16
      %v862 = vadd.s32 %v861, %v859
      %v863 = vsel %vm631, %v841, 2147483647
      %v864 = vand.u32 %v863, 65535
      %v865 = vshra.s32 %v863, 16
      %v866 = vcvt.s32.f32 %v864
      %v867 = vcvt.s32.f32 %v865
      %868 = vmin.xlane.f32.xlu0 %v867
      %v869 = vpop.xlane.xlu0 %868
      %vm870 = vcmp.eq.f32.partialorder %v867, %v869
      %v871 = vsel %vm870, %v866, inf
      %872 = vmin.xlane.f32.xlu0 %v871
      %v873 = vpop.xlane.xlu0 %872
      %v874 = vcvt.f32.s32 %v873
      %v875 = vcvt.f32.s32 %v869
      %v876 = vshll.u32 %v875, 16
      %v877 = vadd.s32 %v876, %v874
      %v878 = vsel %vm631, %v842, 2147483647
      %v879 = vand.u32 %v878, 65535
      %v880 = vshra.s32 %v878, 16
      %v881 = vcvt.s32.f32 %v879
      %v882 = vcvt.s32.f32 %v880
      %883 = vmin.xlane.f32.xlu0 %v882
      %v884 = vpop.xlane.xlu0 %883
      %vm885 = vcmp.eq.f32.partialorder %v882, %v884
      %v886 = vsel %vm885, %v881, inf
      %887 = vmin.xlane.f32.xlu0 %v886
      %v888 = vpop.xlane.xlu0 %887
      %v889 = vcvt.f32.s32 %v888
      %v890 = vcvt.f32.s32 %v884
      %v891 = vshll.u32 %v890, 16
      %v892 = vadd.s32 %v891, %v889
      %v893 = vsel %vm631, %v843, 2147483647
      %v894 = vand.u32 %v893, 65535
      %v895 = vshra.s32 %v893, 16
      %v896 = vcvt.s32.f32 %v894
      %v897 = vcvt.s32.f32 %v895
      %898 = vmin.xlane.f32.xlu0 %v897
      %v899 = vpop.xlane.xlu0 %898
      %vm900 = vcmp.eq.f32.partialorder %v897, %v899
      %v901 = vsel %vm900, %v896, inf
      %902 = vmin.xlane.f32.xlu0 %v901
      %v903 = vpop.xlane.xlu0 %902
      %v904 = vcvt.f32.s32 %v903
      %v905 = vcvt.f32.s32 %v899
      %v906 = vshll.u32 %v905, 16
      %v907 = vadd.s32 %v906, %v904
      %v908 = vsel %vm631, %v844, 2147483647
      %v909 = vand.u32 %v908, 65535
      %v910 = vshra.s32 %v908, 16
      %v911 = vcvt.s32.f32 %v909
      %v912 = vcvt.s32.f32 %v910
      %913 = vmin.xlane.f32.xlu0 %v912
      %v914 = vpop.xlane.xlu0 %913
      %vm915 = vcmp.eq.f32.partialorder %v912, %v914
      %v916 = vsel %vm915, %v911, inf
      %917 = vmin.xlane.f32.xlu0 %v916
      %v918 = vpop.xlane.xlu0 %917
      %v919 = vcvt.f32.s32 %v918
      %v920 = vcvt.f32.s32 %v914
      %v921 = vshll.u32 %v920, 16
      %v922 = vadd.s32 %v921, %v919
      %v923 = vsel %vm631, %v845, 2147483647
      %v924 = vand.u32 %v923, 65535
      %v925 = vshra.s32 %v923, 16
      %v926 = vcvt.s32.f32 %v924
      %v927 = vcvt.s32.f32 %v925
      %928 = vmin.xlane.f32.xlu0 %v927
      %v929 = vpop.xlane.xlu0 %928
      %vm930 = vcmp.eq.f32.partialorder %v927, %v929
      %v931 = vsel %vm930, %v926, inf
      %932 = vmin.xlane.f32.xlu0 %v931
      %v933 = vpop.xlane.xlu0 %932
      %v934 = vcvt.f32.s32 %v933
      %v935 = vcvt.f32.s32 %v929
      %v936 = vshll.u32 %v935, 16
      %v937 = vadd.s32 %v936, %v934
      %v938 = vsel %vm631, %v846, 2147483647
      %v939 = vand.u32 %v938, 65535
      %v940 = vshra.s32 %v938, 16
      %v941 = vcvt.s32.f32 %v939
      %v942 = vcvt.s32.f32 %v940
      %943 = vmin.xlane.f32.xlu0 %v942
      %v944 = vpop.xlane.xlu0 %943
      %vm945 = vcmp.eq.f32.partialorder %v942, %v944
      %v946 = vsel %vm945, %v941, inf
      %947 = vmin.xlane.f32.xlu0 %v946
      %v948 = vpop.xlane.xlu0 %947
      %v949 = vcvt.f32.s32 %v948
      %v950 = vcvt.f32.s32 %v944
      %v951 = vshll.u32 %v950, 16
      %v952 = vadd.s32 %v951, %v949
      %v953 = vsel %vm631, %v847, 2147483647
      %v954 = vand.u32 %v953, 65535
      %v955 = vshra.s32 %v953, 16
      %v956 = vcvt.s32.f32 %v954
      %v957 = vcvt.s32.f32 %v955
      %958 = vmin.xlane.f32.xlu0 %v957
      %v959 = vpop.xlane.xlu0 %958
      %vm960 = vcmp.eq.f32.partialorder %v957, %v959
      %v961 = vsel %vm960, %v956, inf
      %962 = vmin.xlane.f32.xlu0 %v961
      %v963 = vpop.xlane.xlu0 %962
      %v964 = vcvt.f32.s32 %v963
      %v965 = vcvt.f32.s32 %v959
      %v966 = vshll.u32 %v965, 16
      %v967 = vadd.s32 %v966, %v964
      %vm968 = vcmp.eq.s32.totalorder %v630, %v862
      %vm969 = vcmp.eq.s32.totalorder %v630, %v877
      %vm970 = vcmp.eq.s32.totalorder %v630, %v892
      %vm971 = vcmp.eq.s32.totalorder %v630, %v907
      %vm972 = vcmp.eq.s32.totalorder %v630, %v922
      %vm973 = vcmp.eq.s32.totalorder %v630, %v937
      %vm974 = vcmp.eq.s32.totalorder %v630, %v952
      %vm975 = vcmp.eq.s32.totalorder %v630, %v967
      %vm976 = vmor %vm792, %vm968
      %vm977 = vmor %vm793, %vm969
      %vm978 = vmor %vm794, %vm970
      %vm979 = vmor %vm795, %vm971
      %vm980 = vmor %vm796, %vm972
      %vm981 = vmor %vm797, %vm973
      %vm982 = vmor %vm798, %vm974
      %vm983 = vmor %vm799, %vm975
      %v984 = vsel %vm968, inf, %v800
      %v985 = vsel %vm969, inf, %v801
      %v986 = vsel %vm970, inf, %v802
      %v987 = vsel %vm971, inf, %v803
      %v988 = vsel %vm972, inf, %v804
      %v989 = vsel %vm973, inf, %v805
      %v990 = vsel %vm974, inf, %v806
      %v991 = vsel %vm975, inf, %v807
      %v992 = vsel %vm631, %v984, inf
      %993 = vmin.xlane.f32.xlu0 %v992
      %v994 = vpop.xlane.xlu0 %993
      %v995 = vsel %vm631, %v985, inf
      %996 = vmin.xlane.f32.xlu0 %v995
      %v997 = vpop.xlane.xlu0 %996
      %v998 = vsel %vm631, %v986, inf
      %999 = vmin.xlane.f32.xlu0 %v998
      %v1000 = vpop.xlane.xlu0 %999
      %v1001 = vsel %vm631, %v987, inf
      %1002 = vmin.xlane.f32.xlu0 %v1001
      %v1003 = vpop.xlane.xlu0 %1002
      %v1004 = vsel %vm631, %v988, inf
      %1005 = vmin.xlane.f32.xlu0 %v1004
      %v1006 = vpop.xlane.xlu0 %1005
      %v1007 = vsel %vm631, %v989, inf
      %1008 = vmin.xlane.f32.xlu0 %v1007
      %v1009 = vpop.xlane.xlu0 %1008
      %v1010 = vsel %vm631, %v990, inf
      %1011 = vmin.xlane.f32.xlu0 %v1010
      %v1012 = vpop.xlane.xlu0 %1011
      %v1013 = vsel %vm631, %v991, inf
      %1014 = vmin.xlane.f32.xlu0 %v1013
      %v1015 = vpop.xlane.xlu0 %1014
      %vm1016 = vcmp.eq.f32.partialorder %v984, %v994
      %vm1017 = vcmp.eq.f32.partialorder %v985, %v997
      %vm1018 = vcmp.eq.f32.partialorder %v986, %v1000
      %vm1019 = vcmp.eq.f32.partialorder %v987, %v1003
      %vm1020 = vcmp.eq.f32.partialorder %v988, %v1006
      %vm1021 = vcmp.eq.f32.partialorder %v989, %v1009
      %vm1022 = vcmp.eq.f32.partialorder %v990, %v1012
      %vm1023 = vcmp.eq.f32.partialorder %v991, %v1015
      %v1024 = vsel %vm1016, %v630, 32
      %v1025 = vsel %vm1017, %v630, 32
      %v1026 = vsel %vm1018, %v630, 32
      %v1027 = vsel %vm1019, %v630, 32
      %v1028 = vsel %vm1020, %v630, 32
      %v1029 = vsel %vm1021, %v630, 32
      %v1030 = vsel %vm1022, %v630, 32
      %v1031 = vsel %vm1023, %v630, 32
      %v1032 = vsel %vm631, %v1024, 2147483647
      %v1033 = vand.u32 %v1032, 65535
      %v1034 = vshra.s32 %v1032, 16
      %v1035 = vcvt.s32.f32 %v1033
      %v1036 = vcvt.s32.f32 %v1034
      %1037 = vmin.xlane.f32.xlu0 %v1036
      %v1038 = vpop.xlane.xlu0 %1037
      %vm1039 = vcmp.eq.f32.partialorder %v1036, %v1038
      %v1040 = vsel %vm1039, %v1035, inf
      %1041 = vmin.xlane.f32.xlu0 %v1040
      %v1042 = vpop.xlane.xlu0 %1041
      %v1043 = vcvt.f32.s32 %v1042
      %v1044 = vcvt.f32.s32 %v1038
      %v1045 = vshll.u32 %v1044, 16
      %v1046 = vadd.s32 %v1045, %v1043
      %v1047 = vsel %vm631, %v1025, 2147483647
      %v1048 = vand.u32 %v1047, 65535
      %v1049 = vshra.s32 %v1047, 16
      %v1050 = vcvt.s32.f32 %v1048
      %v1051 = vcvt.s32.f32 %v1049
      %1052 = vmin.xlane.f32.xlu0 %v1051
      %v1053 = vpop.xlane.xlu0 %1052
      %vm1054 = vcmp.eq.f32.partialorder %v1051, %v1053
      %v1055 = vsel %vm1054, %v1050, inf
      %1056 = vmin.xlane.f32.xlu0 %v1055
      %v1057 = vpop.xlane.xlu0 %1056
      %v1058 = vcvt.f32.s32 %v1057
      %v1059 = vcvt.f32.s32 %v1053
      %v1060 = vshll.u32 %v1059, 16
      %v1061 = vadd.s32 %v1060, %v1058
      %v1062 = vsel %vm631, %v1026, 2147483647
      %v1063 = vand.u32 %v1062, 65535
      %v1064 = vshra.s32 %v1062, 16
      %v1065 = vcvt.s32.f32 %v1063
      %v1066 = vcvt.s32.f32 %v1064
      %1067 = vmin.xlane.f32.xlu0 %v1066
      %v1068 = vpop.xlane.xlu0 %1067
      %vm1069 = vcmp.eq.f32.partialorder %v1066, %v1068
      %v1070 = vsel %vm1069, %v1065, inf
      %1071 = vmin.xlane.f32.xlu0 %v1070
      %v1072 = vpop.xlane.xlu0 %1071
      %v1073 = vcvt.f32.s32 %v1072
      %v1074 = vcvt.f32.s32 %v1068
      %v1075 = vshll.u32 %v1074, 16
      %v1076 = vadd.s32 %v1075, %v1073
      %v1077 = vsel %vm631, %v1027, 2147483647
      %v1078 = vand.u32 %v1077, 65535
      %v1079 = vshra.s32 %v1077, 16
      %v1080 = vcvt.s32.f32 %v1078
      %v1081 = vcvt.s32.f32 %v1079
      %1082 = vmin.xlane.f32.xlu0 %v1081
      %v1083 = vpop.xlane.xlu0 %1082
      %vm1084 = vcmp.eq.f32.partialorder %v1081, %v1083
      %v1085 = vsel %vm1084, %v1080, inf
      %1086 = vmin.xlane.f32.xlu0 %v1085
      %v1087 = vpop.xlane.xlu0 %1086
      %v1088 = vcvt.f32.s32 %v1087
      %v1089 = vcvt.f32.s32 %v1083
      %v1090 = vshll.u32 %v1089, 16
      %v1091 = vadd.s32 %v1090, %v1088
      %v1092 = vsel %vm631, %v1028, 2147483647
      %v1093 = vand.u32 %v1092, 65535
      %v1094 = vshra.s32 %v1092, 16
      %v1095 = vcvt.s32.f32 %v1093
      %v1096 = vcvt.s32.f32 %v1094
      %1097 = vmin.xlane.f32.xlu0 %v1096
      %v1098 = vpop.xlane.xlu0 %1097
      %vm1099 = vcmp.eq.f32.partialorder %v1096, %v1098
      %v1100 = vsel %vm1099, %v1095, inf
      %1101 = vmin.xlane.f32.xlu0 %v1100
      %v1102 = vpop.xlane.xlu0 %1101
      %v1103 = vcvt.f32.s32 %v1102
      %v1104 = vcvt.f32.s32 %v1098
      %v1105 = vshll.u32 %v1104, 16
      %v1106 = vadd.s32 %v1105, %v1103
      %v1107 = vsel %vm631, %v1029, 2147483647
      %v1108 = vand.u32 %v1107, 65535
      %v1109 = vshra.s32 %v1107, 16
      %v1110 = vcvt.s32.f32 %v1108
      %v1111 = vcvt.s32.f32 %v1109
      %1112 = vmin.xlane.f32.xlu0 %v1111
      %v1113 = vpop.xlane.xlu0 %1112
      %vm1114 = vcmp.eq.f32.partialorder %v1111, %v1113
      %v1115 = vsel %vm1114, %v1110, inf
      %1116 = vmin.xlane.f32.xlu0 %v1115
      %v1117 = vpop.xlane.xlu0 %1116
      %v1118 = vcvt.f32.s32 %v1117
      %v1119 = vcvt.f32.s32 %v1113
      %v1120 = vshll.u32 %v1119, 16
      %v1121 = vadd.s32 %v1120, %v1118
      %v1122 = vsel %vm631, %v1030, 2147483647
      %v1123 = vand.u32 %v1122, 65535
      %v1124 = vshra.s32 %v1122, 16
      %v1125 = vcvt.s32.f32 %v1123
      %v1126 = vcvt.s32.f32 %v1124
      %1127 = vmin.xlane.f32.xlu0 %v1126
      %v1128 = vpop.xlane.xlu0 %1127
      %vm1129 = vcmp.eq.f32.partialorder %v1126, %v1128
      %v1130 = vsel %vm1129, %v1125, inf
      %1131 = vmin.xlane.f32.xlu0 %v1130
      %v1132 = vpop.xlane.xlu0 %1131
      %v1133 = vcvt.f32.s32 %v1132
      %v1134 = vcvt.f32.s32 %v1128
      %v1135 = vshll.u32 %v1134, 16
      %v1136 = vadd.s32 %v1135, %v1133
      %v1137 = vsel %vm631, %v1031, 2147483647
      %v1138 = vand.u32 %v1137, 65535
      %v1139 = vshra.s32 %v1137, 16
      %v1140 = vcvt.s32.f32 %v1138
      %v1141 = vcvt.s32.f32 %v1139
      %1142 = vmin.xlane.f32.xlu0 %v1141
      %v1143 = vpop.xlane.xlu0 %1142
      %vm1144 = vcmp.eq.f32.partialorder %v1141, %v1143
      %v1145 = vsel %vm1144, %v1140, inf
      %1146 = vmin.xlane.f32.xlu0 %v1145
      %v1147 = vpop.xlane.xlu0 %1146
      %v1148 = vcvt.f32.s32 %v1147
      %v1149 = vcvt.f32.s32 %v1143
      %v1150 = vshll.u32 %v1149, 16
      %v1151 = vadd.s32 %v1150, %v1148
      %vm1152 = vcmp.eq.s32.totalorder %v630, %v1046
      %vm1153 = vcmp.eq.s32.totalorder %v630, %v1061
      %vm1154 = vcmp.eq.s32.totalorder %v630, %v1076
      %vm1155 = vcmp.eq.s32.totalorder %v630, %v1091
      %vm1156 = vcmp.eq.s32.totalorder %v630, %v1106
      %vm1157 = vcmp.eq.s32.totalorder %v630, %v1121
      %vm1158 = vcmp.eq.s32.totalorder %v630, %v1136
      %vm1159 = vcmp.eq.s32.totalorder %v630, %v1151
      %vm1160 = vmor %vm976, %vm1152
      %vm1161 = vmor %vm977, %vm1153
      %vm1162 = vmor %vm978, %vm1154
      %vm1163 = vmor %vm979, %vm1155
      %vm1164 = vmor %vm980, %vm1156
      %vm1165 = vmor %vm981, %vm1157
      %vm1166 = vmor %vm982, %vm1158
      %vm1167 = vmor %vm983, %vm1159
      %v1168 = vadd.f32 %v621, 1e-08
      %v1169 = vadd.f32 %v622, 1e-08
      %v1170 = vadd.f32 %v623, 1e-08
      %v1171 = vadd.f32 %v624, 1e-08
      %v1172 = vadd.f32 %v625, 1e-08
      %v1173 = vadd.f32 %v626, 1e-08
      %v1174 = vadd.f32 %v627, 1e-08
      %v1175 = vadd.f32 %v628, 1e-08
      %v1176 = vrcp.pop %v1168
      %v1177 = vrcp.pop %v1169
      %v1178 = vrcp.pop %v1170
      %v1179 = vrcp.pop %v1171
      %v1180 = vrcp.pop %v1172
      %v1181 = vrcp.pop %v1173
      %v1182 = vrcp.pop %v1174
      %v1183 = vrcp.pop %v1175
      %v1184 = vsel %vm1160, %v1176, 0.0
      %v1185 = vsel %vm1161, %v1177, 0.0
      %v1186 = vsel %vm1162, %v1178, 0.0
      %v1187 = vsel %vm1163, %v1179, 0.0
      %v1188 = vsel %vm1164, %v1180, 0.0
      %v1189 = vsel %vm1165, %v1181, 0.0
      %v1190 = vsel %vm1166, %v1182, 0.0
      %v1191 = vsel %vm1167, %v1183, 0.0
      %v1192 = vsel %vm631, %v1184, 0.0
      %1193 = vadd.xlane.f32.xlu0 %v1192
      %v1194 = vpop.xlane.xlu0 %1193
      %v1195 = vsel %vm631, %v1185, 0.0
      %1196 = vadd.xlane.f32.xlu0 %v1195
      %v1197 = vpop.xlane.xlu0 %1196
      %v1198 = vsel %vm631, %v1186, 0.0
      %1199 = vadd.xlane.f32.xlu0 %v1198
      %v1200 = vpop.xlane.xlu0 %1199
      %v1201 = vsel %vm631, %v1187, 0.0
      %1202 = vadd.xlane.f32.xlu0 %v1201
      %v1203 = vpop.xlane.xlu0 %1202
      %v1204 = vsel %vm631, %v1188, 0.0
      %1205 = vadd.xlane.f32.xlu0 %v1204
      %v1206 = vpop.xlane.xlu0 %1205
      %v1207 = vsel %vm631, %v1189, 0.0
      %1208 = vadd.xlane.f32.xlu0 %v1207
      %v1209 = vpop.xlane.xlu0 %1208
      %v1210 = vsel %vm631, %v1190, 0.0
      %1211 = vadd.xlane.f32.xlu0 %v1210
      %v1212 = vpop.xlane.xlu0 %1211
      %v1213 = vsel %vm631, %v1191, 0.0
      %1214 = vadd.xlane.f32.xlu0 %v1213
      %v1215 = vpop.xlane.xlu0 %1214
      %v1216 = vrcp.pop %v1194
      %v1217 = vrcp.pop %v1197
      %v1218 = vrcp.pop %v1200
      %v1219 = vrcp.pop %v1203
      %v1220 = vrcp.pop %v1206
      %v1221 = vrcp.pop %v1209
      %v1222 = vrcp.pop %v1212
      %v1223 = vrcp.pop %v1215
      %v1224 = vmul.f32 %v1184, %v1216
      %v1225 = vmul.f32 %v1185, %v1217
      %v1226 = vmul.f32 %v1186, %v1218
      %v1227 = vmul.f32 %v1187, %v1219
      %v1228 = vmul.f32 %v1188, %v1220
      %v1229 = vmul.f32 %v1189, %v1221
      %v1230 = vmul.f32 %v1190, %v1222
      %v1231 = vmul.f32 %v1191, %v1223
      %v1232 = vpack.c.bf16 %v1225, %v1224
      %v1233 = vpack.c.bf16 %v1227, %v1226
      %v1234 = vpack.c.bf16 %v1229, %v1228
      %v1235 = vpack.c.bf16 %v1231, %v1230
      %v1236 = vld [vmem:[%s420] sm:$0xf]
      %v1237 = vld [vmem:[%s420 + $0x4] sm:$0xf]
      %v1238 = vld [vmem:[%s420 + $0x8] sm:$0xf]
      %v1239 = vld [vmem:[%s420 + $0xc] sm:$0xf]
      %v1244 = vunpack.c.l.b16 %v1236
      %v1245 = vunpack.c.l.b16 %v1237
      %v1246 = vunpack.c.l.b16 %v1238
      %v1247 = vunpack.c.l.b16 %v1239
      %v1248 = vpack.c.b16 %v1245, %v1244
      %v1249 = vpack.c.b16 %v1247, %v1246
      %v1253 = vsel %vm631, %v1232, 0
      %v1256 = vsel %vm631, %v1233, 0
      %v1259 = vsel %vm631, %v1234, 0
      %v1262 = vsel %vm631, %v1235, 0
      %1264 = vmatprep.subr.bf16.mxu0 0
      %1265 = vmatpush1.bf16.msra.mxu0 %v1248
      %1266 = vmatprep.subr.bf16.mxu0 0
      %1267 = vmatpush1.bf16.msra.mxu0 %v1249
      %1268 = vmatprep.subr.bf16.mxu0 0
      %1269 = vmatpush1.bf16.msra.mxu0 0
      %1270 = vmatprep.subr.bf16.mxu0 0
      %1271 = vmatpush1.bf16.msra.mxu0 0
      %1272 = vmatprep.subr.bf16.mxu0 0
      %1273 = vmatpush1.bf16.msra.mxu0 0
      %1274 = vmatprep.subr.bf16.mxu0 0
      %1275 = vmatpush1.bf16.msra.mxu0 0
      %1276 = vmatprep.subr.bf16.mxu0 0
      %1277 = vmatpush1.bf16.msra.mxu0 0
      %1278 = vmatprep.subr.bf16.mxu0 0
      %1279 = vmatpush1.bf16.msra.mxu0 0
      %1280 = vmatprep.subr.bf16.mxu0 0
      %1281 = vmatpush1.bf16.msra.mxu0 0
      %1282 = vmatprep.subr.bf16.mxu0 0
      %1283 = vmatpush1.bf16.msra.mxu0 0
      %1284 = vmatprep.subr.bf16.mxu0 0
      %1285 = vmatpush1.bf16.msra.mxu0 0
      %1286 = vmatprep.subr.bf16.mxu0 0
      %1287 = vmatpush1.bf16.msra.mxu0 0
      %1288 = vmatprep.subr.bf16.mxu0 0
      %1289 = vmatpush1.bf16.msra.mxu0 0
      %1290 = vmatprep.subr.bf16.mxu0 0
      %1291 = vmatpush1.bf16.msra.mxu0 0
      %1292 = vmatprep.subr.bf16.mxu0 0
      %1293 = vmatpush1.bf16.msra.mxu0 0
      %1294 = vmatprep.subr.bf16.mxu0 0
      %1295 = vmatpush1.bf16.msra.mxu0 0
      %1296 = vmatprep.mubr.bf16.mxu0 0
      %1297 = vmatmul.mubr.bf16.gmra.mrb[0].mxu0 %v1253
      %v1298 = vpop.f32.mrb[0].mxu0
      %v1299 = vadd.f32 0.0, %v1298
      %v1300 = vpop.f32.mrb[0].mxu0
      %v1301 = vpop.f32.mrb[0].mxu0
      %v1302 = vadd.f32 0.0, %v1301
      %v1303 = vpop.f32.mrb[0].mxu0
      %1304 = vmatprep.mubr.bf16.mxu0 0
      %1305 = vmatmul.mubr.bf16.gmra.mrb[0].mxu0 %v1256
      %v1306 = vpop.f32.mrb[0].mxu0
      %v1307 = vadd.f32 0.0, %v1306
      %v1308 = vpop.f32.mrb[0].mxu0
      %v1309 = vpop.f32.mrb[0].mxu0
      %v1310 = vadd.f32 0.0, %v1309
      %v1311 = vpop.f32.mrb[0].mxu0
      %1312 = vmatprep.mubr.bf16.mxu0 0
      %1313 = vmatmul.mubr.bf16.gmra.mrb[0].mxu0 %v1259
      %v1314 = vpop.f32.mrb[0].mxu0
      %v1315 = vadd.f32 0.0, %v1314
      %v1316 = vpop.f32.mrb[0].mxu0
      %v1317 = vpop.f32.mrb[0].mxu0
      %v1318 = vadd.f32 0.0, %v1317
      %v1319 = vpop.f32.mrb[0].mxu0
      %1320 = vmatprep.mubr.bf16.mxu0 0
      %1321 = vmatmul.mubr.bf16.gmra.mrb[0].mxu0 %v1262
      %v1322 = vpop.f32.mrb[0].mxu0
      %v1323 = vadd.f32 0.0, %v1322
      %v1324 = vpop.f32.mrb[0].mxu0
      %v1325 = vpop.f32.mrb[0].mxu0
      %v1326 = vadd.f32 0.0, %v1325
      %v1327 = vpop.f32.mrb[0].mxu0
      %1328 = vdwg.mxu0
      %v1329 = vld [vmem:[%s414] sm:$0xf]
      %v1330 = vld [vmem:[%s414 + $0x4] sm:$0xf]
      %v1331 = vld [vmem:[%s414 + $0x8] sm:$0xf]
      %v1332 = vld [vmem:[%s414 + $0xc] sm:$0xf]
      %v1333 = vld [vmem:[%s414 + $0x10] sm:$0xf]
      %v1334 = vld [vmem:[%s414 + $0x14] sm:$0xf]
      %v1335 = vld [vmem:[%s414 + $0x18] sm:$0xf]
      %v1336 = vld [vmem:[%s414 + $0x1c] sm:$0xf]
      %v1337 = vld [vmem:[%s4] sm:$0xf]
      %v1338 = vld [vmem:[%s4 + $0x4] sm:$0xf]
      %v1339 = vld [vmem:[%s4 + $0x8] sm:$0xf]
      %v1340 = vld [vmem:[%s4 + $0xc] sm:$0xf]
      %v1341 = vld [vmem:[%s4 + $0x10] sm:$0xf]
      %v1342 = vld [vmem:[%s4 + $0x14] sm:$0xf]
      %v1343 = vld [vmem:[%s4 + $0x18] sm:$0xf]
      %v1344 = vld [vmem:[%s4 + $0x1c] sm:$0xf]
      %v1345 = vld [vmem:[%s4 + $0x20] sm:$0xf]
      %v1346 = vld [vmem:[%s4 + $0x24] sm:$0xf]
      %v1347 = vld [vmem:[%s4 + $0x28] sm:$0xf]
      %v1348 = vld [vmem:[%s4 + $0x2c] sm:$0xf]
      %v1349 = vld [vmem:[%s4 + $0x30] sm:$0xf]
      %v1350 = vld [vmem:[%s4 + $0x34] sm:$0xf]
      %v1351 = vld [vmem:[%s4 + $0x38] sm:$0xf]
      %v1352 = vld [vmem:[%s4 + $0x3c] sm:$0xf]
      %v1353 = vpack.c.bf16 %v1302, %v1299
      %v1354 = vpack.c.bf16 %v1310, %v1307
      %v1355 = vpack.c.bf16 %v1318, %v1315
      %v1356 = vpack.c.bf16 %v1326, %v1323
      %v1357 = vld [vmem:[%s5] sm:$0xf]
      %v1358 = vld [vmem:[%s5 + $0x4] sm:$0xf]
      %v1359 = vld [vmem:[%s5 + $0x8] sm:$0xf]
      %v1360 = vld [vmem:[%s5 + $0xc] sm:$0xf]
      %v1361 = vld [vmem:[%s5 + $0x10] sm:$0xf]
      %v1362 = vld [vmem:[%s5 + $0x14] sm:$0xf]
      %v1363 = vld [vmem:[%s5 + $0x18] sm:$0xf]
      %v1364 = vld [vmem:[%s5 + $0x1c] sm:$0xf]
      %v1365 = vld [vmem:[%s5 + $0x20] sm:$0xf]
      %v1366 = vld [vmem:[%s5 + $0x24] sm:$0xf]
      %v1367 = vld [vmem:[%s5 + $0x28] sm:$0xf]
      %v1368 = vld [vmem:[%s5 + $0x2c] sm:$0xf]
      %v1369 = vld [vmem:[%s5 + $0x30] sm:$0xf]
      %v1370 = vld [vmem:[%s5 + $0x34] sm:$0xf]
      %v1371 = vld [vmem:[%s5 + $0x38] sm:$0xf]
      %v1372 = vld [vmem:[%s5 + $0x3c] sm:$0xf]
      %v1389 = vunpack.c.l.b16 %v1357
      %v1390 = vunpack.c.l.b16 %v1358
      %v1391 = vunpack.c.l.b16 %v1359
      %v1392 = vunpack.c.l.b16 %v1360
      %v1393 = vunpack.c.l.b16 %v1361
      %v1394 = vunpack.c.l.b16 %v1362
      %v1395 = vunpack.c.l.b16 %v1363
      %v1396 = vunpack.c.l.b16 %v1364
      %v1397 = vunpack.c.l.b16 %v1365
      %v1398 = vunpack.c.l.b16 %v1366
      %v1399 = vunpack.c.l.b16 %v1367
      %v1400 = vunpack.c.l.b16 %v1368
      %v1401 = vunpack.c.l.b16 %v1369
      %v1402 = vunpack.c.l.b16 %v1370
      %v1403 = vunpack.c.l.b16 %v1371
      %v1404 = vunpack.c.l.b16 %v1372
      %v1405 = vpack.c.b16 %v1390, %v1389
      %v1406 = vpack.c.b16 %v1392, %v1391
      %v1407 = vpack.c.b16 %v1394, %v1393
      %v1408 = vpack.c.b16 %v1396, %v1395
      %v1409 = vpack.c.b16 %v1398, %v1397
      %v1410 = vpack.c.b16 %v1400, %v1399
      %v1411 = vpack.c.b16 %v1402, %v1401
      %v1412 = vpack.c.b16 %v1404, %v1403
      %1421 = vmatprep.subr.bf16.mxu0 0
      %1422 = vmatpush1.bf16.msra.mxu0 %v1405
      %1423 = vmatprep.subr.bf16.mxu0 0
      %1424 = vmatpush1.bf16.msra.mxu0 %v1406
      %1425 = vmatprep.subr.bf16.mxu0 0
      %1426 = vmatpush1.bf16.msra.mxu0 %v1407
      %1427 = vmatprep.subr.bf16.mxu0 0
      %1428 = vmatpush1.bf16.msra.mxu0 %v1408
      %1429 = vmatprep.subr.bf16.mxu0 0
      %1430 = vmatpush1.bf16.msra.mxu0 %v1409
      %1431 = vmatprep.subr.bf16.mxu0 0
      %1432 = vmatpush1.bf16.msra.mxu0 %v1410
      %1433 = vmatprep.subr.bf16.mxu0 0
      %1434 = vmatpush1.bf16.msra.mxu0 %v1411
      %1435 = vmatprep.subr.bf16.mxu0 0
      %1436 = vmatpush1.bf16.msra.mxu0 %v1412
      %1437 = vmatprep.subr.bf16.mxu0 0
      %1438 = vmatpush1.bf16.msra.mxu0 0
      %1439 = vmatprep.subr.bf16.mxu0 0
      %1440 = vmatpush1.bf16.msra.mxu0 0
      %1441 = vmatprep.subr.bf16.mxu0 0
      %1442 = vmatpush1.bf16.msra.mxu0 0
      %1443 = vmatprep.subr.bf16.mxu0 0
      %1444 = vmatpush1.bf16.msra.mxu0 0
      %1445 = vmatprep.subr.bf16.mxu0 0
      %1446 = vmatpush1.bf16.msra.mxu0 0
      %1447 = vmatprep.subr.bf16.mxu0 0
      %1448 = vmatpush1.bf16.msra.mxu0 0
      %1449 = vmatprep.subr.bf16.mxu0 0
      %1450 = vmatpush1.bf16.msra.mxu0 0
      %1451 = vmatprep.subr.bf16.mxu0 0
      %1452 = vmatpush1.bf16.msra.mxu0 0
      %1453 = vmatprep.mubr.bf16.mxu0 0
      %1454 = vmatmul.mubr.bf16.gmra.mrb[0].mxu0 %v1353
      %v1455 = vpop.f32.mrb[0].mxu0
      %v1456 = vadd.f32 0.0, %v1455
      %v1457 = vpop.f32.mrb[0].mxu0
      %v1458 = vpop.f32.mrb[0].mxu0
      %v1459 = vadd.f32 0.0, %v1458
      %v1460 = vpop.f32.mrb[0].mxu0
      %1461 = vmatprep.mubr.bf16.mxu0 0
      %1462 = vmatmul.mubr.bf16.gmra.mrb[0].mxu0 %v1354
      %v1463 = vpop.f32.mrb[0].mxu0
      %v1464 = vadd.f32 0.0, %v1463
      %v1465 = vpop.f32.mrb[0].mxu0
      %v1466 = vpop.f32.mrb[0].mxu0
      %v1467 = vadd.f32 0.0, %v1466
      %v1468 = vpop.f32.mrb[0].mxu0
      %1469 = vmatprep.mubr.bf16.mxu0 0
      %1470 = vmatmul.mubr.bf16.gmra.mrb[0].mxu0 %v1355
      %v1471 = vpop.f32.mrb[0].mxu0
      %v1472 = vadd.f32 0.0, %v1471
      %v1473 = vpop.f32.mrb[0].mxu0
      %v1474 = vpop.f32.mrb[0].mxu0
      %v1475 = vadd.f32 0.0, %v1474
      %v1476 = vpop.f32.mrb[0].mxu0
      %1477 = vmatprep.mubr.bf16.mxu0 0
      %1478 = vmatmul.mubr.bf16.gmra.mrb[0].mxu0 %v1356
      %v1479 = vpop.f32.mrb[0].mxu0
      %v1480 = vadd.f32 0.0, %v1479
      %v1481 = vpop.f32.mrb[0].mxu0
      %v1482 = vpop.f32.mrb[0].mxu0
      %v1483 = vadd.f32 0.0, %v1482
      %v1484 = vpop.f32.mrb[0].mxu0
      %1485 = vdwg.mxu0
      %v1494 = vunpack.c.l.b16 %v1329
      %v1495 = vunpack.c.l.b16 %v1330
      %v1496 = vunpack.c.l.b16 %v1331
      %v1497 = vunpack.c.l.b16 %v1332
      %v1498 = vunpack.c.l.b16 %v1333
      %v1499 = vunpack.c.l.b16 %v1334
      %v1500 = vunpack.c.l.b16 %v1335
      %v1501 = vunpack.c.l.b16 %v1336
      %v1502 = vpack.c.b16 %v1495, %v1494
      %v1503 = vpack.c.b16 %v1497, %v1496
      %v1504 = vpack.c.b16 %v1499, %v1498
      %v1505 = vpack.c.b16 %v1501, %v1500
      %v1526 = vunpack.c.l.b16 %v1337
      %v1527 = vunpack.c.l.b16 %v1338
      %v1528 = vunpack.c.l.b16 %v1339
      %v1529 = vunpack.c.l.b16 %v1340
      %v1530 = vunpack.c.l.b16 %v1341
      %v1531 = vunpack.c.l.b16 %v1342
      %v1532 = vunpack.c.l.b16 %v1343
      %v1533 = vunpack.c.l.b16 %v1344
      %v1534 = vunpack.c.l.b16 %v1345
      %v1535 = vunpack.c.l.b16 %v1346
      %v1536 = vunpack.c.l.b16 %v1347
      %v1537 = vunpack.c.l.b16 %v1348
      %v1538 = vunpack.c.l.b16 %v1349
      %v1539 = vunpack.c.l.b16 %v1350
      %v1540 = vunpack.c.l.b16 %v1351
      %v1541 = vunpack.c.l.b16 %v1352
      %v1542 = vpack.c.b16 %v1527, %v1526
      %v1543 = vpack.c.b16 %v1529, %v1528
      %v1544 = vpack.c.b16 %v1531, %v1530
      %v1545 = vpack.c.b16 %v1533, %v1532
      %v1546 = vpack.c.b16 %v1535, %v1534
      %v1547 = vpack.c.b16 %v1537, %v1536
      %v1548 = vpack.c.b16 %v1539, %v1538
      %v1549 = vpack.c.b16 %v1541, %v1540
      %1558 = vmatprep.subr.bf16.mxu0 0
      %1559 = vmatpush1.bf16.msra.mxu0 %v1542
      %1560 = vmatprep.subr.bf16.mxu0 0
      %1561 = vmatpush1.bf16.msra.mxu0 %v1543
      %1562 = vmatprep.subr.bf16.mxu0 0
      %1563 = vmatpush1.bf16.msra.mxu0 %v1544
      %1564 = vmatprep.subr.bf16.mxu0 0
      %1565 = vmatpush1.bf16.msra.mxu0 %v1545
      %1566 = vmatprep.subr.bf16.mxu0 0
      %1567 = vmatpush1.bf16.msra.mxu0 %v1546
      %1568 = vmatprep.subr.bf16.mxu0 0
      %1569 = vmatpush1.bf16.msra.mxu0 %v1547
      %1570 = vmatprep.subr.bf16.mxu0 0
      %1571 = vmatpush1.bf16.msra.mxu0 %v1548
      %1572 = vmatprep.subr.bf16.mxu0 0
      %1573 = vmatpush1.bf16.msra.mxu0 %v1549
      %1574 = vmatprep.subr.bf16.mxu0 0
      %1575 = vmatpush1.bf16.msra.mxu0 0
      %1576 = vmatprep.subr.bf16.mxu0 0
      %1577 = vmatpush1.bf16.msra.mxu0 0
      %1578 = vmatprep.subr.bf16.mxu0 0
      %1579 = vmatpush1.bf16.msra.mxu0 0
      %1580 = vmatprep.subr.bf16.mxu0 0
      %1581 = vmatpush1.bf16.msra.mxu0 0
      %1582 = vmatprep.subr.bf16.mxu0 0
      %1583 = vmatpush1.bf16.msra.mxu0 0
      %1584 = vmatprep.subr.bf16.mxu0 0
      %1585 = vmatpush1.bf16.msra.mxu0 0
      %1586 = vmatprep.subr.bf16.mxu0 0
      %1587 = vmatpush1.bf16.msra.mxu0 0
      %1588 = vmatprep.subr.bf16.mxu0 0
      %1589 = vmatpush1.bf16.msra.mxu0 0
      %1590 = vmatprep.mubr.bf16.mxu0 0
      %1591 = vmatmul.mubr.bf16.gmra.mrb[0].mxu0 %v1502
      %v1592 = vpop.f32.mrb[0].mxu0
      %v1593 = vadd.f32 %v1456, %v1592
      %v1594 = vpop.f32.mrb[0].mxu0
      %v1595 = vpop.f32.mrb[0].mxu0
      %v1596 = vadd.f32 %v1459, %v1595
      %v1597 = vpop.f32.mrb[0].mxu0
      %1598 = vmatprep.mubr.bf16.mxu0 0
      %1599 = vmatmul.mubr.bf16.gmra.mrb[0].mxu0 %v1503
      %v1600 = vpop.f32.mrb[0].mxu0
      %v1601 = vadd.f32 %v1464, %v1600
      %v1602 = vpop.f32.mrb[0].mxu0
      %v1603 = vpop.f32.mrb[0].mxu0
      %v1604 = vadd.f32 %v1467, %v1603
      %v1605 = vpop.f32.mrb[0].mxu0
      %1606 = vmatprep.mubr.bf16.mxu0 0
      %1607 = vmatmul.mubr.bf16.gmra.mrb[0].mxu0 %v1504
      %v1608 = vpop.f32.mrb[0].mxu0
      %v1609 = vadd.f32 %v1472, %v1608
      %v1610 = vpop.f32.mrb[0].mxu0
      %v1611 = vpop.f32.mrb[0].mxu0
      %v1612 = vadd.f32 %v1475, %v1611
      %v1613 = vpop.f32.mrb[0].mxu0
      %1614 = vmatprep.mubr.bf16.mxu0 0
      %1615 = vmatmul.mubr.bf16.gmra.mrb[0].mxu0 %v1505
      %v1616 = vpop.f32.mrb[0].mxu0
      %v1617 = vadd.f32 %v1480, %v1616
      %v1618 = vpop.f32.mrb[0].mxu0
      %v1619 = vpop.f32.mrb[0].mxu0
      %v1620 = vadd.f32 %v1483, %v1619
      %v1621 = vpop.f32.mrb[0].mxu0
      %1622 = vdwg.mxu0
      %v1623 = vld [vmem:[%s6] sm:$0x1]
      %v1625 = vlaneseq
      %v1626 = vshrl.u32 %v1625, 7
      %v1627 = vsub.s32 0, %v1626
      %v1628 = vrot.slane %v1623, %v1627
      %v1630 = vadd.f32 %v1593, %v1628
      %v1631 = vadd.f32 %v1596, %v1628
      %v1632 = vadd.f32 %v1601, %v1628
      %v1633 = vadd.f32 %v1604, %v1628
      %v1634 = vadd.f32 %v1609, %v1628
      %v1635 = vadd.f32 %v1612, %v1628
      %v1636 = vadd.f32 %v1617, %v1628
      %v1637 = vadd.f32 %v1620, %v1628
      %1638 = vst [vmem:[%s429] sm:$0xff] %v1630
      %1639 = vst [vmem:[%s429 + $0x8] sm:$0xff] %v1631
      %1640 = vst [vmem:[%s429 + $0x10] sm:$0xff] %v1632
      %1641 = vst [vmem:[%s429 + $0x18] sm:$0xff] %v1633
      %1642 = vst [vmem:[%s429 + $0x20] sm:$0xff] %v1634
      %1643 = vst [vmem:[%s429 + $0x28] sm:$0xff] %v1635
      %1644 = vst [vmem:[%s429 + $0x30] sm:$0xff] %v1636
      %1645 = vst [vmem:[%s429 + $0x38] sm:$0xff] %v1637
      %v1646 = vadd.f32 %v1630, %v1631
      %v1647 = vadd.f32 %v1646, %v1632
      %v1648 = vadd.f32 %v1647, %v1633
      %v1649 = vadd.f32 %v1648, %v1634
      %v1650 = vadd.f32 %v1649, %v1635
      %v1651 = vadd.f32 %v1650, %v1636
      %v1652 = vadd.f32 %v1651, %v1637
      %v1653 = vrot.slane %v1652, 4
      %v1654 = vadd.f32 %v1652, %v1653
      %v1655 = vrot.slane %v1654, 2
      %v1656 = vadd.f32 %v1654, %v1655
      %v1657 = vrot.slane %v1656, 1
      %v1658 = vadd.f32 %v1656, %v1657
      %v1659 = vmul.f32 %v1630, %v1630
      %v1660 = vmul.f32 %v1631, %v1631
      %v1661 = vmul.f32 %v1632, %v1632
      %v1662 = vmul.f32 %v1633, %v1633
      %v1663 = vmul.f32 %v1634, %v1634
      %v1664 = vmul.f32 %v1635, %v1635
      %v1665 = vmul.f32 %v1636, %v1636
      %v1666 = vmul.f32 %v1637, %v1637
      %v1667 = vadd.f32 %v1659, %v1660
      %v1668 = vadd.f32 %v1667, %v1661
      %v1669 = vadd.f32 %v1668, %v1662
      %v1670 = vadd.f32 %v1669, %v1663
      %v1671 = vadd.f32 %v1670, %v1664
      %v1672 = vadd.f32 %v1671, %v1665
      %v1673 = vadd.f32 %v1672, %v1666
      %v1674 = vrot.slane %v1673, 4
      %v1675 = vadd.f32 %v1673, %v1674
      %v1676 = vrot.slane %v1675, 2
      %v1677 = vadd.f32 %v1675, %v1676
      %v1678 = vrot.slane %v1677, 1
      %v1679 = vadd.f32 %v1677, %v1678
      %vm1680 = vcmask 1040384
      %v1681 = vsel %vm1680, %v1658, %v1679
      %vm1682 = vcmask 1041408
      %v1683 = vsel %vm1682, %v1681, 0.0
      %1684 = vst [vmem:[%s438] sm:$0xff] %v1683
      %s1685 = smul.u32 8, %s25
      %p1686 = scmp.lt.s32.totalorder %s24, 1
      %s1687 = scalar_select %p1686, %s24, 1
      %p1688 = scmp.lt.s32.totalorder %s1685, 15
      %s1689 = scalar_select %p1688, %s1685, 15
      %s1690 = smul.addr %s1687, 16
      %s1691 = sadd.s32 %s1689, %s1690
      %s1692 = smul.addr %s1691, 8
      %s1693 = scalar_lea.vmem %s7, %s1692
      %p1694 = scmp.lt.s32.totalorder %s24, 1
      %s1695 = scalar_select %p1694, %s24, 1
      %p1696 = scmp.lt.s32.totalorder %s25, 1
      %s1697 = scalar_select %p1696, %s25, 1
      %s1698 = smul.addr %s1695, 2
      %s1699 = sadd.s32 %s1697, %s1698
      %s1700 = smul.addr %s1699, 8
      %s1701 = scalar_lea.vmem %s8, %s1700
      // Predicated region
      $region49: #{pointnet_feature_propagation.4} parent=47 // pred_check
        %p1702 = pneg %p223
      $region50: #{pointnet_feature_propagation.4} parent=47 // pred_check_branch
        %1704 = sbr.rel (%p1702) target = $region52
      $region51: #{pointnet_feature_propagation.4} parent=47 // pred_region
        %s1705 = smul.u32 8, %s25
      $region52: #{pointnet_feature_propagation.4} parent=47 // pred_fallthru
        _
      // Predicated region
      $region53: #{pointnet_feature_propagation.4} parent=47 // pred_check
        %p1706 = pneg %p251
      $region54: #{pointnet_feature_propagation.4} parent=47 // pred_check_branch
        %1708 = sbr.rel (%p1706) target = $region56
      $region55: #{pointnet_feature_propagation.4} parent=47 // pred_region
        _
      $region56: #{pointnet_feature_propagation.4} parent=47 // pred_fallthru
        _
    $region48: #{pointnet_feature_propagation.4} parent=5 // pred_fallthru
      _
    %p1709 = scmp.le.s32.totalorder 2, %s15
    // Predicated region
    $region57: #{pointnet_feature_propagation.4} parent=5 // pred_check
      %p1710 = pneg %p1709
    $region58: #{pointnet_feature_propagation.4} parent=5 // pred_check_branch
      %1712 = sbr.rel (%p1710) target = $region60
    $region59: #{pointnet_feature_propagation.4} parent=5 // pred_region
      %s1713 = ssub.s32 %s15, 2
      // Predicated region
      $region61: #{pointnet_feature_propagation.4} parent=59 // pred_check
        %p1714 = pneg %p229
      $region62: #{pointnet_feature_propagation.4} parent=59 // pred_check_branch
        %1716 = sbr.rel (%p1714) target = $region64
      $region63: #{pointnet_feature_propagation.4} parent=59 // pred_region
        %s1717 = smul.u32 8, %s27
        %p1718 = scmp.lt.s32.totalorder %s26, 1
        %s1719 = scalar_select %p1718, %s26, 1
        %p1720 = scmp.lt.s32.totalorder %s1717, 15
        %s1721 = scalar_select %p1720, %s1717, 15
        %s1722 = smul.addr %s1719, 16
        %s1723 = sadd.s32 %s1721, %s1722
        %s1724 = smul.addr %s1723, 8
        %s1725 = scalar_lea.vmem %s7, %s1724
      $region64: #{pointnet_feature_propagation.4} parent=59 // pred_fallthru
        _
      // Predicated region
      $region65: #{pointnet_feature_propagation.4} parent=59 // pred_check
        %p1726 = pneg %p257
      $region66: #{pointnet_feature_propagation.4} parent=59 // pred_check_branch
        %1728 = sbr.rel (%p1726) target = $region68
      $region67: #{pointnet_feature_propagation.4} parent=59 // pred_region
        %p1729 = scmp.lt.s32.totalorder %s26, 1
        %s1730 = scalar_select %p1729, %s26, 1
        %p1731 = scmp.lt.s32.totalorder %s27, 1
        %s1732 = scalar_select %p1731, %s27, 1
        %s1733 = smul.addr %s1730, 2
        %s1734 = sadd.s32 %s1732, %s1733
        %s1735 = smul.addr %s1734, 8
        %s1736 = scalar_lea.vmem %s8, %s1735
      $region68: #{pointnet_feature_propagation.4} parent=59 // pred_fallthru
        _
    $region60: #{pointnet_feature_propagation.4} parent=5 // pred_fallthru
      _
  $region6: #{pointnet_feature_propagation.4} parent=0 // loop_footer
    %s19 = sadd.s32 1, %s15
  $region7: #{pointnet_feature_propagation.4} parent=0 // loop_footer_branch
    %14 = sbr.rel target = $region3
  $region8: #{pointnet_feature_propagation.4} parent=0 // loop_exit
    _

</llo_original>
